<compile_context>
chip_gen: v7x
topology: tpu7x:2x2x1
jax: 0.10.0
libtpu: 0.0.40
codegen_flags: <defaults>
</compile_context>

<pallas_src>
import math

import jax
import jax.numpy as jnp
from jax.experimental import pallas as pl
from jax.experimental.pallas import tpu as pltpu

# ----------------------------- configuration ------------------------------- #
B = 2              # batch
SIGNAL_LEN = 64    # params.signal_length
F1, F2 = 8, 16     # conv_features1_nb, conv_features2_nb
K1 = 3             # conv_kernel1_size
PADDING = 1        # cnn_padding_size
POOL_K = POOL_S = 2
LATENT = 32        # latent_dimention
CLS_HID = 64       # class_hidden_size
NUM_DEV = 10       # num_dev
PAD_OUT = 128      # logits padded to 128 lanes inside the kernel (unmasked store)

# out_size bookkeeping (mirrors the reference __init__ formula, stride=1)
_out = SIGNAL_LEN
for _ in range(3):
    _out = math.floor(
        (math.ceil((_out + 2 * PADDING - (K1 - 1)) / 1) - POOL_K) / POOL_S + 1)
OUT_SIZE = _out                      # == 8
D1 = F2 * OUT_SIZE                   # == 128 (flattened feature size)
assert OUT_SIZE == 8 and D1 == 128

_OUT_SHIFT = OUT_SIZE.bit_length() - 1     # 3
_LAT_SHIFT = LATENT.bit_length() - 1       # 5
_PAD_BASE = 8                              # sublane-aligned staging offset in scratch
_SCRATCH_ROWS = _PAD_BASE + B * SIGNAL_LEN + 8


# ------------------------------- kernel ------------------------------------- #
def _conv_pool_relu(a, w_ref, b_ref, pad_ref, seq_len):
    """Conv1d(k=3,s=1,p=1) + bias + ReLU + MaxPool1d(2,2), batch folded on rows.

    a:       [B*seq_len, F1] activation, row r = b*seq_len + l  (channels on lanes)
    w_ref:   [3, F1, Cout]   taps for input positions (l-1, l, l+1)
    b_ref:   [1, Cout]
    pad_ref: VMEM scratch used to build the +-1-row shifted views (in-kernel padding)
    returns: [B*seq_len//2, Cout]
    """
    bl, cin = a.shape
    assert seq_len & (seq_len - 1) == 0  # power of two -> cheap bit-mask position math

    # Stage the activation at a sublane-aligned offset; the +-1 taps are then plain
    # static slice loads.  Boundary rows (and cross-batch leakage) are masked below,
    # which implements the Conv1d zero padding without any wrapper-side jnp.pad.
    pad_ref[pl.ds(_PAD_BASE, bl), :] = a
    x_m1 = pad_ref[pl.ds(_PAD_BASE - 1, bl), :]          # row r -> a[r-1]
    x_p1 = pad_ref[pl.ds(_PAD_BASE + 1, bl), :]          # row r -> a[r+1]

    lpos = jax.lax.broadcasted_iota(jnp.int32, (bl, cin), 0) & (seq_len - 1)
    x_m1 = jnp.where(lpos == 0, 0.0, x_m1)
    x_p1 = jnp.where(lpos == seq_len - 1, 0.0, x_p1)

    acc = (jnp.dot(x_m1, w_ref[0], preferred_element_type=jnp.float32)
           + jnp.dot(a, w_ref[1], preferred_element_type=jnp.float32)
           + jnp.dot(x_p1, w_ref[2], preferred_element_type=jnp.float32))
    acc = jnp.maximum(acc + b_ref[...], 0.0)             # ReLU commutes with max-pool

    cout = acc.shape[1]
    return jnp.max(acc.reshape(bl // 2, 2, cout), axis=1)  # MaxPool1d(2, 2)


def _fused_forward_kernel(x_ref, w1_ref, b1_ref, w2_ref, b2_ref, w3_ref, b3_ref,
                          wfc_ref, bfc_ref, wc1_ref, bc1_ref, wc2_ref, bc2_ref,
                          o_ref, pad_ref):
    pad_ref[...] = jnp.zeros(pad_ref.shape, pad_ref.dtype)

    # Single input channel broadcast over F1 lanes; the layer-1 weight has zero rows
    # for the replicated lanes, so this is exact and keeps every layer lane-uniform.
    a = jnp.broadcast_to(x_ref[...], (B * SIGNAL_LEN, F1))            # [128, 8]

    a = _conv_pool_relu(a, w1_ref, b1_ref, pad_ref, SIGNAL_LEN)       # [B*32, 8]
    a = _conv_pool_relu(a, w2_ref, b2_ref, pad_ref, SIGNAL_LEN // 2)  # [B*16, 8]
    a = _conv_pool_relu(a, w3_ref, b3_ref, pad_ref, SIGNAL_LEN // 4)  # [B*8, 16]

    # ---- Flatten (PyTorch NCL order) + tail Linear(128->32) as ONE matmul.
    # wfc_ref[c, l*LATENT + j] holds fc_w[j, c*OUT_SIZE + l]; each row keeps only the
    # length-block matching its position (r % OUT_SIZE) and the blocks are summed, so
    # no transpose/reshape of the activation is ever needed.
    y = jnp.dot(a, wfc_ref[...], preferred_element_type=jnp.float32)  # [B*8, 8*32]
    row = jax.lax.broadcasted_iota(jnp.int32, y.shape, 0)
    col = jax.lax.broadcasted_iota(jnp.int32, y.shape, 1)
    y = jnp.where((col >> _LAT_SHIFT) == (row & (OUT_SIZE - 1)), y, 0.0)
    z_rows = y[:, 0:LATENT]
    for l in range(1, OUT_SIZE):
        z_rows = z_rows + y[:, l * LATENT:(l + 1) * LATENT]           # [B*8, 32]

    # Sum the OUT_SIZE rows belonging to each batch element via a tiny selector matmul.
    bi = jax.lax.broadcasted_iota(jnp.int32, (B, B * OUT_SIZE), 0)
    ri = jax.lax.broadcasted_iota(jnp.int32, (B, B * OUT_SIZE), 1)
    sel = ((ri >> _OUT_SHIFT) == bi).astype(jnp.float32)
    z = jnp.dot(sel, z_rows, preferred_element_type=jnp.float32) + bfc_ref[...]  # [B,32]

    # ---- F.normalize(p=2, dim=1): x / max(||x||, 1e-12)  (rsqrt -> EUP slot)
    ss = jnp.sum(z * z, axis=1, keepdims=True)
    z = z * jax.lax.rsqrt(jnp.maximum(ss, 1e-24))

    # ---- classifier: Linear(32->64) -> ReLU -> Linear(64->10, padded to 128 lanes)
    h = jnp.maximum(
        jnp.dot(z, wc1_ref[...], preferred_element_type=jnp.float32) + bc1_ref[...],
        0.0)
    o_ref[...] = (jnp.dot(h, wc2_ref[...], preferred_element_type=jnp.float32)
                  + bc2_ref[...])


# ------------------------------ wrapper ------------------------------------- #
@jax.jit
def class_cnn1_forward(x, p):
    """x: [B, SIGNAL_LEN] float32 -> logits [B, NUM_DEV]."""
    x_rows = x.reshape(B * SIGNAL_LEN, 1)          # row r = b*L + l (metadata reshape)
    logits_pad = pl.pallas_call(
        _fused_forward_kernel,
        out_shape=jax.ShapeDtypeStruct((B, PAD_OUT), jnp.float32),
        scratch_shapes=[pltpu.VMEM((_SCRATCH_ROWS, F1), jnp.float32)],
    )(x_rows,
      p["w_conv1"], p["b_conv1"], p["w_conv2"], p["b_conv2"],
      p["w_conv3"], p["b_conv3"],
      p["w_fc_cat"], p["b_fc"],
      p["w_cls1"], p["b_cls1"], p["w_cls2_pad"], p["b_cls2_pad"])
    return logits_pad[:, :NUM_DEV]


# --------------------------- parameter handling ------------------------------ #
def init_torch_weights(key):
    """PyTorch-native layouts: Conv1d [Cout, Cin, K], Linear [out, in]."""
    ks = jax.random.split(key, 12)

    def u(k, shape, fan_in):
        bound = 1.0 / math.sqrt(fan_in)
        return jax.random.uniform(k, shape, jnp.float32, -bound, bound)

    return {
        "conv1_w": u(ks[0], (F1, 1, K1), 1 * K1),   "conv1_b": u(ks[1], (F1,), 1 * K1),
        "conv2_w": u(ks[2], (F1, F1, K1), F1 * K1), "conv2_b": u(ks[3], (F1,), F1 * K1),
        "conv3_w": u(ks[4], (F2, F1, K1), F1 * K1), "conv3_b": u(ks[5], (F2,), F1 * K1),
        "fc_w": u(ks[6], (LATENT, D1), D1),         "fc_b": u(ks[7], (LATENT,), D1),
        "cls1_w": u(ks[8], (CLS_HID, LATENT), LATENT),
        "cls1_b": u(ks[9], (CLS_HID,), LATENT),
        "cls2_w": u(ks[10], (NUM_DEV, CLS_HID), CLS_HID),
        "cls2_b": u(ks[11], (NUM_DEV,), CLS_HID),
    }


def to_kernel_params(tw):
    """Compile-time conversion of PyTorch layouts to the fused-kernel layouts."""
    p = {}
    # Conv taps as [K, Cin, Cout]; layer-1 Cin padded 1 -> F1 with zero rows (the
    # kernel feeds a lane-broadcast copy of the single input channel).
    w1 = jnp.transpose(tw["conv1_w"], (2, 1, 0))                   # [3, 1, 8]
    p["w_conv1"] = jnp.pad(w1, ((0, 0), (0, F1 - 1), (0, 0)))      # [3, 8, 8]
    p["b_conv1"] = tw["conv1_b"][None, :]
    p["w_conv2"] = jnp.transpose(tw["conv2_w"], (2, 1, 0))         # [3, 8, 8]
    p["b_conv2"] = tw["conv2_b"][None, :]
    p["w_conv3"] = jnp.transpose(tw["conv3_w"], (2, 1, 0))         # [3, 8, 16]
    p["b_conv3"] = tw["conv3_b"][None, :]
    # Tail FC pre-permuted so the in-kernel row-folded NLC layout needs no
    # transpose/flatten: w_fc_cat[c, l*LATENT + j] = fc_w[j, c*OUT_SIZE + l]
    wfc = tw["fc_w"].reshape(LATENT, F2, OUT_SIZE)                 # [j, c, l]
    p["w_fc_cat"] = jnp.transpose(wfc, (1, 2, 0)).reshape(F2, OUT_SIZE * LATENT)
    p["b_fc"] = tw["fc_b"][None, :]
    p["w_cls1"] = tw["cls1_w"].T
    p["b_cls1"] = tw["cls1_b"][None, :]
    # Final Linear(64 -> 10) zero-padded to 128 output lanes (unmasked final store).
    p["w_cls2_pad"] = (jnp.zeros((CLS_HID, PAD_OUT), jnp.float32)
                       .at[:, :NUM_DEV].set(tw["cls2_w"].T))
    p["b_cls2_pad"] = (jnp.zeros((1, PAD_OUT), jnp.float32)
                       .at[0, :NUM_DEV].set(tw["cls2_b"]))
    return p


# --------------------------- pure-JAX reference ------------------------------ #
def reference_forward(x, tw):
    """Straightforward XLA re-implementation of the PyTorch forward (NCL layout)."""
    hp = jax.lax.Precision.HIGHEST
    h = x[:, None, :]                                              # [B, 1, L]
    for i in (1, 2, 3):
        h = jax.lax.conv_general_dilated(
            h, tw[f"conv{i}_w"], window_strides=(1,),
            padding=[(PADDING, PADDING)],
            dimension_numbers=("NCH", "OIH", "NCH"), precision=hp)
        h = h + tw[f"conv{i}_b"][None, :, None]
        h = jnp.maximum(h[:, :, 0::2], h[:, :, 1::2])              # MaxPool1d(2, 2)
        h = jnp.maximum(h, 0.0)                                    # ReLU (Dropout(0)=id)
    h = h.reshape(h.shape[0], -1)                                  # Flatten (NCL order)
    z = jnp.dot(h, tw["fc_w"].T, precision=hp) + tw["fc_b"]
    z = z / jnp.maximum(jnp.sqrt(jnp.sum(z * z, axis=1, keepdims=True)), 1e-12)
    h1 = jnp.maximum(jnp.dot(z, tw["cls1_w"].T, precision=hp) + tw["cls1_b"], 0.0)
    return jnp.dot(h1, tw["cls2_w"].T, precision=hp) + tw["cls2_b"]


# TODO(synk): ArcFace / expander / softmax branches of the reference are not taken
# under the assumed params (arcface=False, loss='CrossentropyLoss', use_extender=False)
# and are therefore not implemented.

if __name__ == "__main__":
    key = jax.random.PRNGKey(0)
    kx, kp = jax.random.split(key)
    x = jax.random.normal(kx, (B, SIGNAL_LEN), jnp.float32)

    torch_w = init_torch_weights(kp)
    kparams = to_kernel_params(torch_w)

    out = class_cnn1_forward(x, kparams)
    out = jax.block_until_ready(out)

    assert out.shape == (B, NUM_DEV), out.shape
    assert bool(jnp.all(jnp.isfinite(out)))

    ref = reference_forward(x, torch_w)
    err = float(jnp.max(jnp.abs(out - ref)))
    assert err < 5e-3, f"mismatch vs pure-JAX reference: max abs err = {err}"

    print("KERNEL_OK")
</pallas_src>

<mosaic_0001>
module attributes {stable_mosaic.version = 11 : i64} {
  func.func @_fused_forward_kernel(%arg0: memref<128x1xf32, #tpu.memory_space<vmem>>, %arg1: memref<3x8x8xf32, #tpu.memory_space<vmem>>, %arg2: memref<1x8xf32, #tpu.memory_space<vmem>>, %arg3: memref<3x8x8xf32, #tpu.memory_space<vmem>>, %arg4: memref<1x8xf32, #tpu.memory_space<vmem>>, %arg5: memref<3x8x16xf32, #tpu.memory_space<vmem>>, %arg6: memref<1x16xf32, #tpu.memory_space<vmem>>, %arg7: memref<16x256xf32, #tpu.memory_space<vmem>>, %arg8: memref<1x32xf32, #tpu.memory_space<vmem>>, %arg9: memref<32x64xf32, #tpu.memory_space<vmem>>, %arg10: memref<1x64xf32, #tpu.memory_space<vmem>>, %arg11: memref<64x128xf32, #tpu.memory_space<vmem>>, %arg12: memref<1x128xf32, #tpu.memory_space<vmem>>, %arg13: memref<2x128xf32, #tpu.memory_space<vmem>>, %arg14: memref<144x8xf32, #tpu.memory_space<vmem>>) attributes {dimension_semantics = [], scalar_prefetch = 0 : i64, scratch_operands = 1 : i64, tpu.core_type = #tpu.core_type<tc>} {
    %cst = arith.constant 0.000000e+00 : f32
    %0 = vector.broadcast %cst : f32 to vector<144x8xf32>
    %c0 = arith.constant 0 : index
    %c0_0 = arith.constant 0 : index
    %1 = vector.load %arg14[%c0, %c0_0] : memref<144x8xf32, #tpu.memory_space<vmem>>, vector<144x8xf32>
    tpu.vector_store %arg14[%c0, %c0_0], %0 {strides = array<i32>} : memref<144x8xf32, #tpu.memory_space<vmem>>, vector<144x8xf32>,
    %c0_1 = arith.constant 0 : index
    %c0_2 = arith.constant 0 : index
    %2 = vector.load %arg0[%c0_1, %c0_2] : memref<128x1xf32, #tpu.memory_space<vmem>>, vector<128x1xf32>
    %3 = vector.shape_cast %2 : vector<128x1xf32> to vector<128x1xf32>
    %4 = vector.broadcast %3 : vector<128x1xf32> to vector<128x8xf32>
    %c8 = arith.constant 8 : index
    %c0_3 = arith.constant 0 : index
    %5 = vector.load %arg14[%c8, %c0_3] : memref<144x8xf32, #tpu.memory_space<vmem>>, vector<128x8xf32>
    tpu.vector_store %arg14[%c8, %c0_3], %4 {strides = array<i32>} : memref<144x8xf32, #tpu.memory_space<vmem>>, vector<128x8xf32>,
    %c7 = arith.constant 7 : index
    %c0_4 = arith.constant 0 : index
    %6 = vector.load %arg14[%c7, %c0_4] : memref<144x8xf32, #tpu.memory_space<vmem>>, vector<128x8xf32>
    %c9 = arith.constant 9 : index
    %c0_5 = arith.constant 0 : index
    %7 = vector.load %arg14[%c9, %c0_5] : memref<144x8xf32, #tpu.memory_space<vmem>>, vector<128x8xf32>
    %8 = tpu.iota {dimensions = array<i32: 0>} : vector<128x8xi32>
    %c63_i32 = arith.constant 63 : i32
    %9 = vector.broadcast %c63_i32 : i32 to vector<128x8xi32>
    %10 = arith.andi %8, %9 : vector<128x8xi32>
    %c0_i32 = arith.constant 0 : i32
    %11 = vector.broadcast %c0_i32 : i32 to vector<128x8xi32>
    %12 = arith.cmpi eq, %10, %11 : vector<128x8xi32>
    %cst_6 = arith.constant 0.000000e+00 : f32
    %13 = vector.broadcast %cst_6 : f32 to vector<128x8xf32>
    %14 = arith.select %12, %13, %6 : vector<128x8xi1>, vector<128x8xf32>
    %c63_i32_7 = arith.constant 63 : i32
    %15 = vector.broadcast %c63_i32_7 : i32 to vector<128x8xi32>
    %16 = arith.cmpi eq, %10, %15 : vector<128x8xi32>
    %cst_8 = arith.constant 0.000000e+00 : f32
    %17 = vector.broadcast %cst_8 : f32 to vector<128x8xf32>
    %18 = arith.select %16, %17, %7 : vector<128x8xi1>, vector<128x8xf32>
    %c0_9 = arith.constant 0 : index
    %c0_10 = arith.constant 0 : index
    %c0_11 = arith.constant 0 : index
    %19 = vector.load %arg1[%c0_9, %c0_10, %c0_11] : memref<3x8x8xf32, #tpu.memory_space<vmem>>, vector<1x8x8xf32>
    %20 = vector.shape_cast %19 : vector<1x8x8xf32> to vector<8x8xf32>
    %cst_12 = arith.constant dense<0.000000e+00> : vector<128x8xf32>
    %21 = tpu.matmul %14, %20, %cst_12 {dimension_numbers = #tpu.dot_dimension_numbers<[1], [0], [0], [1], [0, 0, 1, 1], [], []>} : vector<128x8xf32>, vector<8x8xf32>, vector<128x8xf32> -> vector<128x8xf32>
    %c1 = arith.constant 1 : index
    %c0_13 = arith.constant 0 : index
    %c0_14 = arith.constant 0 : index
    %22 = vector.load %arg1[%c1, %c0_13, %c0_14] : memref<3x8x8xf32, #tpu.memory_space<vmem>>, vector<1x8x8xf32>
    %23 = vector.shape_cast %22 : vector<1x8x8xf32> to vector<8x8xf32>
    %cst_15 = arith.constant dense<0.000000e+00> : vector<128x8xf32>
    %24 = tpu.matmul %4, %23, %cst_15 {dimension_numbers = #tpu.dot_dimension_numbers<[1], [0], [0], [1], [0, 0, 1, 1], [], []>} : vector<128x8xf32>, vector<8x8xf32>, vector<128x8xf32> -> vector<128x8xf32>
    %25 = arith.addf %21, %24 : vector<128x8xf32>
    %c2 = arith.constant 2 : index
    %c0_16 = arith.constant 0 : index
    %c0_17 = arith.constant 0 : index
    %26 = vector.load %arg1[%c2, %c0_16, %c0_17] : memref<3x8x8xf32, #tpu.memory_space<vmem>>, vector<1x8x8xf32>
    %27 = vector.shape_cast %26 : vector<1x8x8xf32> to vector<8x8xf32>
    %cst_18 = arith.constant dense<0.000000e+00> : vector<128x8xf32>
    %28 = tpu.matmul %18, %27, %cst_18 {dimension_numbers = #tpu.dot_dimension_numbers<[1], [0], [0], [1], [0, 0, 1, 1], [], []>} : vector<128x8xf32>, vector<8x8xf32>, vector<128x8xf32> -> vector<128x8xf32>
    %29 = arith.addf %25, %28 : vector<128x8xf32>
    %c0_19 = arith.constant 0 : index
    %c0_20 = arith.constant 0 : index
    %30 = vector.load %arg2[%c0_19, %c0_20] : memref<1x8xf32, #tpu.memory_space<vmem>>, vector<1x8xf32>
    %31 = vector.broadcast %30 : vector<1x8xf32> to vector<128x8xf32>
    %32 = arith.addf %29, %31 : vector<128x8xf32>
    %cst_21 = arith.constant 0.000000e+00 : f32
    %33 = vector.broadcast %cst_21 : f32 to vector<128x8xf32>
    %34 = arith.maximumf %32, %33 : vector<128x8xf32>
    %35 = vector.shape_cast %34 : vector<128x8xf32> to vector<64x2x8xf32>
    %cst_22 = arith.constant dense<0xFF800000> : vector<64x8xf32>
    %36 = vector.multi_reduction <maximumf>, %35, %cst_22 [1] : vector<64x2x8xf32> to vector<64x8xf32>
    %c8_23 = arith.constant 8 : index
    %c0_24 = arith.constant 0 : index
    %37 = vector.load %arg14[%c8_23, %c0_24] : memref<144x8xf32, #tpu.memory_space<vmem>>, vector<64x8xf32>
    tpu.vector_store %arg14[%c8_23, %c0_24], %36 {strides = array<i32>} : memref<144x8xf32, #tpu.memory_space<vmem>>, vector<64x8xf32>,
    %c7_25 = arith.constant 7 : index
    %c0_26 = arith.constant 0 : index
    %38 = vector.load %arg14[%c7_25, %c0_26] : memref<144x8xf32, #tpu.memory_space<vmem>>, vector<64x8xf32>
    %c9_27 = arith.constant 9 : index
    %c0_28 = arith.constant 0 : index
    %39 = vector.load %arg14[%c9_27, %c0_28] : memref<144x8xf32, #tpu.memory_space<vmem>>, vector<64x8xf32>
    %40 = tpu.iota {dimensions = array<i32: 0>} : vector<64x8xi32>
    %c31_i32 = arith.constant 31 : i32
    %41 = vector.broadcast %c31_i32 : i32 to vector<64x8xi32>
    %42 = arith.andi %40, %41 : vector<64x8xi32>
    %c0_i32_29 = arith.constant 0 : i32
    %43 = vector.broadcast %c0_i32_29 : i32 to vector<64x8xi32>
    %44 = arith.cmpi eq, %42, %43 : vector<64x8xi32>
    %cst_30 = arith.constant 0.000000e+00 : f32
    %45 = vector.broadcast %cst_30 : f32 to vector<64x8xf32>
    %46 = arith.select %44, %45, %38 : vector<64x8xi1>, vector<64x8xf32>
    %c31_i32_31 = arith.constant 31 : i32
    %47 = vector.broadcast %c31_i32_31 : i32 to vector<64x8xi32>
    %48 = arith.cmpi eq, %42, %47 : vector<64x8xi32>
    %cst_32 = arith.constant 0.000000e+00 : f32
    %49 = vector.broadcast %cst_32 : f32 to vector<64x8xf32>
    %50 = arith.select %48, %49, %39 : vector<64x8xi1>, vector<64x8xf32>
    %c0_33 = arith.constant 0 : index
    %c0_34 = arith.constant 0 : index
    %c0_35 = arith.constant 0 : index
    %51 = vector.load %arg3[%c0_33, %c0_34, %c0_35] : memref<3x8x8xf32, #tpu.memory_space<vmem>>, vector<1x8x8xf32>
    %52 = vector.shape_cast %51 : vector<1x8x8xf32> to vector<8x8xf32>
    %cst_36 = arith.constant dense<0.000000e+00> : vector<64x8xf32>
    %53 = tpu.matmul %46, %52, %cst_36 {dimension_numbers = #tpu.dot_dimension_numbers<[1], [0], [0], [1], [0, 0, 1, 1], [], []>} : vector<64x8xf32>, vector<8x8xf32>, vector<64x8xf32> -> vector<64x8xf32>
    %c1_37 = arith.constant 1 : index
    %c0_38 = arith.constant 0 : index
    %c0_39 = arith.constant 0 : index
    %54 = vector.load %arg3[%c1_37, %c0_38, %c0_39] : memref<3x8x8xf32, #tpu.memory_space<vmem>>, vector<1x8x8xf32>
    %55 = vector.shape_cast %54 : vector<1x8x8xf32> to vector<8x8xf32>
    %cst_40 = arith.constant dense<0.000000e+00> : vector<64x8xf32>
    %56 = tpu.matmul %36, %55, %cst_40 {dimension_numbers = #tpu.dot_dimension_numbers<[1], [0], [0], [1], [0, 0, 1, 1], [], []>} : vector<64x8xf32>, vector<8x8xf32>, vector<64x8xf32> -> vector<64x8xf32>
    %57 = arith.addf %53, %56 : vector<64x8xf32>
    %c2_41 = arith.constant 2 : index
    %c0_42 = arith.constant 0 : index
    %c0_43 = arith.constant 0 : index
    %58 = vector.load %arg3[%c2_41, %c0_42, %c0_43] : memref<3x8x8xf32, #tpu.memory_space<vmem>>, vector<1x8x8xf32>
    %59 = vector.shape_cast %58 : vector<1x8x8xf32> to vector<8x8xf32>
    %cst_44 = arith.constant dense<0.000000e+00> : vector<64x8xf32>
    %60 = tpu.matmul %50, %59, %cst_44 {dimension_numbers = #tpu.dot_dimension_numbers<[1], [0], [0], [1], [0, 0, 1, 1], [], []>} : vector<64x8xf32>, vector<8x8xf32>, vector<64x8xf32> -> vector<64x8xf32>
    %61 = arith.addf %57, %60 : vector<64x8xf32>
    %c0_45 = arith.constant 0 : index
    %c0_46 = arith.constant 0 : index
    %62 = vector.load %arg4[%c0_45, %c0_46] : memref<1x8xf32, #tpu.memory_space<vmem>>, vector<1x8xf32>
    %63 = vector.broadcast %62 : vector<1x8xf32> to vector<64x8xf32>
    %64 = arith.addf %61, %63 : vector<64x8xf32>
    %cst_47 = arith.constant 0.000000e+00 : f32
    %65 = vector.broadcast %cst_47 : f32 to vector<64x8xf32>
    %66 = arith.maximumf %64, %65 : vector<64x8xf32>
    %67 = vector.shape_cast %66 : vector<64x8xf32> to vector<32x2x8xf32>
    %cst_48 = arith.constant dense<0xFF800000> : vector<32x8xf32>
    %68 = vector.multi_reduction <maximumf>, %67, %cst_48 [1] : vector<32x2x8xf32> to vector<32x8xf32>
    %c8_49 = arith.constant 8 : index
    %c0_50 = arith.constant 0 : index
    %69 = vector.load %arg14[%c8_49, %c0_50] : memref<144x8xf32, #tpu.memory_space<vmem>>, vector<32x8xf32>
    tpu.vector_store %arg14[%c8_49, %c0_50], %68 {strides = array<i32>} : memref<144x8xf32, #tpu.memory_space<vmem>>, vector<32x8xf32>,
    %c7_51 = arith.constant 7 : index
    %c0_52 = arith.constant 0 : index
    %70 = vector.load %arg14[%c7_51, %c0_52] : memref<144x8xf32, #tpu.memory_space<vmem>>, vector<32x8xf32>
    %c9_53 = arith.constant 9 : index
    %c0_54 = arith.constant 0 : index
    %71 = vector.load %arg14[%c9_53, %c0_54] : memref<144x8xf32, #tpu.memory_space<vmem>>, vector<32x8xf32>
    %72 = tpu.iota {dimensions = array<i32: 0>} : vector<32x8xi32>
    %c15_i32 = arith.constant 15 : i32
    %73 = vector.broadcast %c15_i32 : i32 to vector<32x8xi32>
    %74 = arith.andi %72, %73 : vector<32x8xi32>
    %c0_i32_55 = arith.constant 0 : i32
    %75 = vector.broadcast %c0_i32_55 : i32 to vector<32x8xi32>
    %76 = arith.cmpi eq, %74, %75 : vector<32x8xi32>
    %cst_56 = arith.constant 0.000000e+00 : f32
    %77 = vector.broadcast %cst_56 : f32 to vector<32x8xf32>
    %78 = arith.select %76, %77, %70 : vector<32x8xi1>, vector<32x8xf32>
    %c15_i32_57 = arith.constant 15 : i32
    %79 = vector.broadcast %c15_i32_57 : i32 to vector<32x8xi32>
    %80 = arith.cmpi eq, %74, %79 : vector<32x8xi32>
    %cst_58 = arith.constant 0.000000e+00 : f32
    %81 = vector.broadcast %cst_58 : f32 to vector<32x8xf32>
    %82 = arith.select %80, %81, %71 : vector<32x8xi1>, vector<32x8xf32>
    %c0_59 = arith.constant 0 : index
    %c0_60 = arith.constant 0 : index
    %c0_61 = arith.constant 0 : index
    %83 = vector.load %arg5[%c0_59, %c0_60, %c0_61] : memref<3x8x16xf32, #tpu.memory_space<vmem>>, vector<1x8x16xf32>
    %84 = vector.shape_cast %83 : vector<1x8x16xf32> to vector<8x16xf32>
    %cst_62 = arith.constant dense<0.000000e+00> : vector<32x16xf32>
    %85 = tpu.matmul %78, %84, %cst_62 {dimension_numbers = #tpu.dot_dimension_numbers<[1], [0], [0], [1], [0, 0, 1, 1], [], []>} : vector<32x8xf32>, vector<8x16xf32>, vector<32x16xf32> -> vector<32x16xf32>
    %c1_63 = arith.constant 1 : index
    %c0_64 = arith.constant 0 : index
    %c0_65 = arith.constant 0 : index
    %86 = vector.load %arg5[%c1_63, %c0_64, %c0_65] : memref<3x8x16xf32, #tpu.memory_space<vmem>>, vector<1x8x16xf32>
    %87 = vector.shape_cast %86 : vector<1x8x16xf32> to vector<8x16xf32>
    %cst_66 = arith.constant dense<0.000000e+00> : vector<32x16xf32>
    %88 = tpu.matmul %68, %87, %cst_66 {dimension_numbers = #tpu.dot_dimension_numbers<[1], [0], [0], [1], [0, 0, 1, 1], [], []>} : vector<32x8xf32>, vector<8x16xf32>, vector<32x16xf32> -> vector<32x16xf32>
    %89 = arith.addf %85, %88 : vector<32x16xf32>
    %c2_67 = arith.constant 2 : index
    %c0_68 = arith.constant 0 : index
    %c0_69 = arith.constant 0 : index
    %90 = vector.load %arg5[%c2_67, %c0_68, %c0_69] : memref<3x8x16xf32, #tpu.memory_space<vmem>>, vector<1x8x16xf32>
    %91 = vector.shape_cast %90 : vector<1x8x16xf32> to vector<8x16xf32>
    %cst_70 = arith.constant dense<0.000000e+00> : vector<32x16xf32>
    %92 = tpu.matmul %82, %91, %cst_70 {dimension_numbers = #tpu.dot_dimension_numbers<[1], [0], [0], [1], [0, 0, 1, 1], [], []>} : vector<32x8xf32>, vector<8x16xf32>, vector<32x16xf32> -> vector<32x16xf32>
    %93 = arith.addf %89, %92 : vector<32x16xf32>
    %c0_71 = arith.constant 0 : index
    %c0_72 = arith.constant 0 : index
    %94 = vector.load %arg6[%c0_71, %c0_72] : memref<1x16xf32, #tpu.memory_space<vmem>>, vector<1x16xf32>
    %95 = vector.broadcast %94 : vector<1x16xf32> to vector<32x16xf32>
    %96 = arith.addf %93, %95 : vector<32x16xf32>
    %cst_73 = arith.constant 0.000000e+00 : f32
    %97 = vector.broadcast %cst_73 : f32 to vector<32x16xf32>
    %98 = arith.maximumf %96, %97 : vector<32x16xf32>
    %99 = vector.shape_cast %98 : vector<32x16xf32> to vector<16x2x16xf32>
    %cst_74 = arith.constant dense<0xFF800000> : vector<16x16xf32>
    %100 = vector.multi_reduction <maximumf>, %99, %cst_74 [1] : vector<16x2x16xf32> to vector<16x16xf32>
    %c0_75 = arith.constant 0 : index
    %c0_76 = arith.constant 0 : index
    %101 = vector.load %arg7[%c0_75, %c0_76] : memref<16x256xf32, #tpu.memory_space<vmem>>, vector<16x256xf32>
    %cst_77 = arith.constant dense<0.000000e+00> : vector<16x256xf32>
    %102 = tpu.matmul %100, %101, %cst_77 {dimension_numbers = #tpu.dot_dimension_numbers<[1], [0], [0], [1], [0, 0, 1, 1], [], []>} : vector<16x16xf32>, vector<16x256xf32>, vector<16x256xf32> -> vector<16x256xf32>
    %103 = tpu.iota {dimensions = array<i32: 0>} : vector<16x256xi32>
    %104 = tpu.iota {dimensions = array<i32: 1>} : vector<16x256xi32>
    %c5_i32 = arith.constant 5 : i32
    %105 = vector.broadcast %c5_i32 : i32 to vector<16x256xi32>
    %106 = arith.shrsi %104, %105 : vector<16x256xi32>
    %c7_i32 = arith.constant 7 : i32
    %107 = vector.broadcast %c7_i32 : i32 to vector<16x256xi32>
    %108 = arith.andi %103, %107 : vector<16x256xi32>
    %109 = arith.cmpi eq, %106, %108 : vector<16x256xi32>
    %cst_78 = arith.constant 0.000000e+00 : f32
    %110 = vector.broadcast %cst_78 : f32 to vector<16x256xf32>
    %111 = arith.select %109, %102, %110 : vector<16x256xi1>, vector<16x256xf32>
    %112 = vector.extract_strided_slice %111 {offsets = [0, 0], sizes = [16, 32], strides = [1, 1]} : vector<16x256xf32> to vector<16x32xf32>
    %113 = vector.extract_strided_slice %111 {offsets = [0, 32], sizes = [16, 32], strides = [1, 1]} : vector<16x256xf32> to vector<16x32xf32>
    %114 = arith.addf %112, %113 : vector<16x32xf32>
    %115 = vector.extract_strided_slice %111 {offsets = [0, 64], sizes = [16, 32], strides = [1, 1]} : vector<16x256xf32> to vector<16x32xf32>
    %116 = arith.addf %114, %115 : vector<16x32xf32>
    %117 = vector.extract_strided_slice %111 {offsets = [0, 96], sizes = [16, 32], strides = [1, 1]} : vector<16x256xf32> to vector<16x32xf32>
    %118 = arith.addf %116, %117 : vector<16x32xf32>
    %119 = vector.extract_strided_slice %111 {offsets = [0, 128], sizes = [16, 32], strides = [1, 1]} : vector<16x256xf32> to vector<16x32xf32>
    %120 = arith.addf %118, %119 : vector<16x32xf32>
    %121 = vector.extract_strided_slice %111 {offsets = [0, 160], sizes = [16, 32], strides = [1, 1]} : vector<16x256xf32> to vector<16x32xf32>
    %122 = arith.addf %120, %121 : vector<16x32xf32>
    %123 = vector.extract_strided_slice %111 {offsets = [0, 192], sizes = [16, 32], strides = [1, 1]} : vector<16x256xf32> to vector<16x32xf32>
    %124 = arith.addf %122, %123 : vector<16x32xf32>
    %125 = vector.extract_strided_slice %111 {offsets = [0, 224], sizes = [16, 32], strides = [1, 1]} : vector<16x256xf32> to vector<16x32xf32>
    %126 = arith.addf %124, %125 : vector<16x32xf32>
    %127 = tpu.iota {dimensions = array<i32: 0>} : vector<2x16xi32>
    %128 = tpu.iota {dimensions = array<i32: 1>} : vector<2x16xi32>
    %c3_i32 = arith.constant 3 : i32
    %129 = vector.broadcast %c3_i32 : i32 to vector<2x16xi32>
    %130 = arith.shrsi %128, %129 : vector<2x16xi32>
    %131 = arith.cmpi eq, %130, %127 : vector<2x16xi32>
    %132 = arith.extui %131 : vector<2x16xi1> to vector<2x16xi32>
    %133 = arith.sitofp %132 : vector<2x16xi32> to vector<2x16xf32>
    %cst_79 = arith.constant dense<0.000000e+00> : vector<2x32xf32>
    %134 = tpu.matmul %133, %126, %cst_79 {dimension_numbers = #tpu.dot_dimension_numbers<[1], [0], [0], [1], [0, 0, 1, 1], [], []>} : vector<2x16xf32>, vector<16x32xf32>, vector<2x32xf32> -> vector<2x32xf32>
    %c0_80 = arith.constant 0 : index
    %c0_81 = arith.constant 0 : index
    %135 = vector.load %arg8[%c0_80, %c0_81] : memref<1x32xf32, #tpu.memory_space<vmem>>, vector<1x32xf32>
    %136 = vector.broadcast %135 : vector<1x32xf32> to vector<2x32xf32>
    %137 = arith.addf %134, %136 : vector<2x32xf32>
    %138 = arith.mulf %137, %137 : vector<2x32xf32>
    %cst_82 = arith.constant dense<0.000000e+00> : vector<2xf32>
    %139 = vector.multi_reduction <add>, %138, %cst_82 [1] : vector<2x32xf32> to vector<2xf32>
    %140 = vector.shape_cast %139 : vector<2xf32> to vector<2x1xf32>
    %cst_83 = arith.constant 1.000000e-24 : f32
    %141 = vector.broadcast %cst_83 : f32 to vector<2x1xf32>
    %142 = arith.maximumf %140, %141 : vector<2x1xf32>
    %143 = math.rsqrt %142 : vector<2x1xf32>
    %144 = vector.broadcast %143 : vector<2x1xf32> to vector<2x32xf32>
    %145 = arith.mulf %137, %144 : vector<2x32xf32>
    %c0_84 = arith.constant 0 : index
    %c0_85 = arith.constant 0 : index
    %146 = vector.load %arg9[%c0_84, %c0_85] : memref<32x64xf32, #tpu.memory_space<vmem>>, vector<32x64xf32>
    %cst_86 = arith.constant dense<0.000000e+00> : vector<2x64xf32>
    %147 = tpu.matmul %145, %146, %cst_86 {dimension_numbers = #tpu.dot_dimension_numbers<[1], [0], [0], [1], [0, 0, 1, 1], [], []>} : vector<2x32xf32>, vector<32x64xf32>, vector<2x64xf32> -> vector<2x64xf32>
    %c0_87 = arith.constant 0 : index
    %c0_88 = arith.constant 0 : index
    %148 = vector.load %arg10[%c0_87, %c0_88] : memref<1x64xf32, #tpu.memory_space<vmem>>, vector<1x64xf32>
    %149 = vector.broadcast %148 : vector<1x64xf32> to vector<2x64xf32>
    %150 = arith.addf %147, %149 : vector<2x64xf32>
    %cst_89 = arith.constant 0.000000e+00 : f32
    %151 = vector.broadcast %cst_89 : f32 to vector<2x64xf32>
    %152 = arith.maximumf %150, %151 : vector<2x64xf32>
    %c0_90 = arith.constant 0 : index
    %c0_91 = arith.constant 0 : index
    %153 = vector.load %arg11[%c0_90, %c0_91] : memref<64x128xf32, #tpu.memory_space<vmem>>, vector<64x128xf32>
    %cst_92 = arith.constant dense<0.000000e+00> : vector<2x128xf32>
    %154 = tpu.matmul %152, %153, %cst_92 {dimension_numbers = #tpu.dot_dimension_numbers<[1], [0], [0], [1], [0, 0, 1, 1], [], []>} : vector<2x64xf32>, vector<64x128xf32>, vector<2x128xf32> -> vector<2x128xf32>
    %c0_93 = arith.constant 0 : index
    %c0_94 = arith.constant 0 : index
    %155 = vector.load %arg12[%c0_93, %c0_94] : memref<1x128xf32, #tpu.memory_space<vmem>>, vector<1x128xf32>
    %156 = vector.broadcast %155 : vector<1x128xf32> to vector<2x128xf32>
    %157 = arith.addf %154, %156 : vector<2x128xf32>
    %c0_95 = arith.constant 0 : index
    %c0_96 = arith.constant 0 : index
    %158 = vector.load %arg13[%c0_95, %c0_96] : memref<2x128xf32, #tpu.memory_space<vmem>>, vector<2x128xf32>
    tpu.vector_store %arg13[%c0_95, %c0_96], %157 {strides = array<i32>} : memref<2x128xf32, #tpu.memory_space<vmem>>, vector<2x128xf32>,
    return
  }
}

</mosaic_0001>

<llo_original>
// kernel: class_cnn1_forward.1
$region0: #{class_cnn1_forward.1}
  #allocation0 [shape = 'u32[]', space=smem, size = 0x4, offset = 0x4, fixed_abs, tag = 'smem constant byte address 0x4 - core index']
  #allocation1 [shape = 'u32[144,128]{1,0:T(1,128)}', space=vmem, size = 0x12000, scoped, tag = 'internal scratch']
  #allocation2 [shape = 'f32[144,8]{1,0:T(8,128)}', space=vmem, size = 0x12000, scoped, tag = 'scratch operand']
  %s0 = inlined_call_operand.vmem [shape: f32[128,1], index: 0, kind: input, shape index: {}]
  %s1 = inlined_call_operand.vmem [shape: f32[3,8,8], index: 1, kind: input, shape index: {}]
  %s2 = inlined_call_operand.hbm [shape: f32[1,8], index: 2, kind: input, shape index: {}]
  %s3 = inlined_call_operand.hbm [shape: f32[3,8,8], index: 3, kind: input, shape index: {}]
  %s4 = inlined_call_operand.hbm [shape: f32[1,8], index: 4, kind: input, shape index: {}]
  %s5 = inlined_call_operand.hbm [shape: f32[3,8,16], index: 5, kind: input, shape index: {}]
  %s6 = inlined_call_operand.hbm [shape: f32[1,16], index: 6, kind: input, shape index: {}]
  %s7 = inlined_call_operand.vmem [shape: f32[16,256], index: 7, kind: input, shape index: {}]
  %s8 = inlined_call_operand.hbm [shape: f32[1,32], index: 8, kind: input, shape index: {}]
  %s9 = inlined_call_operand.vmem [shape: f32[32,64], index: 9, kind: input, shape index: {}]
  %s10 = inlined_call_operand.hbm [shape: f32[1,64], index: 10, kind: input, shape index: {}]
  %s11 = inlined_call_operand.vmem [shape: f32[64,128], index: 11, kind: input, shape index: {}]
  %s12 = inlined_call_operand.hbm [shape: f32[1,128], index: 12, kind: input, shape index: {}]
  %s13 = inlined_call_operand.hbm [shape: f32[2,128], index: 13, kind: output, shape index: {}]
  %s14 = sld [smem:[#allocation0]]
  $region94: #{class_cnn1_forward.1} parent=0
    _
  %s16 = ssub.s32 1, %s14
  %s17 = scalar_select 0, %s16, %s14
  $region1: #{class_cnn1_forward.1} parent=0
    #allocation3 [shape = 'u8[512]{0}', space=vmem, size = 0x400, scoped, tag = 'input window, operand 2, single buffered']
    #allocation4 [shape = 's32[1]{0}', space=sflag, size = 0x4, scoped, tag = 'scoped memory for class_cnn1_forward.1']
    #allocation5 [shape = 's32[1]{0}', space=sflag, size = 0x4, scoped, tag = 'scoped memory for class_cnn1_forward.1']
    #allocation6 [shape = 'u8[12288]{0}', space=vmem, size = 0x3000, scoped, tag = 'input window, operand 3, single buffered']
    #allocation7 [shape = 's32[1]{0}', space=sflag, size = 0x4, scoped, tag = 'scoped memory for class_cnn1_forward.1']
    #allocation8 [shape = 'u8[512]{0}', space=vmem, size = 0x400, scoped, tag = 'input window, operand 4, single buffered']
    #allocation9 [shape = 'u8[12288]{0}', space=vmem, size = 0x3000, scoped, tag = 'input window, operand 5, single buffered']
    #allocation10 [shape = 's32[1]{0}', space=sflag, size = 0x4, scoped, tag = 'scoped memory for class_cnn1_forward.1']
    #allocation11 [shape = 'u8[512]{0}', space=vmem, size = 0x400, scoped, tag = 'input window, operand 6, single buffered']
    #allocation12 [shape = 'u8[512]{0}', space=vmem, size = 0x400, scoped, tag = 'input window, operand 8, single buffered']
    #allocation13 [shape = 's32[1]{0}', space=sflag, size = 0x4, scoped, tag = 'scoped memory for class_cnn1_forward.1']
    #allocation14 [shape = 'u8[512]{0}', space=vmem, size = 0x400, scoped, tag = 'input window, operand 10, single buffered']
    #allocation15 [shape = 'u8[512]{0}', space=vmem, size = 0x400, scoped, tag = 'input window, operand 12, single buffered']
    #allocation16 [shape = 's32[1]{0}', space=sflag, size = 0x4, scoped, tag = 'scoped memory for class_cnn1_forward.1']
    #allocation17 [shape = 'u8[1024]{0}', space=vmem, size = 0x400, scoped, tag = 'output window, operand 0, single buffered']
    %18 = vsyncpa [#allocation4], 0
    %19 = vsyncpa [#allocation7], 0
    %20 = vsyncpa [#allocation10], 0
    %21 = vsyncpa [#allocation13], 0
    %22 = vsyncpa [#allocation16], 0
    %23 = vsyncpa [#allocation5], 0
    // Predicated region
    $region2: #{class_cnn1_forward.1} parent=1 // pred_check
      _
    $region3: #{class_cnn1_forward.1} parent=1 // pred_check_branch
      %25 = sbr.rel (0) target = $region5
    $region4: #{class_cnn1_forward.1} parent=1 // pred_region
      _
    $region5: #{class_cnn1_forward.1} parent=1 // pred_fallthru
      _
    // Predicated region
    $region6: #{class_cnn1_forward.1} parent=1 // pred_check
      _
    $region7: #{class_cnn1_forward.1} parent=1 // pred_check_branch
      %27 = sbr.rel (0) target = $region9
    $region8: #{class_cnn1_forward.1} parent=1 // pred_region
      _
    $region9: #{class_cnn1_forward.1} parent=1 // pred_fallthru
      _
    // Predicated region
    $region10: #{class_cnn1_forward.1} parent=1 // pred_check
      _
    $region11: #{class_cnn1_forward.1} parent=1 // pred_check_branch
      %29 = sbr.rel (0) target = $region13
    $region12: #{class_cnn1_forward.1} parent=1 // pred_region
      %s31 = ssub.s32 16, 16
      %32 = vsyncadd [#allocation4], %s31
      %s34 = sshll.u32 [#allocation3], 4
      %s35 = int_to_ptr.vmem [resolvable:$true] %s34
      %37 = dma.hbm_to_vmem [thread:$0]  %s2, 16, %s35, [#allocation4]
    $region13: #{class_cnn1_forward.1} parent=1 // pred_fallthru
      _
    // Predicated region
    $region14: #{class_cnn1_forward.1} parent=1 // pred_check
      _
    $region15: #{class_cnn1_forward.1} parent=1 // pred_check_branch
      %39 = sbr.rel (0) target = $region17
    $region16: #{class_cnn1_forward.1} parent=1 // pred_region
      %s41 = ssub.s32 384, 384
      %42 = vsyncadd [#allocation7], %s41
      %s43 = sshll.u32 [#allocation6], 4
      %s44 = int_to_ptr.vmem [resolvable:$true] %s43
      %49 = dma.hbm_to_vmem [thread:$0]  %s3, 384, %s44, [#allocation7], 128, 128, 8
    $region17: #{class_cnn1_forward.1} parent=1 // pred_fallthru
      _
    // Predicated region
    $region18: #{class_cnn1_forward.1} parent=1 // pred_check
      _
    $region19: #{class_cnn1_forward.1} parent=1 // pred_check_branch
      %51 = sbr.rel (0) target = $region21
    $region20: #{class_cnn1_forward.1} parent=1 // pred_region
      %s53 = ssub.s32 16, 16
      %54 = vsyncadd [#allocation7], %s53
      %s56 = sshll.u32 [#allocation8], 4
      %s57 = int_to_ptr.vmem [resolvable:$true] %s56
      %59 = dma.hbm_to_vmem [thread:$0]  %s4, 16, %s57, [#allocation7]
    $region21: #{class_cnn1_forward.1} parent=1 // pred_fallthru
      _
    // Predicated region
    $region22: #{class_cnn1_forward.1} parent=1 // pred_check
      _
    $region23: #{class_cnn1_forward.1} parent=1 // pred_check_branch
      %61 = sbr.rel (0) target = $region25
    $region24: #{class_cnn1_forward.1} parent=1 // pred_region
      %s63 = ssub.s32 384, 384
      %64 = vsyncadd [#allocation10], %s63
      %s65 = sshll.u32 [#allocation9], 4
      %s66 = int_to_ptr.vmem [resolvable:$true] %s65
      %71 = dma.hbm_to_vmem [thread:$0]  %s5, 384, %s66, [#allocation10], 128, 128, 8
    $region25: #{class_cnn1_forward.1} parent=1 // pred_fallthru
      _
    // Predicated region
    $region26: #{class_cnn1_forward.1} parent=1 // pred_check
      _
    $region27: #{class_cnn1_forward.1} parent=1 // pred_check_branch
      %73 = sbr.rel (0) target = $region29
    $region28: #{class_cnn1_forward.1} parent=1 // pred_region
      %s75 = ssub.s32 16, 16
      %76 = vsyncadd [#allocation10], %s75
      %s78 = sshll.u32 [#allocation11], 4
      %s79 = int_to_ptr.vmem [resolvable:$true] %s78
      %81 = dma.hbm_to_vmem [thread:$0]  %s6, 16, %s79, [#allocation10]
    $region29: #{class_cnn1_forward.1} parent=1 // pred_fallthru
      _
    // Predicated region
    $region30: #{class_cnn1_forward.1} parent=1 // pred_check
      _
    $region31: #{class_cnn1_forward.1} parent=1 // pred_check_branch
      %83 = sbr.rel (0) target = $region33
    $region32: #{class_cnn1_forward.1} parent=1 // pred_region
      _
    $region33: #{class_cnn1_forward.1} parent=1 // pred_fallthru
      _
    // Predicated region
    $region34: #{class_cnn1_forward.1} parent=1 // pred_check
      _
    $region35: #{class_cnn1_forward.1} parent=1 // pred_check_branch
      %85 = sbr.rel (0) target = $region37
    $region36: #{class_cnn1_forward.1} parent=1 // pred_region
      %s87 = ssub.s32 16, 16
      %88 = vsyncadd [#allocation13], %s87
      %s90 = sshll.u32 [#allocation12], 4
      %s91 = int_to_ptr.vmem [resolvable:$true] %s90
      %93 = dma.hbm_to_vmem [thread:$0]  %s8, 16, %s91, [#allocation13]
    $region37: #{class_cnn1_forward.1} parent=1 // pred_fallthru
      _
    // Predicated region
    $region38: #{class_cnn1_forward.1} parent=1 // pred_check
      _
    $region39: #{class_cnn1_forward.1} parent=1 // pred_check_branch
      %95 = sbr.rel (0) target = $region41
    $region40: #{class_cnn1_forward.1} parent=1 // pred_region
      _
    $region41: #{class_cnn1_forward.1} parent=1 // pred_fallthru
      _
    // Predicated region
    $region42: #{class_cnn1_forward.1} parent=1 // pred_check
      _
    $region43: #{class_cnn1_forward.1} parent=1 // pred_check_branch
      %97 = sbr.rel (0) target = $region45
    $region44: #{class_cnn1_forward.1} parent=1 // pred_region
      %s99 = ssub.s32 16, 16
      %100 = vsyncadd [#allocation13], %s99
      %s102 = sshll.u32 [#allocation14], 4
      %s103 = int_to_ptr.vmem [resolvable:$true] %s102
      %105 = dma.hbm_to_vmem [thread:$0]  %s10, 16, %s103, [#allocation13]
    $region45: #{class_cnn1_forward.1} parent=1 // pred_fallthru
      _
    // Predicated region
    $region46: #{class_cnn1_forward.1} parent=1 // pred_check
      _
    $region47: #{class_cnn1_forward.1} parent=1 // pred_check_branch
      %107 = sbr.rel (0) target = $region49
    $region48: #{class_cnn1_forward.1} parent=1 // pred_region
      _
    $region49: #{class_cnn1_forward.1} parent=1 // pred_fallthru
      _
    // Predicated region
    $region50: #{class_cnn1_forward.1} parent=1 // pred_check
      _
    $region51: #{class_cnn1_forward.1} parent=1 // pred_check_branch
      %109 = sbr.rel (0) target = $region53
    $region52: #{class_cnn1_forward.1} parent=1 // pred_region
      %s111 = ssub.s32 16, 16
      %112 = vsyncadd [#allocation16], %s111
      %s114 = sshll.u32 [#allocation15], 4
      %s115 = int_to_ptr.vmem [resolvable:$true] %s114
      %117 = dma.hbm_to_vmem [thread:$0]  %s12, 16, %s115, [#allocation16]
    $region53: #{class_cnn1_forward.1} parent=1 // pred_fallthru
      _
    // Predicated region
    $region54: #{class_cnn1_forward.1} parent=1 // pred_check
      _
    $region55: #{class_cnn1_forward.1} parent=1 // pred_check_branch
      %119 = sbr.rel (0) target = $region57
    $region56: #{class_cnn1_forward.1} parent=1 // pred_region
      %120 = dma.done [#allocation4], 16
    $region57: #{class_cnn1_forward.1} parent=1 // pred_fallthru
      _
    // Predicated region
    $region58: #{class_cnn1_forward.1} parent=1 // pred_check
      _
    $region59: #{class_cnn1_forward.1} parent=1 // pred_check_branch
      %122 = sbr.rel (0) target = $region61
    $region60: #{class_cnn1_forward.1} parent=1 // pred_region
      %123 = dma.done [#allocation7], 384
    $region61: #{class_cnn1_forward.1} parent=1 // pred_fallthru
      _
    // Predicated region
    $region62: #{class_cnn1_forward.1} parent=1 // pred_check
      _
    $region63: #{class_cnn1_forward.1} parent=1 // pred_check_branch
      %125 = sbr.rel (0) target = $region65
    $region64: #{class_cnn1_forward.1} parent=1 // pred_region
      %126 = dma.done [#allocation7], 16
    $region65: #{class_cnn1_forward.1} parent=1 // pred_fallthru
      _
    // Predicated region
    $region66: #{class_cnn1_forward.1} parent=1 // pred_check
      _
    $region67: #{class_cnn1_forward.1} parent=1 // pred_check_branch
      %128 = sbr.rel (0) target = $region69
    $region68: #{class_cnn1_forward.1} parent=1 // pred_region
      %129 = dma.done [#allocation10], 384
    $region69: #{class_cnn1_forward.1} parent=1 // pred_fallthru
      _
    // Predicated region
    $region70: #{class_cnn1_forward.1} parent=1 // pred_check
      _
    $region71: #{class_cnn1_forward.1} parent=1 // pred_check_branch
      %131 = sbr.rel (0) target = $region73
    $region72: #{class_cnn1_forward.1} parent=1 // pred_region
      %132 = dma.done [#allocation10], 16
    $region73: #{class_cnn1_forward.1} parent=1 // pred_fallthru
      _
    // Predicated region
    $region74: #{class_cnn1_forward.1} parent=1 // pred_check
      _
    $region75: #{class_cnn1_forward.1} parent=1 // pred_check_branch
      %134 = sbr.rel (0) target = $region77
    $region76: #{class_cnn1_forward.1} parent=1 // pred_region
      %135 = dma.done [#allocation13], 16
    $region77: #{class_cnn1_forward.1} parent=1 // pred_fallthru
      _
    // Predicated region
    $region78: #{class_cnn1_forward.1} parent=1 // pred_check
      _
    $region79: #{class_cnn1_forward.1} parent=1 // pred_check_branch
      %137 = sbr.rel (0) target = $region81
    $region80: #{class_cnn1_forward.1} parent=1 // pred_region
      %138 = dma.done [#allocation13], 16
    $region81: #{class_cnn1_forward.1} parent=1 // pred_fallthru
      _
    // Predicated region
    $region82: #{class_cnn1_forward.1} parent=1 // pred_check
      _
    $region83: #{class_cnn1_forward.1} parent=1 // pred_check_branch
      %140 = sbr.rel (0) target = $region85
    $region84: #{class_cnn1_forward.1} parent=1 // pred_region
      %141 = dma.done [#allocation16], 16
    $region85: #{class_cnn1_forward.1} parent=1 // pred_fallthru
      _
    %vm142 = vcmask 64512
    %143 = vst.msk [vmem:[#allocation2] sm:$0xff] %vm142, 0.0
    %144 = vst.msk [vmem:[#allocation2 + $0x8] sm:$0xff] %vm142, 0.0
    %145 = vst.msk [vmem:[#allocation2 + $0x10] sm:$0xff] %vm142, 0.0
    %146 = vst.msk [vmem:[#allocation2 + $0x18] sm:$0xff] %vm142, 0.0
    %147 = vst.msk [vmem:[#allocation2 + $0x20] sm:$0xff] %vm142, 0.0
    %148 = vst.msk [vmem:[#allocation2 + $0x28] sm:$0xff] %vm142, 0.0
    %149 = vst.msk [vmem:[#allocation2 + $0x30] sm:$0xff] %vm142, 0.0
    %150 = vst.msk [vmem:[#allocation2 + $0x38] sm:$0xff] %vm142, 0.0
    %151 = vst.msk [vmem:[#allocation2 + $0x40] sm:$0xff] %vm142, 0.0
    %152 = vst.msk [vmem:[#allocation2 + $0x48] sm:$0xff] %vm142, 0.0
    %153 = vst.msk [vmem:[#allocation2 + $0x50] sm:$0xff] %vm142, 0.0
    %154 = vst.msk [vmem:[#allocation2 + $0x58] sm:$0xff] %vm142, 0.0
    %155 = vst.msk [vmem:[#allocation2 + $0x60] sm:$0xff] %vm142, 0.0
    %156 = vst.msk [vmem:[#allocation2 + $0x68] sm:$0xff] %vm142, 0.0
    %157 = vst.msk [vmem:[#allocation2 + $0x70] sm:$0xff] %vm142, 0.0
    %158 = vst.msk [vmem:[#allocation2 + $0x78] sm:$0xff] %vm142, 0.0
    %159 = vst.msk [vmem:[#allocation2 + $0x80] sm:$0xff] %vm142, 0.0
    %160 = vst.msk [vmem:[#allocation2 + $0x88] sm:$0xff] %vm142, 0.0
    %v161 = vld [vmem:[%s0] sm:$0xff]
    %v162 = vld [vmem:[%s0 + $0x8] sm:$0xff]
    %v163 = vld [vmem:[%s0 + $0x10] sm:$0xff]
    %v164 = vld [vmem:[%s0 + $0x18] sm:$0xff]
    %v165 = vld [vmem:[%s0 + $0x20] sm:$0xff]
    %v166 = vld [vmem:[%s0 + $0x28] sm:$0xff]
    %v167 = vld [vmem:[%s0 + $0x30] sm:$0xff]
    %v168 = vld [vmem:[%s0 + $0x38] sm:$0xff]
    %v169 = vld [vmem:[%s0 + $0x40] sm:$0xff]
    %v170 = vld [vmem:[%s0 + $0x48] sm:$0xff]
    %v171 = vld [vmem:[%s0 + $0x50] sm:$0xff]
    %v172 = vld [vmem:[%s0 + $0x58] sm:$0xff]
    %v173 = vld [vmem:[%s0 + $0x60] sm:$0xff]
    %v174 = vld [vmem:[%s0 + $0x68] sm:$0xff]
    %v175 = vld [vmem:[%s0 + $0x70] sm:$0xff]
    %v176 = vld [vmem:[%s0 + $0x78] sm:$0xff]
    %178 = vset.pattern.permute.xlu0 0
    %179 = vperm.xlu0 %178, %v161
    %v180 = vpop.permute.xlu0 %179
    %183 = vset.pattern.permute.xlu0 0
    %184 = vperm.xlu0 %183, %v162
    %v185 = vpop.permute.xlu0 %184
    %188 = vset.pattern.permute.xlu0 0
    %189 = vperm.xlu0 %188, %v163
    %v190 = vpop.permute.xlu0 %189
    %193 = vset.pattern.permute.xlu0 0
    %194 = vperm.xlu0 %193, %v164
    %v195 = vpop.permute.xlu0 %194
    %198 = vset.pattern.permute.xlu0 0
    %199 = vperm.xlu0 %198, %v165
    %v200 = vpop.permute.xlu0 %199
    %203 = vset.pattern.permute.xlu0 0
    %204 = vperm.xlu0 %203, %v166
    %v205 = vpop.permute.xlu0 %204
    %208 = vset.pattern.permute.xlu0 0
    %209 = vperm.xlu0 %208, %v167
    %v210 = vpop.permute.xlu0 %209
    %213 = vset.pattern.permute.xlu0 0
    %214 = vperm.xlu0 %213, %v168
    %v215 = vpop.permute.xlu0 %214
    %218 = vset.pattern.permute.xlu0 0
    %219 = vperm.xlu0 %218, %v169
    %v220 = vpop.permute.xlu0 %219
    %223 = vset.pattern.permute.xlu0 0
    %224 = vperm.xlu0 %223, %v170
    %v225 = vpop.permute.xlu0 %224
    %228 = vset.pattern.permute.xlu0 0
    %229 = vperm.xlu0 %228, %v171
    %v230 = vpop.permute.xlu0 %229
    %233 = vset.pattern.permute.xlu0 0
    %234 = vperm.xlu0 %233, %v172
    %v235 = vpop.permute.xlu0 %234
    %238 = vset.pattern.permute.xlu0 0
    %239 = vperm.xlu0 %238, %v173
    %v240 = vpop.permute.xlu0 %239
    %243 = vset.pattern.permute.xlu0 0
    %244 = vperm.xlu0 %243, %v174
    %v245 = vpop.permute.xlu0 %244
    %248 = vset.pattern.permute.xlu0 0
    %249 = vperm.xlu0 %248, %v175
    %v250 = vpop.permute.xlu0 %249
    %253 = vset.pattern.permute.xlu0 0
    %254 = vperm.xlu0 %253, %v176
    %v255 = vpop.permute.xlu0 %254
    %257 = vst.msk [vmem:[#allocation2 + $0x8] sm:$0xff] %vm142, %v180
    %258 = vst.msk [vmem:[#allocation2 + $0x10] sm:$0xff] %vm142, %v185
    %259 = vst.msk [vmem:[#allocation2 + $0x18] sm:$0xff] %vm142, %v190
    %260 = vst.msk [vmem:[#allocation2 + $0x20] sm:$0xff] %vm142, %v195
    %261 = vst.msk [vmem:[#allocation2 + $0x28] sm:$0xff] %vm142, %v200
    %262 = vst.msk [vmem:[#allocation2 + $0x30] sm:$0xff] %vm142, %v205
    %263 = vst.msk [vmem:[#allocation2 + $0x38] sm:$0xff] %vm142, %v210
    %264 = vst.msk [vmem:[#allocation2 + $0x40] sm:$0xff] %vm142, %v215
    %265 = vst.msk [vmem:[#allocation2 + $0x48] sm:$0xff] %vm142, %v220
    %266 = vst.msk [vmem:[#allocation2 + $0x50] sm:$0xff] %vm142, %v225
    %267 = vst.msk [vmem:[#allocation2 + $0x58] sm:$0xff] %vm142, %v230
    %268 = vst.msk [vmem:[#allocation2 + $0x60] sm:$0xff] %vm142, %v235
    %269 = vst.msk [vmem:[#allocation2 + $0x68] sm:$0xff] %vm142, %v240
    %270 = vst.msk [vmem:[#allocation2 + $0x70] sm:$0xff] %vm142, %v245
    %271 = vst.msk [vmem:[#allocation2 + $0x78] sm:$0xff] %vm142, %v250
    %272 = vst.msk [vmem:[#allocation2 + $0x80] sm:$0xff] %vm142, %v255
    %v273 = vld [vmem:[#allocation2 + $0x7] sm:$0xff]
    %v274 = vld [vmem:[#allocation2 + $0xf] sm:$0xff]
    %v275 = vld [vmem:[#allocation2 + $0x17] sm:$0xff]
    %v276 = vld [vmem:[#allocation2 + $0x1f] sm:$0xff]
    %v277 = vld [vmem:[#allocation2 + $0x27] sm:$0xff]
    %v278 = vld [vmem:[#allocation2 + $0x2f] sm:$0xff]
    %v279 = vld [vmem:[#allocation2 + $0x37] sm:$0xff]
    %v280 = vld [vmem:[#allocation2 + $0x3f] sm:$0xff]
    %v281 = vld [vmem:[#allocation2 + $0x47] sm:$0xff]
    %v282 = vld [vmem:[#allocation2 + $0x4f] sm:$0xff]
    %v283 = vld [vmem:[#allocation2 + $0x57] sm:$0xff]
    %v284 = vld [vmem:[#allocation2 + $0x5f] sm:$0xff]
    %v285 = vld [vmem:[#allocation2 + $0x67] sm:$0xff]
    %v286 = vld [vmem:[#allocation2 + $0x6f] sm:$0xff]
    %v287 = vld [vmem:[#allocation2 + $0x77] sm:$0xff]
    %v288 = vld [vmem:[#allocation2 + $0x7f] sm:$0xff]
    %v289 = vld [vmem:[#allocation2 + $0x9] sm:$0xff]
    %v290 = vld [vmem:[#allocation2 + $0x11] sm:$0xff]
    %v291 = vld [vmem:[#allocation2 + $0x19] sm:$0xff]
    %v292 = vld [vmem:[#allocation2 + $0x21] sm:$0xff]
    %v293 = vld [vmem:[#allocation2 + $0x29] sm:$0xff]
    %v294 = vld [vmem:[#allocation2 + $0x31] sm:$0xff]
    %v295 = vld [vmem:[#allocation2 + $0x39] sm:$0xff]
    %v296 = vld [vmem:[#allocation2 + $0x41] sm:$0xff]
    %v297 = vld [vmem:[#allocation2 + $0x49] sm:$0xff]
    %v298 = vld [vmem:[#allocation2 + $0x51] sm:$0xff]
    %v299 = vld [vmem:[#allocation2 + $0x59] sm:$0xff]
    %v300 = vld [vmem:[#allocation2 + $0x61] sm:$0xff]
    %v301 = vld [vmem:[#allocation2 + $0x69] sm:$0xff]
    %v302 = vld [vmem:[#allocation2 + $0x71] sm:$0xff]
    %v303 = vld [vmem:[#allocation2 + $0x79] sm:$0xff]
    %v304 = vld [vmem:[#allocation2 + $0x81] sm:$0xff]
    %v305 = vlaneseq
    %v306 = vshrl.u32 %v305, 7
    %v307 = vadd.s32 %v306, 8
    %v308 = vadd.s32 %v306, 16
    %v309 = vadd.s32 %v306, 24
    %v310 = vadd.s32 %v306, 32
    %v311 = vadd.s32 %v306, 40
    %v312 = vadd.s32 %v306, 48
    %v313 = vadd.s32 %v306, 56
    %v314 = vadd.s32 %v306, 64
    %v315 = vadd.s32 %v306, 72
    %v316 = vadd.s32 %v306, 80
    %v317 = vadd.s32 %v306, 88
    %v318 = vadd.s32 %v306, 96
    %v319 = vadd.s32 %v306, 104
    %v320 = vadd.s32 %v306, 112
    %v321 = vadd.s32 %v306, 120
    %v322 = vand.u32 %v306, 63
    %v323 = vand.u32 %v307, 63
    %v324 = vand.u32 %v308, 63
    %v325 = vand.u32 %v309, 63
    %v326 = vand.u32 %v310, 63
    %v327 = vand.u32 %v311, 63
    %v328 = vand.u32 %v312, 63
    %v329 = vand.u32 %v313, 63
    %v330 = vand.u32 %v314, 63
    %v331 = vand.u32 %v315, 63
    %v332 = vand.u32 %v316, 63
    %v333 = vand.u32 %v317, 63
    %v334 = vand.u32 %v318, 63
    %v335 = vand.u32 %v319, 63
    %v336 = vand.u32 %v320, 63
    %v337 = vand.u32 %v321, 63
    %vm338 = vcmp.eq.s32.totalorder %v322, 0
    %vm339 = vcmp.eq.s32.totalorder %v323, 0
    %vm340 = vcmp.eq.s32.totalorder %v324, 0
    %vm341 = vcmp.eq.s32.totalorder %v325, 0
    %vm342 = vcmp.eq.s32.totalorder %v326, 0
    %vm343 = vcmp.eq.s32.totalorder %v327, 0
    %vm344 = vcmp.eq.s32.totalorder %v328, 0
    %vm345 = vcmp.eq.s32.totalorder %v329, 0
    %vm346 = vcmp.eq.s32.totalorder %v330, 0
    %vm347 = vcmp.eq.s32.totalorder %v331, 0
    %vm348 = vcmp.eq.s32.totalorder %v332, 0
    %vm349 = vcmp.eq.s32.totalorder %v333, 0
    %vm350 = vcmp.eq.s32.totalorder %v334, 0
    %vm351 = vcmp.eq.s32.totalorder %v335, 0
    %vm352 = vcmp.eq.s32.totalorder %v336, 0
    %vm353 = vcmp.eq.s32.totalorder %v337, 0
    %v354 = vsel %vm338, 0.0, %v273
    %v355 = vsel %vm339, 0.0, %v274
    %v356 = vsel %vm340, 0.0, %v275
    %v357 = vsel %vm341, 0.0, %v276
    %v358 = vsel %vm342, 0.0, %v277
    %v359 = vsel %vm343, 0.0, %v278
    %v360 = vsel %vm344, 0.0, %v279
    %v361 = vsel %vm345, 0.0, %v280
    %v362 = vsel %vm346, 0.0, %v281
    %v363 = vsel %vm347, 0.0, %v282
    %v364 = vsel %vm348, 0.0, %v283
    %v365 = vsel %vm349, 0.0, %v284
    %v366 = vsel %vm350, 0.0, %v285
    %v367 = vsel %vm351, 0.0, %v286
    %v368 = vsel %vm352, 0.0, %v287
    %v369 = vsel %vm353, 0.0, %v288
    %vm370 = vcmp.eq.s32.totalorder %v322, 63
    %vm371 = vcmp.eq.s32.totalorder %v323, 63
    %vm372 = vcmp.eq.s32.totalorder %v324, 63
    %vm373 = vcmp.eq.s32.totalorder %v325, 63
    %vm374 = vcmp.eq.s32.totalorder %v326, 63
    %vm375 = vcmp.eq.s32.totalorder %v327, 63
    %vm376 = vcmp.eq.s32.totalorder %v328, 63
    %vm377 = vcmp.eq.s32.totalorder %v329, 63
    %vm378 = vcmp.eq.s32.totalorder %v330, 63
    %vm379 = vcmp.eq.s32.totalorder %v331, 63
    %vm380 = vcmp.eq.s32.totalorder %v332, 63
    %vm381 = vcmp.eq.s32.totalorder %v333, 63
    %vm382 = vcmp.eq.s32.totalorder %v334, 63
    %vm383 = vcmp.eq.s32.totalorder %v335, 63
    %vm384 = vcmp.eq.s32.totalorder %v336, 63
    %vm385 = vcmp.eq.s32.totalorder %v337, 63
    %v386 = vsel %vm370, 0.0, %v289
    %v387 = vsel %vm371, 0.0, %v290
    %v388 = vsel %vm372, 0.0, %v291
    %v389 = vsel %vm373, 0.0, %v292
    %v390 = vsel %vm374, 0.0, %v293
    %v391 = vsel %vm375, 0.0, %v294
    %v392 = vsel %vm376, 0.0, %v295
    %v393 = vsel %vm377, 0.0, %v296
    %v394 = vsel %vm378, 0.0, %v297
    %v395 = vsel %vm379, 0.0, %v298
    %v396 = vsel %vm380, 0.0, %v299
    %v397 = vsel %vm381, 0.0, %v300
    %v398 = vsel %vm382, 0.0, %v301
    %v399 = vsel %vm383, 0.0, %v302
    %v400 = vsel %vm384, 0.0, %v303
    %v401 = vsel %vm385, 0.0, %v304
    %v402 = vld [vmem:[%s1] sm:$0xff]
    %s403 = scalar_lea.vmem %s1, 8
    %v404 = vld [vmem:[%s403] sm:$0xff]
    %v405 = vsel %vm142, %v180, 0
    %v407 = vsel %vm142, %v185, 0
    %v409 = vsel %vm142, %v190, 0
    %v411 = vsel %vm142, %v195, 0
    %v413 = vsel %vm142, %v200, 0
    %v415 = vsel %vm142, %v205, 0
    %v417 = vsel %vm142, %v210, 0
    %v419 = vsel %vm142, %v215, 0
    %v421 = vsel %vm142, %v220, 0
    %v423 = vsel %vm142, %v225, 0
    %v425 = vsel %vm142, %v230, 0
    %v427 = vsel %vm142, %v235, 0
    %v429 = vsel %vm142, %v240, 0
    %v431 = vsel %vm142, %v245, 0
    %v433 = vsel %vm142, %v250, 0
    %v435 = vsel %vm142, %v255, 0
    %437 = vmatprep.subr.mxu0 0.0
    %438 = vmatpush1.msra.mxu0 %v404
    %439 = vmatprep.subr.mxu0 0.0
    %440 = vmatpush1.msra.mxu0 0.0
    %441 = vmatprep.subr.mxu0 0.0
    %442 = vmatpush1.msra.mxu0 0.0
    %443 = vmatprep.subr.mxu0 0.0
    %444 = vmatpush1.msra.mxu0 0.0
    %445 = vmatprep.subr.mxu0 0.0
    %446 = vmatpush1.msra.mxu0 0.0
    %447 = vmatprep.subr.mxu0 0.0
    %448 = vmatpush1.msra.mxu0 0.0
    %449 = vmatprep.subr.mxu0 0.0
    %450 = vmatpush1.msra.mxu0 0.0
    %451 = vmatprep.subr.mxu0 0.0
    %452 = vmatpush1.msra.mxu0 0.0
    %453 = vmatprep.subr.mxu0 0.0
    %454 = vmatpush1.msra.mxu0 0.0
    %455 = vmatprep.subr.mxu0 0.0
    %456 = vmatpush1.msra.mxu0 0.0
    %457 = vmatprep.subr.mxu0 0.0
    %458 = vmatpush1.msra.mxu0 0.0
    %459 = vmatprep.subr.mxu0 0.0
    %460 = vmatpush1.msra.mxu0 0.0
    %461 = vmatprep.subr.mxu0 0.0
    %462 = vmatpush1.msra.mxu0 0.0
    %463 = vmatprep.subr.mxu0 0.0
    %464 = vmatpush1.msra.mxu0 0.0
    %465 = vmatprep.subr.mxu0 0.0
    %466 = vmatpush1.msra.mxu0 0.0
    %467 = vmatprep.subr.mxu0 0.0
    %468 = vmatpush1.msra.mxu0 0.0
    %469 = vmatprep.subr.mxu0 0.0
    %470 = vmatpush1.msra.mxu0 0.0
    %471 = vmatprep.subr.mxu0 0.0
    %472 = vmatpush1.msra.mxu0 0.0
    %473 = vmatprep.subr.mxu0 0.0
    %474 = vmatpush1.msra.mxu0 0.0
    %475 = vmatprep.subr.mxu0 0.0
    %476 = vmatpush1.msra.mxu0 0.0
    %477 = vmatprep.subr.mxu0 0.0
    %478 = vmatpush1.msra.mxu0 0.0
    %479 = vmatprep.subr.mxu0 0.0
    %480 = vmatpush1.msra.mxu0 0.0
    %481 = vmatprep.subr.mxu0 0.0
    %482 = vmatpush1.msra.mxu0 0.0
    %483 = vmatprep.subr.mxu0 0.0
    %484 = vmatpush1.msra.mxu0 0.0
    %485 = vmatprep.subr.mxu0 0.0
    %486 = vmatpush1.msra.mxu0 0.0
    %487 = vmatprep.subr.mxu0 0.0
    %488 = vmatpush1.msra.mxu0 0.0
    %489 = vmatprep.subr.mxu0 0.0
    %490 = vmatpush1.msra.mxu0 0.0
    %491 = vmatprep.subr.mxu0 0.0
    %492 = vmatpush1.msra.mxu0 0.0
    %493 = vmatprep.subr.mxu0 0.0
    %494 = vmatpush1.msra.mxu0 0.0
    %495 = vmatprep.subr.mxu0 0.0
    %496 = vmatpush1.msra.mxu0 0.0
    %497 = vmatprep.subr.mxu0 0.0
    %498 = vmatpush1.msra.mxu0 0.0
    %499 = vmatprep.subr.mxu0 0.0
    %500 = vmatpush1.msra.mxu0 0.0
    %501 = vmatprep.mubr.f32.mxu0 0.0
    %502 = vmatmul.mubr.f32.gmra.mrb[0].mxu0 %v405
    %v503 = vpop.f32.mrb[0].mxu0
    %v504 = vadd.f32 0.0, %v503
    %v505 = vpop.f32.mrb[0].mxu0
    %506 = vmatprep.mubr.f32.mxu0 0.0
    %507 = vmatmul.mubr.f32.gmra.mrb[0].mxu0 %v407
    %v508 = vpop.f32.mrb[0].mxu0
    %v509 = vadd.f32 0.0, %v508
    %v510 = vpop.f32.mrb[0].mxu0
    %511 = vmatprep.mubr.f32.mxu0 0.0
    %512 = vmatmul.mubr.f32.gmra.mrb[0].mxu0 %v409
    %v513 = vpop.f32.mrb[0].mxu0
    %v514 = vadd.f32 0.0, %v513
    %v515 = vpop.f32.mrb[0].mxu0
    %516 = vmatprep.mubr.f32.mxu0 0.0
    %517 = vmatmul.mubr.f32.gmra.mrb[0].mxu0 %v411
    %v518 = vpop.f32.mrb[0].mxu0
    %v519 = vadd.f32 0.0, %v518
    %v520 = vpop.f32.mrb[0].mxu0
    %521 = vmatprep.mubr.f32.mxu0 0.0
    %522 = vmatmul.mubr.f32.gmra.mrb[0].mxu0 %v413
    %v523 = vpop.f32.mrb[0].mxu0
    %v524 = vadd.f32 0.0, %v523
    %v525 = vpop.f32.mrb[0].mxu0
    %526 = vmatprep.mubr.f32.mxu0 0.0
    %527 = vmatmul.mubr.f32.gmra.mrb[0].mxu0 %v415
    %v528 = vpop.f32.mrb[0].mxu0
    %v529 = vadd.f32 0.0, %v528
    %v530 = vpop.f32.mrb[0].mxu0
    %531 = vmatprep.mubr.f32.mxu0 0.0
    %532 = vmatmul.mubr.f32.gmra.mrb[0].mxu0 %v417
    %v533 = vpop.f32.mrb[0].mxu0
    %v534 = vadd.f32 0.0, %v533
    %v535 = vpop.f32.mrb[0].mxu0
    %536 = vmatprep.mubr.f32.mxu0 0.0
    %537 = vmatmul.mubr.f32.gmra.mrb[0].mxu0 %v419
    %v538 = vpop.f32.mrb[0].mxu0
    %v539 = vadd.f32 0.0, %v538
    %v540 = vpop.f32.mrb[0].mxu0
    %541 = vmatprep.mubr.f32.mxu0 0.0
    %542 = vmatmul.mubr.f32.gmra.mrb[0].mxu0 %v421
    %v543 = vpop.f32.mrb[0].mxu0
    %v544 = vadd.f32 0.0, %v543
    %v545 = vpop.f32.mrb[0].mxu0
    %546 = vmatprep.mubr.f32.mxu0 0.0
    %547 = vmatmul.mubr.f32.gmra.mrb[0].mxu0 %v423
    %v548 = vpop.f32.mrb[0].mxu0
    %v549 = vadd.f32 0.0, %v548
    %v550 = vpop.f32.mrb[0].mxu0
    %551 = vmatprep.mubr.f32.mxu0 0.0
    %552 = vmatmul.mubr.f32.gmra.mrb[0].mxu0 %v425
    %v553 = vpop.f32.mrb[0].mxu0
    %v554 = vadd.f32 0.0, %v553
    %v555 = vpop.f32.mrb[0].mxu0
    %556 = vmatprep.mubr.f32.mxu0 0.0
    %557 = vmatmul.mubr.f32.gmra.mrb[0].mxu0 %v427
    %v558 = vpop.f32.mrb[0].mxu0
    %v559 = vadd.f32 0.0, %v558
    %v560 = vpop.f32.mrb[0].mxu0
    %561 = vmatprep.mubr.f32.mxu0 0.0
    %562 = vmatmul.mubr.f32.gmra.mrb[0].mxu0 %v429
    %v563 = vpop.f32.mrb[0].mxu0
    %v564 = vadd.f32 0.0, %v563
    %v565 = vpop.f32.mrb[0].mxu0
    %566 = vmatprep.mubr.f32.mxu0 0.0
    %567 = vmatmul.mubr.f32.gmra.mrb[0].mxu0 %v431
    %v568 = vpop.f32.mrb[0].mxu0
    %v569 = vadd.f32 0.0, %v568
    %v570 = vpop.f32.mrb[0].mxu0
    %571 = vmatprep.mubr.f32.mxu0 0.0
    %572 = vmatmul.mubr.f32.gmra.mrb[0].mxu0 %v433
    %v573 = vpop.f32.mrb[0].mxu0
    %v574 = vadd.f32 0.0, %v573
    %v575 = vpop.f32.mrb[0].mxu0
    %576 = vmatprep.mubr.f32.mxu0 0.0
    %577 = vmatmul.mubr.f32.gmra.mrb[0].mxu0 %v435
    %v578 = vpop.f32.mrb[0].mxu0
    %v579 = vadd.f32 0.0, %v578
    %v580 = vpop.f32.mrb[0].mxu0
    %581 = vdwg.mxu0
    %v583 = vsel %vm142, %v354, 0
    %v586 = vsel %vm142, %v355, 0
    %v589 = vsel %vm142, %v356, 0
    %v592 = vsel %vm142, %v357, 0
    %v595 = vsel %vm142, %v358, 0
    %v598 = vsel %vm142, %v359, 0
    %v601 = vsel %vm142, %v360, 0
    %v604 = vsel %vm142, %v361, 0
    %v607 = vsel %vm142, %v362, 0
    %v610 = vsel %vm142, %v363, 0
    %v613 = vsel %vm142, %v364, 0
    %v616 = vsel %vm142, %v365, 0
    %v619 = vsel %vm142, %v366, 0
    %v622 = vsel %vm142, %v367, 0
    %v625 = vsel %vm142, %v368, 0
    %v628 = vsel %vm142, %v369, 0
    %630 = vmatprep.subr.mxu0 0.0
    %631 = vmatpush1.msra.mxu0 %v402
    %632 = vmatprep.subr.mxu0 0.0
    %633 = vmatpush1.msra.mxu0 0.0
    %634 = vmatprep.subr.mxu0 0.0
    %635 = vmatpush1.msra.mxu0 0.0
    %636 = vmatprep.subr.mxu0 0.0
    %637 = vmatpush1.msra.mxu0 0.0
    %638 = vmatprep.subr.mxu0 0.0
    %639 = vmatpush1.msra.mxu0 0.0
    %640 = vmatprep.subr.mxu0 0.0
    %641 = vmatpush1.msra.mxu0 0.0
    %642 = vmatprep.subr.mxu0 0.0
    %643 = vmatpush1.msra.mxu0 0.0
    %644 = vmatprep.subr.mxu0 0.0
    %645 = vmatpush1.msra.mxu0 0.0
    %646 = vmatprep.subr.mxu0 0.0
    %647 = vmatpush1.msra.mxu0 0.0
    %648 = vmatprep.subr.mxu0 0.0
    %649 = vmatpush1.msra.mxu0 0.0
    %650 = vmatprep.subr.mxu0 0.0
    %651 = vmatpush1.msra.mxu0 0.0
    %652 = vmatprep.subr.mxu0 0.0
    %653 = vmatpush1.msra.mxu0 0.0
    %654 = vmatprep.subr.mxu0 0.0
    %655 = vmatpush1.msra.mxu0 0.0
    %656 = vmatprep.subr.mxu0 0.0
    %657 = vmatpush1.msra.mxu0 0.0
    %658 = vmatprep.subr.mxu0 0.0
    %659 = vmatpush1.msra.mxu0 0.0
    %660 = vmatprep.subr.mxu0 0.0
    %661 = vmatpush1.msra.mxu0 0.0
    %662 = vmatprep.subr.mxu0 0.0
    %663 = vmatpush1.msra.mxu0 0.0
    %664 = vmatprep.subr.mxu0 0.0
    %665 = vmatpush1.msra.mxu0 0.0
    %666 = vmatprep.subr.mxu0 0.0
    %667 = vmatpush1.msra.mxu0 0.0
    %668 = vmatprep.subr.mxu0 0.0
    %669 = vmatpush1.msra.mxu0 0.0
    %670 = vmatprep.subr.mxu0 0.0
    %671 = vmatpush1.msra.mxu0 0.0
    %672 = vmatprep.subr.mxu0 0.0
    %673 = vmatpush1.msra.mxu0 0.0
    %674 = vmatprep.subr.mxu0 0.0
    %675 = vmatpush1.msra.mxu0 0.0
    %676 = vmatprep.subr.mxu0 0.0
    %677 = vmatpush1.msra.mxu0 0.0
    %678 = vmatprep.subr.mxu0 0.0
    %679 = vmatpush1.msra.mxu0 0.0
    %680 = vmatprep.subr.mxu0 0.0
    %681 = vmatpush1.msra.mxu0 0.0
    %682 = vmatprep.subr.mxu0 0.0
    %683 = vmatpush1.msra.mxu0 0.0
    %684 = vmatprep.subr.mxu0 0.0
    %685 = vmatpush1.msra.mxu0 0.0
    %686 = vmatprep.subr.mxu0 0.0
    %687 = vmatpush1.msra.mxu0 0.0
    %688 = vmatprep.subr.mxu0 0.0
    %689 = vmatpush1.msra.mxu0 0.0
    %690 = vmatprep.subr.mxu0 0.0
    %691 = vmatpush1.msra.mxu0 0.0
    %692 = vmatprep.subr.mxu0 0.0
    %693 = vmatpush1.msra.mxu0 0.0
    %694 = vmatprep.mubr.f32.mxu0 0.0
    %695 = vmatmul.mubr.f32.gmra.mrb[0].mxu0 %v583
    %v696 = vpop.f32.mrb[0].mxu0
    %v697 = vadd.f32 %v504, %v696
    %v698 = vpop.f32.mrb[0].mxu0
    %699 = vmatprep.mubr.f32.mxu0 0.0
    %700 = vmatmul.mubr.f32.gmra.mrb[0].mxu0 %v586
    %v701 = vpop.f32.mrb[0].mxu0
    %v702 = vadd.f32 %v509, %v701
    %v703 = vpop.f32.mrb[0].mxu0
    %704 = vmatprep.mubr.f32.mxu0 0.0
    %705 = vmatmul.mubr.f32.gmra.mrb[0].mxu0 %v589
    %v706 = vpop.f32.mrb[0].mxu0
    %v707 = vadd.f32 %v514, %v706
    %v708 = vpop.f32.mrb[0].mxu0
    %709 = vmatprep.mubr.f32.mxu0 0.0
    %710 = vmatmul.mubr.f32.gmra.mrb[0].mxu0 %v592
    %v711 = vpop.f32.mrb[0].mxu0
    %v712 = vadd.f32 %v519, %v711
    %v713 = vpop.f32.mrb[0].mxu0
    %714 = vmatprep.mubr.f32.mxu0 0.0
    %715 = vmatmul.mubr.f32.gmra.mrb[0].mxu0 %v595
    %v716 = vpop.f32.mrb[0].mxu0
    %v717 = vadd.f32 %v524, %v716
    %v718 = vpop.f32.mrb[0].mxu0
    %719 = vmatprep.mubr.f32.mxu0 0.0
    %720 = vmatmul.mubr.f32.gmra.mrb[0].mxu0 %v598
    %v721 = vpop.f32.mrb[0].mxu0
    %v722 = vadd.f32 %v529, %v721
    %v723 = vpop.f32.mrb[0].mxu0
    %724 = vmatprep.mubr.f32.mxu0 0.0
    %725 = vmatmul.mubr.f32.gmra.mrb[0].mxu0 %v601
    %v726 = vpop.f32.mrb[0].mxu0
    %v727 = vadd.f32 %v534, %v726
    %v728 = vpop.f32.mrb[0].mxu0
    %729 = vmatprep.mubr.f32.mxu0 0.0
    %730 = vmatmul.mubr.f32.gmra.mrb[0].mxu0 %v604
    %v731 = vpop.f32.mrb[0].mxu0
    %v732 = vadd.f32 %v539, %v731
    %v733 = vpop.f32.mrb[0].mxu0
    %734 = vmatprep.mubr.f32.mxu0 0.0
    %735 = vmatmul.mubr.f32.gmra.mrb[0].mxu0 %v607
    %v736 = vpop.f32.mrb[0].mxu0
    %v737 = vadd.f32 %v544, %v736
    %v738 = vpop.f32.mrb[0].mxu0
    %739 = vmatprep.mubr.f32.mxu0 0.0
    %740 = vmatmul.mubr.f32.gmra.mrb[0].mxu0 %v610
    %v741 = vpop.f32.mrb[0].mxu0
    %v742 = vadd.f32 %v549, %v741
    %v743 = vpop.f32.mrb[0].mxu0
    %744 = vmatprep.mubr.f32.mxu0 0.0
    %745 = vmatmul.mubr.f32.gmra.mrb[0].mxu0 %v613
    %v746 = vpop.f32.mrb[0].mxu0
    %v747 = vadd.f32 %v554, %v746
    %v748 = vpop.f32.mrb[0].mxu0
    %749 = vmatprep.mubr.f32.mxu0 0.0
    %750 = vmatmul.mubr.f32.gmra.mrb[0].mxu0 %v616
    %v751 = vpop.f32.mrb[0].mxu0
    %v752 = vadd.f32 %v559, %v751
    %v753 = vpop.f32.mrb[0].mxu0
    %754 = vmatprep.mubr.f32.mxu0 0.0
    %755 = vmatmul.mubr.f32.gmra.mrb[0].mxu0 %v619
    %v756 = vpop.f32.mrb[0].mxu0
    %v757 = vadd.f32 %v564, %v756
    %v758 = vpop.f32.mrb[0].mxu0
    %759 = vmatprep.mubr.f32.mxu0 0.0
    %760 = vmatmul.mubr.f32.gmra.mrb[0].mxu0 %v622
    %v761 = vpop.f32.mrb[0].mxu0
    %v762 = vadd.f32 %v569, %v761
    %v763 = vpop.f32.mrb[0].mxu0
    %764 = vmatprep.mubr.f32.mxu0 0.0
    %765 = vmatmul.mubr.f32.gmra.mrb[0].mxu0 %v625
    %v766 = vpop.f32.mrb[0].mxu0
    %v767 = vadd.f32 %v574, %v766
    %v768 = vpop.f32.mrb[0].mxu0
    %769 = vmatprep.mubr.f32.mxu0 0.0
    %770 = vmatmul.mubr.f32.gmra.mrb[0].mxu0 %v628
    %v771 = vpop.f32.mrb[0].mxu0
    %v772 = vadd.f32 %v579, %v771
    %v773 = vpop.f32.mrb[0].mxu0
    %774 = vdwg.mxu0
    %s775 = scalar_lea.vmem %s1, 16
    %v776 = vld [vmem:[%s775] sm:$0xff]
    %v778 = vsel %vm142, %v386, 0
    %v781 = vsel %vm142, %v387, 0
    %v784 = vsel %vm142, %v388, 0
    %v787 = vsel %vm142, %v389, 0
    %v790 = vsel %vm142, %v390, 0
    %v793 = vsel %vm142, %v391, 0
    %v796 = vsel %vm142, %v392, 0
    %v799 = vsel %vm142, %v393, 0
    %v802 = vsel %vm142, %v394, 0
    %v805 = vsel %vm142, %v395, 0
    %v808 = vsel %vm142, %v396, 0
    %v811 = vsel %vm142, %v397, 0
    %v814 = vsel %vm142, %v398, 0
    %v817 = vsel %vm142, %v399, 0
    %v820 = vsel %vm142, %v400, 0
    %v823 = vsel %vm142, %v401, 0
    %825 = vmatprep.subr.mxu0 0.0
    %826 = vmatpush1.msra.mxu0 %v776
    %827 = vmatprep.subr.mxu0 0.0
    %828 = vmatpush1.msra.mxu0 0.0
    %829 = vmatprep.subr.mxu0 0.0
    %830 = vmatpush1.msra.mxu0 0.0
    %831 = vmatprep.subr.mxu0 0.0
    %832 = vmatpush1.msra.mxu0 0.0
    %833 = vmatprep.subr.mxu0 0.0
    %834 = vmatpush1.msra.mxu0 0.0
    %835 = vmatprep.subr.mxu0 0.0
    %836 = vmatpush1.msra.mxu0 0.0
    %837 = vmatprep.subr.mxu0 0.0
    %838 = vmatpush1.msra.mxu0 0.0
    %839 = vmatprep.subr.mxu0 0.0
    %840 = vmatpush1.msra.mxu0 0.0
    %841 = vmatprep.subr.mxu0 0.0
    %842 = vmatpush1.msra.mxu0 0.0
    %843 = vmatprep.subr.mxu0 0.0
    %844 = vmatpush1.msra.mxu0 0.0
    %845 = vmatprep.subr.mxu0 0.0
    %846 = vmatpush1.msra.mxu0 0.0
    %847 = vmatprep.subr.mxu0 0.0
    %848 = vmatpush1.msra.mxu0 0.0
    %849 = vmatprep.subr.mxu0 0.0
    %850 = vmatpush1.msra.mxu0 0.0
    %851 = vmatprep.subr.mxu0 0.0
    %852 = vmatpush1.msra.mxu0 0.0
    %853 = vmatprep.subr.mxu0 0.0
    %854 = vmatpush1.msra.mxu0 0.0
    %855 = vmatprep.subr.mxu0 0.0
    %856 = vmatpush1.msra.mxu0 0.0
    %857 = vmatprep.subr.mxu0 0.0
    %858 = vmatpush1.msra.mxu0 0.0
    %859 = vmatprep.subr.mxu0 0.0
    %860 = vmatpush1.msra.mxu0 0.0
    %861 = vmatprep.subr.mxu0 0.0
    %862 = vmatpush1.msra.mxu0 0.0
    %863 = vmatprep.subr.mxu0 0.0
    %864 = vmatpush1.msra.mxu0 0.0
    %865 = vmatprep.subr.mxu0 0.0
    %866 = vmatpush1.msra.mxu0 0.0
    %867 = vmatprep.subr.mxu0 0.0
    %868 = vmatpush1.msra.mxu0 0.0
    %869 = vmatprep.subr.mxu0 0.0
    %870 = vmatpush1.msra.mxu0 0.0
    %871 = vmatprep.subr.mxu0 0.0
    %872 = vmatpush1.msra.mxu0 0.0
    %873 = vmatprep.subr.mxu0 0.0
    %874 = vmatpush1.msra.mxu0 0.0
    %875 = vmatprep.subr.mxu0 0.0
    %876 = vmatpush1.msra.mxu0 0.0
    %877 = vmatprep.subr.mxu0 0.0
    %878 = vmatpush1.msra.mxu0 0.0
    %879 = vmatprep.subr.mxu0 0.0
    %880 = vmatpush1.msra.mxu0 0.0
    %881 = vmatprep.subr.mxu0 0.0
    %882 = vmatpush1.msra.mxu0 0.0
    %883 = vmatprep.subr.mxu0 0.0
    %884 = vmatpush1.msra.mxu0 0.0
    %885 = vmatprep.subr.mxu0 0.0
    %886 = vmatpush1.msra.mxu0 0.0
    %887 = vmatprep.subr.mxu0 0.0
    %888 = vmatpush1.msra.mxu0 0.0
    %889 = vmatprep.mubr.f32.mxu0 0.0
    %890 = vmatmul.mubr.f32.gmra.mrb[0].mxu0 %v778
    %v891 = vpop.f32.mrb[0].mxu0
    %v892 = vadd.f32 0.0, %v891
    %v893 = vpop.f32.mrb[0].mxu0
    %894 = vmatprep.mubr.f32.mxu0 0.0
    %895 = vmatmul.mubr.f32.gmra.mrb[0].mxu0 %v781
    %v896 = vpop.f32.mrb[0].mxu0
    %v897 = vadd.f32 0.0, %v896
    %v898 = vpop.f32.mrb[0].mxu0
    %899 = vmatprep.mubr.f32.mxu0 0.0
    %900 = vmatmul.mubr.f32.gmra.mrb[0].mxu0 %v784
    %v901 = vpop.f32.mrb[0].mxu0
    %v902 = vadd.f32 0.0, %v901
    %v903 = vpop.f32.mrb[0].mxu0
    %904 = vmatprep.mubr.f32.mxu0 0.0
    %905 = vmatmul.mubr.f32.gmra.mrb[0].mxu0 %v787
    %v906 = vpop.f32.mrb[0].mxu0
    %v907 = vadd.f32 0.0, %v906
    %v908 = vpop.f32.mrb[0].mxu0
    %909 = vmatprep.mubr.f32.mxu0 0.0
    %910 = vmatmul.mubr.f32.gmra.mrb[0].mxu0 %v790
    %v911 = vpop.f32.mrb[0].mxu0
    %v912 = vadd.f32 0.0, %v911
    %v913 = vpop.f32.mrb[0].mxu0
    %914 = vmatprep.mubr.f32.mxu0 0.0
    %915 = vmatmul.mubr.f32.gmra.mrb[0].mxu0 %v793
    %v916 = vpop.f32.mrb[0].mxu0
    %v917 = vadd.f32 0.0, %v916
    %v918 = vpop.f32.mrb[0].mxu0
    %919 = vmatprep.mubr.f32.mxu0 0.0
    %920 = vmatmul.mubr.f32.gmra.mrb[0].mxu0 %v796
    %v921 = vpop.f32.mrb[0].mxu0
    %v922 = vadd.f32 0.0, %v921
    %v923 = vpop.f32.mrb[0].mxu0
    %924 = vmatprep.mubr.f32.mxu0 0.0
    %925 = vmatmul.mubr.f32.gmra.mrb[0].mxu0 %v799
    %v926 = vpop.f32.mrb[0].mxu0
    %v927 = vadd.f32 0.0, %v926
    %v928 = vpop.f32.mrb[0].mxu0
    %929 = vmatprep.mubr.f32.mxu0 0.0
    %930 = vmatmul.mubr.f32.gmra.mrb[0].mxu0 %v802
    %v931 = vpop.f32.mrb[0].mxu0
    %v932 = vadd.f32 0.0, %v931
    %v933 = vpop.f32.mrb[0].mxu0
    %934 = vmatprep.mubr.f32.mxu0 0.0
    %935 = vmatmul.mubr.f32.gmra.mrb[0].mxu0 %v805
    %v936 = vpop.f32.mrb[0].mxu0
    %v937 = vadd.f32 0.0, %v936
    %v938 = vpop.f32.mrb[0].mxu0
    %939 = vmatprep.mubr.f32.mxu0 0.0
    %940 = vmatmul.mubr.f32.gmra.mrb[0].mxu0 %v808
    %v941 = vpop.f32.mrb[0].mxu0
    %v942 = vadd.f32 0.0, %v941
    %v943 = vpop.f32.mrb[0].mxu0
    %944 = vmatprep.mubr.f32.mxu0 0.0
    %945 = vmatmul.mubr.f32.gmra.mrb[0].mxu0 %v811
    %v946 = vpop.f32.mrb[0].mxu0
    %v947 = vadd.f32 0.0, %v946
    %v948 = vpop.f32.mrb[0].mxu0
    %949 = vmatprep.mubr.f32.mxu0 0.0
    %950 = vmatmul.mubr.f32.gmra.mrb[0].mxu0 %v814
    %v951 = vpop.f32.mrb[0].mxu0
    %v952 = vadd.f32 0.0, %v951
    %v953 = vpop.f32.mrb[0].mxu0
    %954 = vmatprep.mubr.f32.mxu0 0.0
    %955 = vmatmul.mubr.f32.gmra.mrb[0].mxu0 %v817
    %v956 = vpop.f32.mrb[0].mxu0
    %v957 = vadd.f32 0.0, %v956
    %v958 = vpop.f32.mrb[0].mxu0
    %959 = vmatprep.mubr.f32.mxu0 0.0
    %960 = vmatmul.mubr.f32.gmra.mrb[0].mxu0 %v820
    %v961 = vpop.f32.mrb[0].mxu0
    %v962 = vadd.f32 0.0, %v961
    %v963 = vpop.f32.mrb[0].mxu0
    %964 = vmatprep.mubr.f32.mxu0 0.0
    %965 = vmatmul.mubr.f32.gmra.mrb[0].mxu0 %v823
    %v966 = vpop.f32.mrb[0].mxu0
    %v967 = vadd.f32 0.0, %v966
    %v968 = vpop.f32.mrb[0].mxu0
    %969 = vdwg.mxu0
    %v970 = vadd.f32 %v697, %v892
    %v971 = vadd.f32 %v702, %v897
    %v972 = vadd.f32 %v707, %v902
    %v973 = vadd.f32 %v712, %v907
    %v974 = vadd.f32 %v717, %v912
    %v975 = vadd.f32 %v722, %v917
    %v976 = vadd.f32 %v727, %v922
    %v977 = vadd.f32 %v732, %v927
    %v978 = vadd.f32 %v737, %v932
    %v979 = vadd.f32 %v742, %v937
    %v980 = vadd.f32 %v747, %v942
    %v981 = vadd.f32 %v752, %v947
    %v982 = vadd.f32 %v757, %v952
    %v983 = vadd.f32 %v762, %v957
    %v984 = vadd.f32 %v767, %v962
    %v985 = vadd.f32 %v772, %v967
    %v986 = vld [vmem:[#allocation3] sm:$0x1]
    %v988 = vlaneseq
    %v989 = vshrl.u32 %v988, 7
    %v990 = vsub.s32 0, %v989
    %v991 = vrot.slane %v986, %v990
    %v993 = vadd.f32 %v970, %v991
    %v994 = vadd.f32 %v971, %v991
    %v995 = vadd.f32 %v972, %v991
    %v996 = vadd.f32 %v973, %v991
    %v997 = vadd.f32 %v974, %v991
    %v998 = vadd.f32 %v975, %v991
    %v999 = vadd.f32 %v976, %v991
    %v1000 = vadd.f32 %v977, %v991
    %v1001 = vadd.f32 %v978, %v991
    %v1002 = vadd.f32 %v979, %v991
    %v1003 = vadd.f32 %v980, %v991
    %v1004 = vadd.f32 %v981, %v991
    %v1005 = vadd.f32 %v982, %v991
    %v1006 = vadd.f32 %v983, %v991
    %v1007 = vadd.f32 %v984, %v991
    %v1008 = vadd.f32 %v985, %v991
    %v1009 = vmax.f32 %v993, 0.0
    %v1010 = vmax.f32 %v994, 0.0
    %v1011 = vmax.f32 %v995, 0.0
    %v1012 = vmax.f32 %v996, 0.0
    %v1013 = vmax.f32 %v997, 0.0
    %v1014 = vmax.f32 %v998, 0.0
    %v1015 = vmax.f32 %v999, 0.0
    %v1016 = vmax.f32 %v1000, 0.0
    %v1017 = vmax.f32 %v1001, 0.0
    %v1018 = vmax.f32 %v1002, 0.0
    %v1019 = vmax.f32 %v1003, 0.0
    %v1020 = vmax.f32 %v1004, 0.0
    %v1021 = vmax.f32 %v1005, 0.0
    %v1022 = vmax.f32 %v1006, 0.0
    %v1023 = vmax.f32 %v1007, 0.0
    %v1024 = vmax.f32 %v1008, 0.0
    %v1041 = vcombine.high %v1009, %v1009
    %v1043 = vunpack.c.l.s4 1983009808
    %v1044 = vunpack.c.0.s8 %v1043
    %v1045 = vlaneseq
    %v1046 = vshrl.u32 %v1045, 7
    %v1047 = vsub.s32 %v1044, %v1046
    %v1048 = vrot.slane %v1009, %v1047
    %v1050 = vunpack.c.l.s4 1983009808
    %v1051 = vunpack.c.0.s8 %v1050
    %v1052 = vlaneseq
    %v1053 = vshrl.u32 %v1052, 7
    %v1054 = vsub.s32 %v1051, %v1053
    %v1055 = vrot.slane %v1041, %v1054
    %v1056 = vcombine.high %v1048, %v1048
    %v1057 = vcombine.high %v1055, %v1055
    %v1058 = vcombine.high %v1010, %v1010
    %v1060 = vunpack.c.l.s4 1983009808
    %v1061 = vunpack.c.0.s8 %v1060
    %v1062 = vlaneseq
    %v1063 = vshrl.u32 %v1062, 7
    %v1064 = vsub.s32 %v1061, %v1063
    %v1065 = vrot.slane %v1010, %v1064
    %v1067 = vunpack.c.l.s4 1983009808
    %v1068 = vunpack.c.0.s8 %v1067
    %v1069 = vlaneseq
    %v1070 = vshrl.u32 %v1069, 7
    %v1071 = vsub.s32 %v1068, %v1070
    %v1072 = vrot.slane %v1058, %v1071
    %v1073 = vcombine.high %v1065, %v1065
    %v1074 = vcombine.high %v1072, %v1072
    %v1075 = vcombine.high %v1011, %v1011
    %v1077 = vunpack.c.l.s4 1983009808
    %v1078 = vunpack.c.0.s8 %v1077
    %v1079 = vlaneseq
    %v1080 = vshrl.u32 %v1079, 7
    %v1081 = vsub.s32 %v1078, %v1080
    %v1082 = vrot.slane %v1011, %v1081
    %v1084 = vunpack.c.l.s4 1983009808
    %v1085 = vunpack.c.0.s8 %v1084
    %v1086 = vlaneseq
    %v1087 = vshrl.u32 %v1086, 7
    %v1088 = vsub.s32 %v1085, %v1087
    %v1089 = vrot.slane %v1075, %v1088
    %v1090 = vcombine.high %v1082, %v1082
    %v1091 = vcombine.high %v1089, %v1089
    %v1092 = vcombine.high %v1012, %v1012
    %v1094 = vunpack.c.l.s4 1983009808
    %v1095 = vunpack.c.0.s8 %v1094
    %v1096 = vlaneseq
    %v1097 = vshrl.u32 %v1096, 7
    %v1098 = vsub.s32 %v1095, %v1097
    %v1099 = vrot.slane %v1012, %v1098
    %v1101 = vunpack.c.l.s4 1983009808
    %v1102 = vunpack.c.0.s8 %v1101
    %v1103 = vlaneseq
    %v1104 = vshrl.u32 %v1103, 7
    %v1105 = vsub.s32 %v1102, %v1104
    %v1106 = vrot.slane %v1092, %v1105
    %v1107 = vcombine.high %v1099, %v1099
    %v1108 = vcombine.high %v1106, %v1106
    %v1109 = vcombine.high %v1013, %v1013
    %v1111 = vunpack.c.l.s4 1983009808
    %v1112 = vunpack.c.0.s8 %v1111
    %v1113 = vlaneseq
    %v1114 = vshrl.u32 %v1113, 7
    %v1115 = vsub.s32 %v1112, %v1114
    %v1116 = vrot.slane %v1013, %v1115
    %v1118 = vunpack.c.l.s4 1983009808
    %v1119 = vunpack.c.0.s8 %v1118
    %v1120 = vlaneseq
    %v1121 = vshrl.u32 %v1120, 7
    %v1122 = vsub.s32 %v1119, %v1121
    %v1123 = vrot.slane %v1109, %v1122
    %v1124 = vcombine.high %v1116, %v1116
    %v1125 = vcombine.high %v1123, %v1123
    %v1126 = vcombine.high %v1014, %v1014
    %v1128 = vunpack.c.l.s4 1983009808
    %v1129 = vunpack.c.0.s8 %v1128
    %v1130 = vlaneseq
    %v1131 = vshrl.u32 %v1130, 7
    %v1132 = vsub.s32 %v1129, %v1131
    %v1133 = vrot.slane %v1014, %v1132
    %v1135 = vunpack.c.l.s4 1983009808
    %v1136 = vunpack.c.0.s8 %v1135
    %v1137 = vlaneseq
    %v1138 = vshrl.u32 %v1137, 7
    %v1139 = vsub.s32 %v1136, %v1138
    %v1140 = vrot.slane %v1126, %v1139
    %v1141 = vcombine.high %v1133, %v1133
    %v1142 = vcombine.high %v1140, %v1140
    %v1143 = vcombine.high %v1015, %v1015
    %v1145 = vunpack.c.l.s4 1983009808
    %v1146 = vunpack.c.0.s8 %v1145
    %v1147 = vlaneseq
    %v1148 = vshrl.u32 %v1147, 7
    %v1149 = vsub.s32 %v1146, %v1148
    %v1150 = vrot.slane %v1015, %v1149
    %v1152 = vunpack.c.l.s4 1983009808
    %v1153 = vunpack.c.0.s8 %v1152
    %v1154 = vlaneseq
    %v1155 = vshrl.u32 %v1154, 7
    %v1156 = vsub.s32 %v1153, %v1155
    %v1157 = vrot.slane %v1143, %v1156
    %v1158 = vcombine.high %v1150, %v1150
    %v1159 = vcombine.high %v1157, %v1157
    %v1160 = vcombine.high %v1016, %v1016
    %v1162 = vunpack.c.l.s4 1983009808
    %v1163 = vunpack.c.0.s8 %v1162
    %v1164 = vlaneseq
    %v1165 = vshrl.u32 %v1164, 7
    %v1166 = vsub.s32 %v1163, %v1165
    %v1167 = vrot.slane %v1016, %v1166
    %v1169 = vunpack.c.l.s4 1983009808
    %v1170 = vunpack.c.0.s8 %v1169
    %v1171 = vlaneseq
    %v1172 = vshrl.u32 %v1171, 7
    %v1173 = vsub.s32 %v1170, %v1172
    %v1174 = vrot.slane %v1160, %v1173
    %v1175 = vcombine.high %v1167, %v1167
    %v1176 = vcombine.high %v1174, %v1174
    %v1177 = vcombine.high %v1017, %v1017
    %v1179 = vunpack.c.l.s4 1983009808
    %v1180 = vunpack.c.0.s8 %v1179
    %v1181 = vlaneseq
    %v1182 = vshrl.u32 %v1181, 7
    %v1183 = vsub.s32 %v1180, %v1182
    %v1184 = vrot.slane %v1017, %v1183
    %v1186 = vunpack.c.l.s4 1983009808
    %v1187 = vunpack.c.0.s8 %v1186
    %v1188 = vlaneseq
    %v1189 = vshrl.u32 %v1188, 7
    %v1190 = vsub.s32 %v1187, %v1189
    %v1191 = vrot.slane %v1177, %v1190
    %v1192 = vcombine.high %v1184, %v1184
    %v1193 = vcombine.high %v1191, %v1191
    %v1194 = vcombine.high %v1018, %v1018
    %v1196 = vunpack.c.l.s4 1983009808
    %v1197 = vunpack.c.0.s8 %v1196
    %v1198 = vlaneseq
    %v1199 = vshrl.u32 %v1198, 7
    %v1200 = vsub.s32 %v1197, %v1199
    %v1201 = vrot.slane %v1018, %v1200
    %v1203 = vunpack.c.l.s4 1983009808
    %v1204 = vunpack.c.0.s8 %v1203
    %v1205 = vlaneseq
    %v1206 = vshrl.u32 %v1205, 7
    %v1207 = vsub.s32 %v1204, %v1206
    %v1208 = vrot.slane %v1194, %v1207
    %v1209 = vcombine.high %v1201, %v1201
    %v1210 = vcombine.high %v1208, %v1208
    %v1211 = vcombine.high %v1019, %v1019
    %v1213 = vunpack.c.l.s4 1983009808
    %v1214 = vunpack.c.0.s8 %v1213
    %v1215 = vlaneseq
    %v1216 = vshrl.u32 %v1215, 7
    %v1217 = vsub.s32 %v1214, %v1216
    %v1218 = vrot.slane %v1019, %v1217
    %v1220 = vunpack.c.l.s4 1983009808
    %v1221 = vunpack.c.0.s8 %v1220
    %v1222 = vlaneseq
    %v1223 = vshrl.u32 %v1222, 7
    %v1224 = vsub.s32 %v1221, %v1223
    %v1225 = vrot.slane %v1211, %v1224
    %v1226 = vcombine.high %v1218, %v1218
    %v1227 = vcombine.high %v1225, %v1225
    %v1228 = vcombine.high %v1020, %v1020
    %v1230 = vunpack.c.l.s4 1983009808
    %v1231 = vunpack.c.0.s8 %v1230
    %v1232 = vlaneseq
    %v1233 = vshrl.u32 %v1232, 7
    %v1234 = vsub.s32 %v1231, %v1233
    %v1235 = vrot.slane %v1020, %v1234
    %v1237 = vunpack.c.l.s4 1983009808
    %v1238 = vunpack.c.0.s8 %v1237
    %v1239 = vlaneseq
    %v1240 = vshrl.u32 %v1239, 7
    %v1241 = vsub.s32 %v1238, %v1240
    %v1242 = vrot.slane %v1228, %v1241
    %v1243 = vcombine.high %v1235, %v1235
    %v1244 = vcombine.high %v1242, %v1242
    %v1245 = vcombine.high %v1021, %v1021
    %v1247 = vunpack.c.l.s4 1983009808
    %v1248 = vunpack.c.0.s8 %v1247
    %v1249 = vlaneseq
    %v1250 = vshrl.u32 %v1249, 7
    %v1251 = vsub.s32 %v1248, %v1250
    %v1252 = vrot.slane %v1021, %v1251
    %v1254 = vunpack.c.l.s4 1983009808
    %v1255 = vunpack.c.0.s8 %v1254
    %v1256 = vlaneseq
    %v1257 = vshrl.u32 %v1256, 7
    %v1258 = vsub.s32 %v1255, %v1257
    %v1259 = vrot.slane %v1245, %v1258
    %v1260 = vcombine.high %v1252, %v1252
    %v1261 = vcombine.high %v1259, %v1259
    %v1262 = vcombine.high %v1022, %v1022
    %v1264 = vunpack.c.l.s4 1983009808
    %v1265 = vunpack.c.0.s8 %v1264
    %v1266 = vlaneseq
    %v1267 = vshrl.u32 %v1266, 7
    %v1268 = vsub.s32 %v1265, %v1267
    %v1269 = vrot.slane %v1022, %v1268
    %v1271 = vunpack.c.l.s4 1983009808
    %v1272 = vunpack.c.0.s8 %v1271
    %v1273 = vlaneseq
    %v1274 = vshrl.u32 %v1273, 7
    %v1275 = vsub.s32 %v1272, %v1274
    %v1276 = vrot.slane %v1262, %v1275
    %v1277 = vcombine.high %v1269, %v1269
    %v1278 = vcombine.high %v1276, %v1276
    %v1279 = vcombine.high %v1023, %v1023
    %v1281 = vunpack.c.l.s4 1983009808
    %v1282 = vunpack.c.0.s8 %v1281
    %v1283 = vlaneseq
    %v1284 = vshrl.u32 %v1283, 7
    %v1285 = vsub.s32 %v1282, %v1284
    %v1286 = vrot.slane %v1023, %v1285
    %v1288 = vunpack.c.l.s4 1983009808
    %v1289 = vunpack.c.0.s8 %v1288
    %v1290 = vlaneseq
    %v1291 = vshrl.u32 %v1290, 7
    %v1292 = vsub.s32 %v1289, %v1291
    %v1293 = vrot.slane %v1279, %v1292
    %v1294 = vcombine.high %v1286, %v1286
    %v1295 = vcombine.high %v1293, %v1293
    %v1296 = vcombine.high %v1024, %v1024
    %v1298 = vunpack.c.l.s4 1983009808
    %v1299 = vunpack.c.0.s8 %v1298
    %v1300 = vlaneseq
    %v1301 = vshrl.u32 %v1300, 7
    %v1302 = vsub.s32 %v1299, %v1301
    %v1303 = vrot.slane %v1024, %v1302
    %v1305 = vunpack.c.l.s4 1983009808
    %v1306 = vunpack.c.0.s8 %v1305
    %v1307 = vlaneseq
    %v1308 = vshrl.u32 %v1307, 7
    %v1309 = vsub.s32 %v1306, %v1308
    %v1310 = vrot.slane %v1296, %v1309
    %v1311 = vcombine.high %v1303, %v1303
    %v1312 = vcombine.high %v1310, %v1310
    %vm1377 = vcmask 58368
    %v1378 = vsel %vm1377, %v1048, -inf
    %v1379 = vrot.slane %v1378, 4
    %v1380 = vmax.f32 %v1378, %v1379
    %v1381 = vrot.slane %v1380, 2
    %v1382 = vmax.f32 %v1380, %v1381
    %v1383 = vrot.slane %v1382, 1
    %v1384 = vmax.f32 %v1382, %v1383
    %v1385 = vsel %vm1377, %v1056, -inf
    %v1386 = vrot.slane %v1385, 4
    %v1387 = vmax.f32 %v1385, %v1386
    %v1388 = vrot.slane %v1387, 2
    %v1389 = vmax.f32 %v1387, %v1388
    %v1390 = vrot.slane %v1389, 1
    %v1391 = vmax.f32 %v1389, %v1390
    %v1392 = vsel %vm1377, %v1055, -inf
    %v1393 = vrot.slane %v1392, 4
    %v1394 = vmax.f32 %v1392, %v1393
    %v1395 = vrot.slane %v1394, 2
    %v1396 = vmax.f32 %v1394, %v1395
    %v1397 = vrot.slane %v1396, 1
    %v1398 = vmax.f32 %v1396, %v1397
    %v1399 = vsel %vm1377, %v1057, -inf
    %v1400 = vrot.slane %v1399, 4
    %v1401 = vmax.f32 %v1399, %v1400
    %v1402 = vrot.slane %v1401, 2
    %v1403 = vmax.f32 %v1401, %v1402
    %v1404 = vrot.slane %v1403, 1
    %v1405 = vmax.f32 %v1403, %v1404
    %v1406 = vsel %vm1377, %v1065, -inf
    %v1407 = vrot.slane %v1406, 4
    %v1408 = vmax.f32 %v1406, %v1407
    %v1409 = vrot.slane %v1408, 2
    %v1410 = vmax.f32 %v1408, %v1409
    %v1411 = vrot.slane %v1410, 1
    %v1412 = vmax.f32 %v1410, %v1411
    %v1413 = vsel %vm1377, %v1073, -inf
    %v1414 = vrot.slane %v1413, 4
    %v1415 = vmax.f32 %v1413, %v1414
    %v1416 = vrot.slane %v1415, 2
    %v1417 = vmax.f32 %v1415, %v1416
    %v1418 = vrot.slane %v1417, 1
    %v1419 = vmax.f32 %v1417, %v1418
    %v1420 = vsel %vm1377, %v1072, -inf
    %v1421 = vrot.slane %v1420, 4
    %v1422 = vmax.f32 %v1420, %v1421
    %v1423 = vrot.slane %v1422, 2
    %v1424 = vmax.f32 %v1422, %v1423
    %v1425 = vrot.slane %v1424, 1
    %v1426 = vmax.f32 %v1424, %v1425
    %v1427 = vsel %vm1377, %v1074, -inf
    %v1428 = vrot.slane %v1427, 4
    %v1429 = vmax.f32 %v1427, %v1428
    %v1430 = vrot.slane %v1429, 2
    %v1431 = vmax.f32 %v1429, %v1430
    %v1432 = vrot.slane %v1431, 1
    %v1433 = vmax.f32 %v1431, %v1432
    %v1434 = vsel %vm1377, %v1082, -inf
    %v1435 = vrot.slane %v1434, 4
    %v1436 = vmax.f32 %v1434, %v1435
    %v1437 = vrot.slane %v1436, 2
    %v1438 = vmax.f32 %v1436, %v1437
    %v1439 = vrot.slane %v1438, 1
    %v1440 = vmax.f32 %v1438, %v1439
    %v1441 = vsel %vm1377, %v1090, -inf
    %v1442 = vrot.slane %v1441, 4
    %v1443 = vmax.f32 %v1441, %v1442
    %v1444 = vrot.slane %v1443, 2
    %v1445 = vmax.f32 %v1443, %v1444
    %v1446 = vrot.slane %v1445, 1
    %v1447 = vmax.f32 %v1445, %v1446
    %v1448 = vsel %vm1377, %v1089, -inf
    %v1449 = vrot.slane %v1448, 4
    %v1450 = vmax.f32 %v1448, %v1449
    %v1451 = vrot.slane %v1450, 2
    %v1452 = vmax.f32 %v1450, %v1451
    %v1453 = vrot.slane %v1452, 1
    %v1454 = vmax.f32 %v1452, %v1453
    %v1455 = vsel %vm1377, %v1091, -inf
    %v1456 = vrot.slane %v1455, 4
    %v1457 = vmax.f32 %v1455, %v1456
    %v1458 = vrot.slane %v1457, 2
    %v1459 = vmax.f32 %v1457, %v1458
    %v1460 = vrot.slane %v1459, 1
    %v1461 = vmax.f32 %v1459, %v1460
    %v1462 = vsel %vm1377, %v1099, -inf
    %v1463 = vrot.slane %v1462, 4
    %v1464 = vmax.f32 %v1462, %v1463
    %v1465 = vrot.slane %v1464, 2
    %v1466 = vmax.f32 %v1464, %v1465
    %v1467 = vrot.slane %v1466, 1
    %v1468 = vmax.f32 %v1466, %v1467
    %v1469 = vsel %vm1377, %v1107, -inf
    %v1470 = vrot.slane %v1469, 4
    %v1471 = vmax.f32 %v1469, %v1470
    %v1472 = vrot.slane %v1471, 2
    %v1473 = vmax.f32 %v1471, %v1472
    %v1474 = vrot.slane %v1473, 1
    %v1475 = vmax.f32 %v1473, %v1474
    %v1476 = vsel %vm1377, %v1106, -inf
    %v1477 = vrot.slane %v1476, 4
    %v1478 = vmax.f32 %v1476, %v1477
    %v1479 = vrot.slane %v1478, 2
    %v1480 = vmax.f32 %v1478, %v1479
    %v1481 = vrot.slane %v1480, 1
    %v1482 = vmax.f32 %v1480, %v1481
    %v1483 = vsel %vm1377, %v1108, -inf
    %v1484 = vrot.slane %v1483, 4
    %v1485 = vmax.f32 %v1483, %v1484
    %v1486 = vrot.slane %v1485, 2
    %v1487 = vmax.f32 %v1485, %v1486
    %v1488 = vrot.slane %v1487, 1
    %v1489 = vmax.f32 %v1487, %v1488
    %v1490 = vsel %vm1377, %v1116, -inf
    %v1491 = vrot.slane %v1490, 4
    %v1492 = vmax.f32 %v1490, %v1491
    %v1493 = vrot.slane %v1492, 2
    %v1494 = vmax.f32 %v1492, %v1493
    %v1495 = vrot.slane %v1494, 1
    %v1496 = vmax.f32 %v1494, %v1495
    %v1497 = vsel %vm1377, %v1124, -inf
    %v1498 = vrot.slane %v1497, 4
    %v1499 = vmax.f32 %v1497, %v1498
    %v1500 = vrot.slane %v1499, 2
    %v1501 = vmax.f32 %v1499, %v1500
    %v1502 = vrot.slane %v1501, 1
    %v1503 = vmax.f32 %v1501, %v1502
    %v1504 = vsel %vm1377, %v1123, -inf
    %v1505 = vrot.slane %v1504, 4
    %v1506 = vmax.f32 %v1504, %v1505
    %v1507 = vrot.slane %v1506, 2
    %v1508 = vmax.f32 %v1506, %v1507
    %v1509 = vrot.slane %v1508, 1
    %v1510 = vmax.f32 %v1508, %v1509
    %v1511 = vsel %vm1377, %v1125, -inf
    %v1512 = vrot.slane %v1511, 4
    %v1513 = vmax.f32 %v1511, %v1512
    %v1514 = vrot.slane %v1513, 2
    %v1515 = vmax.f32 %v1513, %v1514
    %v1516 = vrot.slane %v1515, 1
    %v1517 = vmax.f32 %v1515, %v1516
    %v1518 = vsel %vm1377, %v1133, -inf
    %v1519 = vrot.slane %v1518, 4
    %v1520 = vmax.f32 %v1518, %v1519
    %v1521 = vrot.slane %v1520, 2
    %v1522 = vmax.f32 %v1520, %v1521
    %v1523 = vrot.slane %v1522, 1
    %v1524 = vmax.f32 %v1522, %v1523
    %v1525 = vsel %vm1377, %v1141, -inf
    %v1526 = vrot.slane %v1525, 4
    %v1527 = vmax.f32 %v1525, %v1526
    %v1528 = vrot.slane %v1527, 2
    %v1529 = vmax.f32 %v1527, %v1528
    %v1530 = vrot.slane %v1529, 1
    %v1531 = vmax.f32 %v1529, %v1530
    %v1532 = vsel %vm1377, %v1140, -inf
    %v1533 = vrot.slane %v1532, 4
    %v1534 = vmax.f32 %v1532, %v1533
    %v1535 = vrot.slane %v1534, 2
    %v1536 = vmax.f32 %v1534, %v1535
    %v1537 = vrot.slane %v1536, 1
    %v1538 = vmax.f32 %v1536, %v1537
    %v1539 = vsel %vm1377, %v1142, -inf
    %v1540 = vrot.slane %v1539, 4
    %v1541 = vmax.f32 %v1539, %v1540
    %v1542 = vrot.slane %v1541, 2
    %v1543 = vmax.f32 %v1541, %v1542
    %v1544 = vrot.slane %v1543, 1
    %v1545 = vmax.f32 %v1543, %v1544
    %v1546 = vsel %vm1377, %v1150, -inf
    %v1547 = vrot.slane %v1546, 4
    %v1548 = vmax.f32 %v1546, %v1547
    %v1549 = vrot.slane %v1548, 2
    %v1550 = vmax.f32 %v1548, %v1549
    %v1551 = vrot.slane %v1550, 1
    %v1552 = vmax.f32 %v1550, %v1551
    %v1553 = vsel %vm1377, %v1158, -inf
    %v1554 = vrot.slane %v1553, 4
    %v1555 = vmax.f32 %v1553, %v1554
    %v1556 = vrot.slane %v1555, 2
    %v1557 = vmax.f32 %v1555, %v1556
    %v1558 = vrot.slane %v1557, 1
    %v1559 = vmax.f32 %v1557, %v1558
    %v1560 = vsel %vm1377, %v1157, -inf
    %v1561 = vrot.slane %v1560, 4
    %v1562 = vmax.f32 %v1560, %v1561
    %v1563 = vrot.slane %v1562, 2
    %v1564 = vmax.f32 %v1562, %v1563
    %v1565 = vrot.slane %v1564, 1
    %v1566 = vmax.f32 %v1564, %v1565
    %v1567 = vsel %vm1377, %v1159, -inf
    %v1568 = vrot.slane %v1567, 4
    %v1569 = vmax.f32 %v1567, %v1568
    %v1570 = vrot.slane %v1569, 2
    %v1571 = vmax.f32 %v1569, %v1570
    %v1572 = vrot.slane %v1571, 1
    %v1573 = vmax.f32 %v1571, %v1572
    %v1574 = vsel %vm1377, %v1167, -inf
    %v1575 = vrot.slane %v1574, 4
    %v1576 = vmax.f32 %v1574, %v1575
    %v1577 = vrot.slane %v1576, 2
    %v1578 = vmax.f32 %v1576, %v1577
    %v1579 = vrot.slane %v1578, 1
    %v1580 = vmax.f32 %v1578, %v1579
    %v1581 = vsel %vm1377, %v1175, -inf
    %v1582 = vrot.slane %v1581, 4
    %v1583 = vmax.f32 %v1581, %v1582
    %v1584 = vrot.slane %v1583, 2
    %v1585 = vmax.f32 %v1583, %v1584
    %v1586 = vrot.slane %v1585, 1
    %v1587 = vmax.f32 %v1585, %v1586
    %v1588 = vsel %vm1377, %v1174, -inf
    %v1589 = vrot.slane %v1588, 4
    %v1590 = vmax.f32 %v1588, %v1589
    %v1591 = vrot.slane %v1590, 2
    %v1592 = vmax.f32 %v1590, %v1591
    %v1593 = vrot.slane %v1592, 1
    %v1594 = vmax.f32 %v1592, %v1593
    %v1595 = vsel %vm1377, %v1176, -inf
    %v1596 = vrot.slane %v1595, 4
    %v1597 = vmax.f32 %v1595, %v1596
    %v1598 = vrot.slane %v1597, 2
    %v1599 = vmax.f32 %v1597, %v1598
    %v1600 = vrot.slane %v1599, 1
    %v1601 = vmax.f32 %v1599, %v1600
    %v1602 = vsel %vm1377, %v1184, -inf
    %v1603 = vrot.slane %v1602, 4
    %v1604 = vmax.f32 %v1602, %v1603
    %v1605 = vrot.slane %v1604, 2
    %v1606 = vmax.f32 %v1604, %v1605
    %v1607 = vrot.slane %v1606, 1
    %v1608 = vmax.f32 %v1606, %v1607
    %v1609 = vsel %vm1377, %v1192, -inf
    %v1610 = vrot.slane %v1609, 4
    %v1611 = vmax.f32 %v1609, %v1610
    %v1612 = vrot.slane %v1611, 2
    %v1613 = vmax.f32 %v1611, %v1612
    %v1614 = vrot.slane %v1613, 1
    %v1615 = vmax.f32 %v1613, %v1614
    %v1616 = vsel %vm1377, %v1191, -inf
    %v1617 = vrot.slane %v1616, 4
    %v1618 = vmax.f32 %v1616, %v1617
    %v1619 = vrot.slane %v1618, 2
    %v1620 = vmax.f32 %v1618, %v1619
    %v1621 = vrot.slane %v1620, 1
    %v1622 = vmax.f32 %v1620, %v1621
    %v1623 = vsel %vm1377, %v1193, -inf
    %v1624 = vrot.slane %v1623, 4
    %v1625 = vmax.f32 %v1623, %v1624
    %v1626 = vrot.slane %v1625, 2
    %v1627 = vmax.f32 %v1625, %v1626
    %v1628 = vrot.slane %v1627, 1
    %v1629 = vmax.f32 %v1627, %v1628
    %v1630 = vsel %vm1377, %v1201, -inf
    %v1631 = vrot.slane %v1630, 4
    %v1632 = vmax.f32 %v1630, %v1631
    %v1633 = vrot.slane %v1632, 2
    %v1634 = vmax.f32 %v1632, %v1633
    %v1635 = vrot.slane %v1634, 1
    %v1636 = vmax.f32 %v1634, %v1635
    %v1637 = vsel %vm1377, %v1209, -inf
    %v1638 = vrot.slane %v1637, 4
    %v1639 = vmax.f32 %v1637, %v1638
    %v1640 = vrot.slane %v1639, 2
    %v1641 = vmax.f32 %v1639, %v1640
    %v1642 = vrot.slane %v1641, 1
    %v1643 = vmax.f32 %v1641, %v1642
    %v1644 = vsel %vm1377, %v1208, -inf
    %v1645 = vrot.slane %v1644, 4
    %v1646 = vmax.f32 %v1644, %v1645
    %v1647 = vrot.slane %v1646, 2
    %v1648 = vmax.f32 %v1646, %v1647
    %v1649 = vrot.slane %v1648, 1
    %v1650 = vmax.f32 %v1648, %v1649
    %v1651 = vsel %vm1377, %v1210, -inf
    %v1652 = vrot.slane %v1651, 4
    %v1653 = vmax.f32 %v1651, %v1652
    %v1654 = vrot.slane %v1653, 2
    %v1655 = vmax.f32 %v1653, %v1654
    %v1656 = vrot.slane %v1655, 1
    %v1657 = vmax.f32 %v1655, %v1656
    %v1658 = vsel %vm1377, %v1218, -inf
    %v1659 = vrot.slane %v1658, 4
    %v1660 = vmax.f32 %v1658, %v1659
    %v1661 = vrot.slane %v1660, 2
    %v1662 = vmax.f32 %v1660, %v1661
    %v1663 = vrot.slane %v1662, 1
    %v1664 = vmax.f32 %v1662, %v1663
    %v1665 = vsel %vm1377, %v1226, -inf
    %v1666 = vrot.slane %v1665, 4
    %v1667 = vmax.f32 %v1665, %v1666
    %v1668 = vrot.slane %v1667, 2
    %v1669 = vmax.f32 %v1667, %v1668
    %v1670 = vrot.slane %v1669, 1
    %v1671 = vmax.f32 %v1669, %v1670
    %v1672 = vsel %vm1377, %v1225, -inf
    %v1673 = vrot.slane %v1672, 4
    %v1674 = vmax.f32 %v1672, %v1673
    %v1675 = vrot.slane %v1674, 2
    %v1676 = vmax.f32 %v1674, %v1675
    %v1677 = vrot.slane %v1676, 1
    %v1678 = vmax.f32 %v1676, %v1677
    %v1679 = vsel %vm1377, %v1227, -inf
    %v1680 = vrot.slane %v1679, 4
    %v1681 = vmax.f32 %v1679, %v1680
    %v1682 = vrot.slane %v1681, 2
    %v1683 = vmax.f32 %v1681, %v1682
    %v1684 = vrot.slane %v1683, 1
    %v1685 = vmax.f32 %v1683, %v1684
    %v1686 = vsel %vm1377, %v1235, -inf
    %v1687 = vrot.slane %v1686, 4
    %v1688 = vmax.f32 %v1686, %v1687
    %v1689 = vrot.slane %v1688, 2
    %v1690 = vmax.f32 %v1688, %v1689
    %v1691 = vrot.slane %v1690, 1
    %v1692 = vmax.f32 %v1690, %v1691
    %v1693 = vsel %vm1377, %v1243, -inf
    %v1694 = vrot.slane %v1693, 4
    %v1695 = vmax.f32 %v1693, %v1694
    %v1696 = vrot.slane %v1695, 2
    %v1697 = vmax.f32 %v1695, %v1696
    %v1698 = vrot.slane %v1697, 1
    %v1699 = vmax.f32 %v1697, %v1698
    %v1700 = vsel %vm1377, %v1242, -inf
    %v1701 = vrot.slane %v1700, 4
    %v1702 = vmax.f32 %v1700, %v1701
    %v1703 = vrot.slane %v1702, 2
    %v1704 = vmax.f32 %v1702, %v1703
    %v1705 = vrot.slane %v1704, 1
    %v1706 = vmax.f32 %v1704, %v1705
    %v1707 = vsel %vm1377, %v1244, -inf
    %v1708 = vrot.slane %v1707, 4
    %v1709 = vmax.f32 %v1707, %v1708
    %v1710 = vrot.slane %v1709, 2
    %v1711 = vmax.f32 %v1709, %v1710
    %v1712 = vrot.slane %v1711, 1
    %v1713 = vmax.f32 %v1711, %v1712
    %v1714 = vsel %vm1377, %v1252, -inf
    %v1715 = vrot.slane %v1714, 4
    %v1716 = vmax.f32 %v1714, %v1715
    %v1717 = vrot.slane %v1716, 2
    %v1718 = vmax.f32 %v1716, %v1717
    %v1719 = vrot.slane %v1718, 1
    %v1720 = vmax.f32 %v1718, %v1719
    %v1721 = vsel %vm1377, %v1260, -inf
    %v1722 = vrot.slane %v1721, 4
    %v1723 = vmax.f32 %v1721, %v1722
    %v1724 = vrot.slane %v1723, 2
    %v1725 = vmax.f32 %v1723, %v1724
    %v1726 = vrot.slane %v1725, 1
    %v1727 = vmax.f32 %v1725, %v1726
    %v1728 = vsel %vm1377, %v1259, -inf
    %v1729 = vrot.slane %v1728, 4
    %v1730 = vmax.f32 %v1728, %v1729
    %v1731 = vrot.slane %v1730, 2
    %v1732 = vmax.f32 %v1730, %v1731
    %v1733 = vrot.slane %v1732, 1
    %v1734 = vmax.f32 %v1732, %v1733
    %v1735 = vsel %vm1377, %v1261, -inf
    %v1736 = vrot.slane %v1735, 4
    %v1737 = vmax.f32 %v1735, %v1736
    %v1738 = vrot.slane %v1737, 2
    %v1739 = vmax.f32 %v1737, %v1738
    %v1740 = vrot.slane %v1739, 1
    %v1741 = vmax.f32 %v1739, %v1740
    %v1742 = vsel %vm1377, %v1269, -inf
    %v1743 = vrot.slane %v1742, 4
    %v1744 = vmax.f32 %v1742, %v1743
    %v1745 = vrot.slane %v1744, 2
    %v1746 = vmax.f32 %v1744, %v1745
    %v1747 = vrot.slane %v1746, 1
    %v1748 = vmax.f32 %v1746, %v1747
    %v1749 = vsel %vm1377, %v1277, -inf
    %v1750 = vrot.slane %v1749, 4
    %v1751 = vmax.f32 %v1749, %v1750
    %v1752 = vrot.slane %v1751, 2
    %v1753 = vmax.f32 %v1751, %v1752
    %v1754 = vrot.slane %v1753, 1
    %v1755 = vmax.f32 %v1753, %v1754
    %v1756 = vsel %vm1377, %v1276, -inf
    %v1757 = vrot.slane %v1756, 4
    %v1758 = vmax.f32 %v1756, %v1757
    %v1759 = vrot.slane %v1758, 2
    %v1760 = vmax.f32 %v1758, %v1759
    %v1761 = vrot.slane %v1760, 1
    %v1762 = vmax.f32 %v1760, %v1761
    %v1763 = vsel %vm1377, %v1278, -inf
    %v1764 = vrot.slane %v1763, 4
    %v1765 = vmax.f32 %v1763, %v1764
    %v1766 = vrot.slane %v1765, 2
    %v1767 = vmax.f32 %v1765, %v1766
    %v1768 = vrot.slane %v1767, 1
    %v1769 = vmax.f32 %v1767, %v1768
    %v1770 = vsel %vm1377, %v1286, -inf
    %v1771 = vrot.slane %v1770, 4
    %v1772 = vmax.f32 %v1770, %v1771
    %v1773 = vrot.slane %v1772, 2
    %v1774 = vmax.f32 %v1772, %v1773
    %v1775 = vrot.slane %v1774, 1
    %v1776 = vmax.f32 %v1774, %v1775
    %v1777 = vsel %vm1377, %v1294, -inf
    %v1778 = vrot.slane %v1777, 4
    %v1779 = vmax.f32 %v1777, %v1778
    %v1780 = vrot.slane %v1779, 2
    %v1781 = vmax.f32 %v1779, %v1780
    %v1782 = vrot.slane %v1781, 1
    %v1783 = vmax.f32 %v1781, %v1782
    %v1784 = vsel %vm1377, %v1293, -inf
    %v1785 = vrot.slane %v1784, 4
    %v1786 = vmax.f32 %v1784, %v1785
    %v1787 = vrot.slane %v1786, 2
    %v1788 = vmax.f32 %v1786, %v1787
    %v1789 = vrot.slane %v1788, 1
    %v1790 = vmax.f32 %v1788, %v1789
    %v1791 = vsel %vm1377, %v1295, -inf
    %v1792 = vrot.slane %v1791, 4
    %v1793 = vmax.f32 %v1791, %v1792
    %v1794 = vrot.slane %v1793, 2
    %v1795 = vmax.f32 %v1793, %v1794
    %v1796 = vrot.slane %v1795, 1
    %v1797 = vmax.f32 %v1795, %v1796
    %v1798 = vsel %vm1377, %v1303, -inf
    %v1799 = vrot.slane %v1798, 4
    %v1800 = vmax.f32 %v1798, %v1799
    %v1801 = vrot.slane %v1800, 2
    %v1802 = vmax.f32 %v1800, %v1801
    %v1803 = vrot.slane %v1802, 1
    %v1804 = vmax.f32 %v1802, %v1803
    %v1805 = vsel %vm1377, %v1311, -inf
    %v1806 = vrot.slane %v1805, 4
    %v1807 = vmax.f32 %v1805, %v1806
    %v1808 = vrot.slane %v1807, 2
    %v1809 = vmax.f32 %v1807, %v1808
    %v1810 = vrot.slane %v1809, 1
    %v1811 = vmax.f32 %v1809, %v1810
    %v1812 = vsel %vm1377, %v1310, -inf
    %v1813 = vrot.slane %v1812, 4
    %v1814 = vmax.f32 %v1812, %v1813
    %v1815 = vrot.slane %v1814, 2
    %v1816 = vmax.f32 %v1814, %v1815
    %v1817 = vrot.slane %v1816, 1
    %v1818 = vmax.f32 %v1816, %v1817
    %v1819 = vsel %vm1377, %v1312, -inf
    %v1820 = vrot.slane %v1819, 4
    %v1821 = vmax.f32 %v1819, %v1820
    %v1822 = vrot.slane %v1821, 2
    %v1823 = vmax.f32 %v1821, %v1822
    %v1824 = vrot.slane %v1823, 1
    %v1825 = vmax.f32 %v1823, %v1824
    %vm1890 = vcmask 1041409
    %v1891 = vsel %vm1890, %v1391, %v1384
    %vm1892 = vcmask 1042434
    %v1893 = vsel %vm1892, %v1398, %v1891
    %vm1894 = vcmask 1043459
    %v1895 = vsel %vm1894, %v1405, %v1893
    %vm1896 = vcmask 1044484
    %v1897 = vsel %vm1896, %v1412, %v1895
    %vm1898 = vcmask 1045509
    %v1899 = vsel %vm1898, %v1419, %v1897
    %vm1900 = vcmask 1046534
    %v1901 = vsel %vm1900, %v1426, %v1899
    %vm1902 = vcmask 1047559
    %v1903 = vsel %vm1902, %v1433, %v1901
    %v1904 = vsel %vm1890, %v1447, %v1440
    %v1905 = vsel %vm1892, %v1454, %v1904
    %v1906 = vsel %vm1894, %v1461, %v1905
    %v1907 = vsel %vm1896, %v1468, %v1906
    %v1908 = vsel %vm1898, %v1475, %v1907
    %v1909 = vsel %vm1900, %v1482, %v1908
    %v1910 = vsel %vm1902, %v1489, %v1909
    %v1911 = vsel %vm1890, %v1503, %v1496
    %v1912 = vsel %vm1892, %v1510, %v1911
    %v1913 = vsel %vm1894, %v1517, %v1912
    %v1914 = vsel %vm1896, %v1524, %v1913
    %v1915 = vsel %vm1898, %v1531, %v1914
    %v1916 = vsel %vm1900, %v1538, %v1915
    %v1917 = vsel %vm1902, %v1545, %v1916
    %v1918 = vsel %vm1890, %v1559, %v1552
    %v1919 = vsel %vm1892, %v1566, %v1918
    %v1920 = vsel %vm1894, %v1573, %v1919
    %v1921 = vsel %vm1896, %v1580, %v1920
    %v1922 = vsel %vm1898, %v1587, %v1921
    %v1923 = vsel %vm1900, %v1594, %v1922
    %v1924 = vsel %vm1902, %v1601, %v1923
    %v1925 = vsel %vm1890, %v1615, %v1608
    %v1926 = vsel %vm1892, %v1622, %v1925
    %v1927 = vsel %vm1894, %v1629, %v1926
    %v1928 = vsel %vm1896, %v1636, %v1927
    %v1929 = vsel %vm1898, %v1643, %v1928
    %v1930 = vsel %vm1900, %v1650, %v1929
    %v1931 = vsel %vm1902, %v1657, %v1930
    %v1932 = vsel %vm1890, %v1671, %v1664
    %v1933 = vsel %vm1892, %v1678, %v1932
    %v1934 = vsel %vm1894, %v1685, %v1933
    %v1935 = vsel %vm1896, %v1692, %v1934
    %v1936 = vsel %vm1898, %v1699, %v1935
    %v1937 = vsel %vm1900, %v1706, %v1936
    %v1938 = vsel %vm1902, %v1713, %v1937
    %v1939 = vsel %vm1890, %v1727, %v1720
    %v1940 = vsel %vm1892, %v1734, %v1939
    %v1941 = vsel %vm1894, %v1741, %v1940
    %v1942 = vsel %vm1896, %v1748, %v1941
    %v1943 = vsel %vm1898, %v1755, %v1942
    %v1944 = vsel %vm1900, %v1762, %v1943
    %v1945 = vsel %vm1902, %v1769, %v1944
    %v1946 = vsel %vm1890, %v1783, %v1776
    %v1947 = vsel %vm1892, %v1790, %v1946
    %v1948 = vsel %vm1894, %v1797, %v1947
    %v1949 = vsel %vm1896, %v1804, %v1948
    %v1950 = vsel %vm1898, %v1811, %v1949
    %v1951 = vsel %vm1900, %v1818, %v1950
    %v1952 = vsel %vm1902, %v1825, %v1951
    %1961 = vst.msk [vmem:[#allocation2 + $0x8] sm:$0xff] %vm142, %v1903
    %1962 = vst.msk [vmem:[#allocation2 + $0x10] sm:$0xff] %vm142, %v1910
    %1963 = vst.msk [vmem:[#allocation2 + $0x18] sm:$0xff] %vm142, %v1917
    %1964 = vst.msk [vmem:[#allocation2 + $0x20] sm:$0xff] %vm142, %v1924
    %1965 = vst.msk [vmem:[#allocation2 + $0x28] sm:$0xff] %vm142, %v1931
    %1966 = vst.msk [vmem:[#allocation2 + $0x30] sm:$0xff] %vm142, %v1938
    %1967 = vst.msk [vmem:[#allocation2 + $0x38] sm:$0xff] %vm142, %v1945
    %1968 = vst.msk [vmem:[#allocation2 + $0x40] sm:$0xff] %vm142, %v1952
    %v1969 = vld [vmem:[#allocation2 + $0x7] sm:$0xff]
    %v1970 = vld [vmem:[#allocation2 + $0xf] sm:$0xff]
    %v1971 = vld [vmem:[#allocation2 + $0x17] sm:$0xff]
    %v1972 = vld [vmem:[#allocation2 + $0x1f] sm:$0xff]
    %v1973 = vld [vmem:[#allocation2 + $0x27] sm:$0xff]
    %v1974 = vld [vmem:[#allocation2 + $0x2f] sm:$0xff]
    %v1975 = vld [vmem:[#allocation2 + $0x37] sm:$0xff]
    %v1976 = vld [vmem:[#allocation2 + $0x3f] sm:$0xff]
    %v1977 = vld [vmem:[#allocation2 + $0x9] sm:$0xff]
    %v1978 = vld [vmem:[#allocation2 + $0x11] sm:$0xff]
    %v1979 = vld [vmem:[#allocation2 + $0x19] sm:$0xff]
    %v1980 = vld [vmem:[#allocation2 + $0x21] sm:$0xff]
    %v1981 = vld [vmem:[#allocation2 + $0x29] sm:$0xff]
    %v1982 = vld [vmem:[#allocation2 + $0x31] sm:$0xff]
    %v1983 = vld [vmem:[#allocation2 + $0x39] sm:$0xff]
    %v1984 = vld [vmem:[#allocation2 + $0x41] sm:$0xff]
    %v1985 = vand.u32 %v306, 31
    %v1986 = vand.u32 %v307, 31
    %v1987 = vand.u32 %v308, 31
    %v1988 = vand.u32 %v309, 31
    %v1989 = vand.u32 %v310, 31
    %v1990 = vand.u32 %v311, 31
    %v1991 = vand.u32 %v312, 31
    %v1992 = vand.u32 %v313, 31
    %vm1993 = vcmp.eq.s32.totalorder %v1985, 0
    %vm1994 = vcmp.eq.s32.totalorder %v1986, 0
    %vm1995 = vcmp.eq.s32.totalorder %v1987, 0
    %vm1996 = vcmp.eq.s32.totalorder %v1988, 0
    %vm1997 = vcmp.eq.s32.totalorder %v1989, 0
    %vm1998 = vcmp.eq.s32.totalorder %v1990, 0
    %vm1999 = vcmp.eq.s32.totalorder %v1991, 0
    %vm2000 = vcmp.eq.s32.totalorder %v1992, 0
    %v2001 = vsel %vm1993, 0.0, %v1969
    %v2002 = vsel %vm1994, 0.0, %v1970
    %v2003 = vsel %vm1995, 0.0, %v1971
    %v2004 = vsel %vm1996, 0.0, %v1972
    %v2005 = vsel %vm1997, 0.0, %v1973
    %v2006 = vsel %vm1998, 0.0, %v1974
    %v2007 = vsel %vm1999, 0.0, %v1975
    %v2008 = vsel %vm2000, 0.0, %v1976
    %vm2009 = vcmp.eq.s32.totalorder %v1985, 31
    %vm2010 = vcmp.eq.s32.totalorder %v1986, 31
    %vm2011 = vcmp.eq.s32.totalorder %v1987, 31
    %vm2012 = vcmp.eq.s32.totalorder %v1988, 31
    %vm2013 = vcmp.eq.s32.totalorder %v1989, 31
    %vm2014 = vcmp.eq.s32.totalorder %v1990, 31
    %vm2015 = vcmp.eq.s32.totalorder %v1991, 31
    %vm2016 = vcmp.eq.s32.totalorder %v1992, 31
    %v2017 = vsel %vm2009, 0.0, %v1977
    %v2018 = vsel %vm2010, 0.0, %v1978
    %v2019 = vsel %vm2011, 0.0, %v1979
    %v2020 = vsel %vm2012, 0.0, %v1980
    %v2021 = vsel %vm2013, 0.0, %v1981
    %v2022 = vsel %vm2014, 0.0, %v1982
    %v2023 = vsel %vm2015, 0.0, %v1983
    %v2024 = vsel %vm2016, 0.0, %v1984
    %v2025 = vld [vmem:[#allocation6] sm:$0xff]
    %s2026 = scalar_lea.vmem [#allocation6], 8
    %v2027 = vld [vmem:[%s2026] sm:$0xff]
    %v2028 = vsel %vm142, %v1903, 0
    %v2030 = vsel %vm142, %v1910, 0
    %v2032 = vsel %vm142, %v1917, 0
    %v2034 = vsel %vm142, %v1924, 0
    %v2036 = vsel %vm142, %v1931, 0
    %v2038 = vsel %vm142, %v1938, 0
    %v2040 = vsel %vm142, %v1945, 0
    %v2042 = vsel %vm142, %v1952, 0
    %2044 = vmatprep.subr.mxu0 0.0
    %2045 = vmatpush1.msra.mxu0 %v2027
    %2046 = vmatprep.subr.mxu0 0.0
    %2047 = vmatpush1.msra.mxu0 0.0
    %2048 = vmatprep.subr.mxu0 0.0
    %2049 = vmatpush1.msra.mxu0 0.0
    %2050 = vmatprep.subr.mxu0 0.0
    %2051 = vmatpush1.msra.mxu0 0.0
    %2052 = vmatprep.subr.mxu0 0.0
    %2053 = vmatpush1.msra.mxu0 0.0
    %2054 = vmatprep.subr.mxu0 0.0
    %2055 = vmatpush1.msra.mxu0 0.0
    %2056 = vmatprep.subr.mxu0 0.0
    %2057 = vmatpush1.msra.mxu0 0.0
    %2058 = vmatprep.subr.mxu0 0.0
    %2059 = vmatpush1.msra.mxu0 0.0
    %2060 = vmatprep.subr.mxu0 0.0
    %2061 = vmatpush1.msra.mxu0 0.0
    %2062 = vmatprep.subr.mxu0 0.0
    %2063 = vmatpush1.msra.mxu0 0.0
    %2064 = vmatprep.subr.mxu0 0.0
    %2065 = vmatpush1.msra.mxu0 0.0
    %2066 = vmatprep.subr.mxu0 0.0
    %2067 = vmatpush1.msra.mxu0 0.0
    %2068 = vmatprep.subr.mxu0 0.0
    %2069 = vmatpush1.msra.mxu0 0.0
    %2070 = vmatprep.subr.mxu0 0.0
    %2071 = vmatpush1.msra.mxu0 0.0
    %2072 = vmatprep.subr.mxu0 0.0
    %2073 = vmatpush1.msra.mxu0 0.0
    %2074 = vmatprep.subr.mxu0 0.0
    %2075 = vmatpush1.msra.mxu0 0.0
    %2076 = vmatprep.subr.mxu0 0.0
    %2077 = vmatpush1.msra.mxu0 0.0
    %2078 = vmatprep.subr.mxu0 0.0
    %2079 = vmatpush1.msra.mxu0 0.0
    %2080 = vmatprep.subr.mxu0 0.0
    %2081 = vmatpush1.msra.mxu0 0.0
    %2082 = vmatprep.subr.mxu0 0.0
    %2083 = vmatpush1.msra.mxu0 0.0
    %2084 = vmatprep.subr.mxu0 0.0
    %2085 = vmatpush1.msra.mxu0 0.0
    %2086 = vmatprep.subr.mxu0 0.0
    %2087 = vmatpush1.msra.mxu0 0.0
    %2088 = vmatprep.subr.mxu0 0.0
    %2089 = vmatpush1.msra.mxu0 0.0
    %2090 = vmatprep.subr.mxu0 0.0
    %2091 = vmatpush1.msra.mxu0 0.0
    %2092 = vmatprep.subr.mxu0 0.0
    %2093 = vmatpush1.msra.mxu0 0.0
    %2094 = vmatprep.subr.mxu0 0.0
    %2095 = vmatpush1.msra.mxu0 0.0
    %2096 = vmatprep.subr.mxu0 0.0
    %2097 = vmatpush1.msra.mxu0 0.0
    %2098 = vmatprep.subr.mxu0 0.0
    %2099 = vmatpush1.msra.mxu0 0.0
    %2100 = vmatprep.subr.mxu0 0.0
    %2101 = vmatpush1.msra.mxu0 0.0
    %2102 = vmatprep.subr.mxu0 0.0
    %2103 = vmatpush1.msra.mxu0 0.0
    %2104 = vmatprep.subr.mxu0 0.0
    %2105 = vmatpush1.msra.mxu0 0.0
    %2106 = vmatprep.subr.mxu0 0.0
    %2107 = vmatpush1.msra.mxu0 0.0
    %2108 = vmatprep.mubr.f32.mxu0 0.0
    %2109 = vmatmul.mubr.f32.gmra.mrb[0].mxu0 %v2028
    %v2110 = vpop.f32.mrb[0].mxu0
    %v2111 = vadd.f32 0.0, %v2110
    %v2112 = vpop.f32.mrb[0].mxu0
    %2113 = vmatprep.mubr.f32.mxu0 0.0
    %2114 = vmatmul.mubr.f32.gmra.mrb[0].mxu0 %v2030
    %v2115 = vpop.f32.mrb[0].mxu0
    %v2116 = vadd.f32 0.0, %v2115
    %v2117 = vpop.f32.mrb[0].mxu0
    %2118 = vmatprep.mubr.f32.mxu0 0.0
    %2119 = vmatmul.mubr.f32.gmra.mrb[0].mxu0 %v2032
    %v2120 = vpop.f32.mrb[0].mxu0
    %v2121 = vadd.f32 0.0, %v2120
    %v2122 = vpop.f32.mrb[0].mxu0
    %2123 = vmatprep.mubr.f32.mxu0 0.0
    %2124 = vmatmul.mubr.f32.gmra.mrb[0].mxu0 %v2034
    %v2125 = vpop.f32.mrb[0].mxu0
    %v2126 = vadd.f32 0.0, %v2125
    %v2127 = vpop.f32.mrb[0].mxu0
    %2128 = vmatprep.mubr.f32.mxu0 0.0
    %2129 = vmatmul.mubr.f32.gmra.mrb[0].mxu0 %v2036
    %v2130 = vpop.f32.mrb[0].mxu0
    %v2131 = vadd.f32 0.0, %v2130
    %v2132 = vpop.f32.mrb[0].mxu0
    %2133 = vmatprep.mubr.f32.mxu0 0.0
    %2134 = vmatmul.mubr.f32.gmra.mrb[0].mxu0 %v2038
    %v2135 = vpop.f32.mrb[0].mxu0
    %v2136 = vadd.f32 0.0, %v2135
    %v2137 = vpop.f32.mrb[0].mxu0
    %2138 = vmatprep.mubr.f32.mxu0 0.0
    %2139 = vmatmul.mubr.f32.gmra.mrb[0].mxu0 %v2040
    %v2140 = vpop.f32.mrb[0].mxu0
    %v2141 = vadd.f32 0.0, %v2140
    %v2142 = vpop.f32.mrb[0].mxu0
    %2143 = vmatprep.mubr.f32.mxu0 0.0
    %2144 = vmatmul.mubr.f32.gmra.mrb[0].mxu0 %v2042
    %v2145 = vpop.f32.mrb[0].mxu0
    %v2146 = vadd.f32 0.0, %v2145
    %v2147 = vpop.f32.mrb[0].mxu0
    %2148 = vdwg.mxu0
    %v2150 = vsel %vm142, %v2001, 0
    %v2153 = vsel %vm142, %v2002, 0
    %v2156 = vsel %vm142, %v2003, 0
    %v2159 = vsel %vm142, %v2004, 0
    %v2162 = vsel %vm142, %v2005, 0
    %v2165 = vsel %vm142, %v2006, 0
    %v2168 = vsel %vm142, %v2007, 0
    %v2171 = vsel %vm142, %v2008, 0
    %2173 = vmatprep.subr.mxu0 0.0
    %2174 = vmatpush1.msra.mxu0 %v2025
    %2175 = vmatprep.subr.mxu0 0.0
    %2176 = vmatpush1.msra.mxu0 0.0
    %2177 = vmatprep.subr.mxu0 0.0
    %2178 = vmatpush1.msra.mxu0 0.0
    %2179 = vmatprep.subr.mxu0 0.0
    %2180 = vmatpush1.msra.mxu0 0.0
    %2181 = vmatprep.subr.mxu0 0.0
    %2182 = vmatpush1.msra.mxu0 0.0
    %2183 = vmatprep.subr.mxu0 0.0
    %2184 = vmatpush1.msra.mxu0 0.0
    %2185 = vmatprep.subr.mxu0 0.0
    %2186 = vmatpush1.msra.mxu0 0.0
    %2187 = vmatprep.subr.mxu0 0.0
    %2188 = vmatpush1.msra.mxu0 0.0
    %2189 = vmatprep.subr.mxu0 0.0
    %2190 = vmatpush1.msra.mxu0 0.0
    %2191 = vmatprep.subr.mxu0 0.0
    %2192 = vmatpush1.msra.mxu0 0.0
    %2193 = vmatprep.subr.mxu0 0.0
    %2194 = vmatpush1.msra.mxu0 0.0
    %2195 = vmatprep.subr.mxu0 0.0
    %2196 = vmatpush1.msra.mxu0 0.0
    %2197 = vmatprep.subr.mxu0 0.0
    %2198 = vmatpush1.msra.mxu0 0.0
    %2199 = vmatprep.subr.mxu0 0.0
    %2200 = vmatpush1.msra.mxu0 0.0
    %2201 = vmatprep.subr.mxu0 0.0
    %2202 = vmatpush1.msra.mxu0 0.0
    %2203 = vmatprep.subr.mxu0 0.0
    %2204 = vmatpush1.msra.mxu0 0.0
    %2205 = vmatprep.subr.mxu0 0.0
    %2206 = vmatpush1.msra.mxu0 0.0
    %2207 = vmatprep.subr.mxu0 0.0
    %2208 = vmatpush1.msra.mxu0 0.0
    %2209 = vmatprep.subr.mxu0 0.0
    %2210 = vmatpush1.msra.mxu0 0.0
    %2211 = vmatprep.subr.mxu0 0.0
    %2212 = vmatpush1.msra.mxu0 0.0
    %2213 = vmatprep.subr.mxu0 0.0
    %2214 = vmatpush1.msra.mxu0 0.0
    %2215 = vmatprep.subr.mxu0 0.0
    %2216 = vmatpush1.msra.mxu0 0.0
    %2217 = vmatprep.subr.mxu0 0.0
    %2218 = vmatpush1.msra.mxu0 0.0
    %2219 = vmatprep.subr.mxu0 0.0
    %2220 = vmatpush1.msra.mxu0 0.0
    %2221 = vmatprep.subr.mxu0 0.0
    %2222 = vmatpush1.msra.mxu0 0.0
    %2223 = vmatprep.subr.mxu0 0.0
    %2224 = vmatpush1.msra.mxu0 0.0
    %2225 = vmatprep.subr.mxu0 0.0
    %2226 = vmatpush1.msra.mxu0 0.0
    %2227 = vmatprep.subr.mxu0 0.0
    %2228 = vmatpush1.msra.mxu0 0.0
    %2229 = vmatprep.subr.mxu0 0.0
    %2230 = vmatpush1.msra.mxu0 0.0
    %2231 = vmatprep.subr.mxu0 0.0
    %2232 = vmatpush1.msra.mxu0 0.0
    %2233 = vmatprep.subr.mxu0 0.0
    %2234 = vmatpush1.msra.mxu0 0.0
    %2235 = vmatprep.subr.mxu0 0.0
    %2236 = vmatpush1.msra.mxu0 0.0
    %2237 = vmatprep.mubr.f32.mxu0 0.0
    %2238 = vmatmul.mubr.f32.gmra.mrb[0].mxu0 %v2150
    %v2239 = vpop.f32.mrb[0].mxu0
    %v2240 = vadd.f32 %v2111, %v2239
    %v2241 = vpop.f32.mrb[0].mxu0
    %2242 = vmatprep.mubr.f32.mxu0 0.0
    %2243 = vmatmul.mubr.f32.gmra.mrb[0].mxu0 %v2153
    %v2244 = vpop.f32.mrb[0].mxu0
    %v2245 = vadd.f32 %v2116, %v2244
    %v2246 = vpop.f32.mrb[0].mxu0
    %2247 = vmatprep.mubr.f32.mxu0 0.0
    %2248 = vmatmul.mubr.f32.gmra.mrb[0].mxu0 %v2156
    %v2249 = vpop.f32.mrb[0].mxu0
    %v2250 = vadd.f32 %v2121, %v2249
    %v2251 = vpop.f32.mrb[0].mxu0
    %2252 = vmatprep.mubr.f32.mxu0 0.0
    %2253 = vmatmul.mubr.f32.gmra.mrb[0].mxu0 %v2159
    %v2254 = vpop.f32.mrb[0].mxu0
    %v2255 = vadd.f32 %v2126, %v2254
    %v2256 = vpop.f32.mrb[0].mxu0
    %2257 = vmatprep.mubr.f32.mxu0 0.0
    %2258 = vmatmul.mubr.f32.gmra.mrb[0].mxu0 %v2162
    %v2259 = vpop.f32.mrb[0].mxu0
    %v2260 = vadd.f32 %v2131, %v2259
    %v2261 = vpop.f32.mrb[0].mxu0
    %2262 = vmatprep.mubr.f32.mxu0 0.0
    %2263 = vmatmul.mubr.f32.gmra.mrb[0].mxu0 %v2165
    %v2264 = vpop.f32.mrb[0].mxu0
    %v2265 = vadd.f32 %v2136, %v2264
    %v2266 = vpop.f32.mrb[0].mxu0
    %2267 = vmatprep.mubr.f32.mxu0 0.0
    %2268 = vmatmul.mubr.f32.gmra.mrb[0].mxu0 %v2168
    %v2269 = vpop.f32.mrb[0].mxu0
    %v2270 = vadd.f32 %v2141, %v2269
    %v2271 = vpop.f32.mrb[0].mxu0
    %2272 = vmatprep.mubr.f32.mxu0 0.0
    %2273 = vmatmul.mubr.f32.gmra.mrb[0].mxu0 %v2171
    %v2274 = vpop.f32.mrb[0].mxu0
    %v2275 = vadd.f32 %v2146, %v2274
    %v2276 = vpop.f32.mrb[0].mxu0
    %2277 = vdwg.mxu0
    %s2278 = scalar_lea.vmem [#allocation6], 16
    %v2279 = vld [vmem:[%s2278] sm:$0xff]
    %v2281 = vsel %vm142, %v2017, 0
    %v2284 = vsel %vm142, %v2018, 0
    %v2287 = vsel %vm142, %v2019, 0
    %v2290 = vsel %vm142, %v2020, 0
    %v2293 = vsel %vm142, %v2021, 0
    %v2296 = vsel %vm142, %v2022, 0
    %v2299 = vsel %vm142, %v2023, 0
    %v2302 = vsel %vm142, %v2024, 0
    %2304 = vmatprep.subr.mxu0 0.0
    %2305 = vmatpush1.msra.mxu0 %v2279
    %2306 = vmatprep.subr.mxu0 0.0
    %2307 = vmatpush1.msra.mxu0 0.0
    %2308 = vmatprep.subr.mxu0 0.0
    %2309 = vmatpush1.msra.mxu0 0.0
    %2310 = vmatprep.subr.mxu0 0.0
    %2311 = vmatpush1.msra.mxu0 0.0
    %2312 = vmatprep.subr.mxu0 0.0
    %2313 = vmatpush1.msra.mxu0 0.0
    %2314 = vmatprep.subr.mxu0 0.0
    %2315 = vmatpush1.msra.mxu0 0.0
    %2316 = vmatprep.subr.mxu0 0.0
    %2317 = vmatpush1.msra.mxu0 0.0
    %2318 = vmatprep.subr.mxu0 0.0
    %2319 = vmatpush1.msra.mxu0 0.0
    %2320 = vmatprep.subr.mxu0 0.0
    %2321 = vmatpush1.msra.mxu0 0.0
    %2322 = vmatprep.subr.mxu0 0.0
    %2323 = vmatpush1.msra.mxu0 0.0
    %2324 = vmatprep.subr.mxu0 0.0
    %2325 = vmatpush1.msra.mxu0 0.0
    %2326 = vmatprep.subr.mxu0 0.0
    %2327 = vmatpush1.msra.mxu0 0.0
    %2328 = vmatprep.subr.mxu0 0.0
    %2329 = vmatpush1.msra.mxu0 0.0
    %2330 = vmatprep.subr.mxu0 0.0
    %2331 = vmatpush1.msra.mxu0 0.0
    %2332 = vmatprep.subr.mxu0 0.0
    %2333 = vmatpush1.msra.mxu0 0.0
    %2334 = vmatprep.subr.mxu0 0.0
    %2335 = vmatpush1.msra.mxu0 0.0
    %2336 = vmatprep.subr.mxu0 0.0
    %2337 = vmatpush1.msra.mxu0 0.0
    %2338 = vmatprep.subr.mxu0 0.0
    %2339 = vmatpush1.msra.mxu0 0.0
    %2340 = vmatprep.subr.mxu0 0.0
    %2341 = vmatpush1.msra.mxu0 0.0
    %2342 = vmatprep.subr.mxu0 0.0
    %2343 = vmatpush1.msra.mxu0 0.0
    %2344 = vmatprep.subr.mxu0 0.0
    %2345 = vmatpush1.msra.mxu0 0.0
    %2346 = vmatprep.subr.mxu0 0.0
    %2347 = vmatpush1.msra.mxu0 0.0
    %2348 = vmatprep.subr.mxu0 0.0
    %2349 = vmatpush1.msra.mxu0 0.0
    %2350 = vmatprep.subr.mxu0 0.0
    %2351 = vmatpush1.msra.mxu0 0.0
    %2352 = vmatprep.subr.mxu0 0.0
    %2353 = vmatpush1.msra.mxu0 0.0
    %2354 = vmatprep.subr.mxu0 0.0
    %2355 = vmatpush1.msra.mxu0 0.0
    %2356 = vmatprep.subr.mxu0 0.0
    %2357 = vmatpush1.msra.mxu0 0.0
    %2358 = vmatprep.subr.mxu0 0.0
    %2359 = vmatpush1.msra.mxu0 0.0
    %2360 = vmatprep.subr.mxu0 0.0
    %2361 = vmatpush1.msra.mxu0 0.0
    %2362 = vmatprep.subr.mxu0 0.0
    %2363 = vmatpush1.msra.mxu0 0.0
    %2364 = vmatprep.subr.mxu0 0.0
    %2365 = vmatpush1.msra.mxu0 0.0
    %2366 = vmatprep.subr.mxu0 0.0
    %2367 = vmatpush1.msra.mxu0 0.0
    %2368 = vmatprep.mubr.f32.mxu0 0.0
    %2369 = vmatmul.mubr.f32.gmra.mrb[0].mxu0 %v2281
    %v2370 = vpop.f32.mrb[0].mxu0
    %v2371 = vadd.f32 0.0, %v2370
    %v2372 = vpop.f32.mrb[0].mxu0
    %2373 = vmatprep.mubr.f32.mxu0 0.0
    %2374 = vmatmul.mubr.f32.gmra.mrb[0].mxu0 %v2284
    %v2375 = vpop.f32.mrb[0].mxu0
    %v2376 = vadd.f32 0.0, %v2375
    %v2377 = vpop.f32.mrb[0].mxu0
    %2378 = vmatprep.mubr.f32.mxu0 0.0
    %2379 = vmatmul.mubr.f32.gmra.mrb[0].mxu0 %v2287
    %v2380 = vpop.f32.mrb[0].mxu0
    %v2381 = vadd.f32 0.0, %v2380
    %v2382 = vpop.f32.mrb[0].mxu0
    %2383 = vmatprep.mubr.f32.mxu0 0.0
    %2384 = vmatmul.mubr.f32.gmra.mrb[0].mxu0 %v2290
    %v2385 = vpop.f32.mrb[0].mxu0
    %v2386 = vadd.f32 0.0, %v2385
    %v2387 = vpop.f32.mrb[0].mxu0
    %2388 = vmatprep.mubr.f32.mxu0 0.0
    %2389 = vmatmul.mubr.f32.gmra.mrb[0].mxu0 %v2293
    %v2390 = vpop.f32.mrb[0].mxu0
    %v2391 = vadd.f32 0.0, %v2390
    %v2392 = vpop.f32.mrb[0].mxu0
    %2393 = vmatprep.mubr.f32.mxu0 0.0
    %2394 = vmatmul.mubr.f32.gmra.mrb[0].mxu0 %v2296
    %v2395 = vpop.f32.mrb[0].mxu0
    %v2396 = vadd.f32 0.0, %v2395
    %v2397 = vpop.f32.mrb[0].mxu0
    %2398 = vmatprep.mubr.f32.mxu0 0.0
    %2399 = vmatmul.mubr.f32.gmra.mrb[0].mxu0 %v2299
    %v2400 = vpop.f32.mrb[0].mxu0
    %v2401 = vadd.f32 0.0, %v2400
    %v2402 = vpop.f32.mrb[0].mxu0
    %2403 = vmatprep.mubr.f32.mxu0 0.0
    %2404 = vmatmul.mubr.f32.gmra.mrb[0].mxu0 %v2302
    %v2405 = vpop.f32.mrb[0].mxu0
    %v2406 = vadd.f32 0.0, %v2405
    %v2407 = vpop.f32.mrb[0].mxu0
    %2408 = vdwg.mxu0
    %v2409 = vadd.f32 %v2240, %v2371
    %v2410 = vadd.f32 %v2245, %v2376
    %v2411 = vadd.f32 %v2250, %v2381
    %v2412 = vadd.f32 %v2255, %v2386
    %v2413 = vadd.f32 %v2260, %v2391
    %v2414 = vadd.f32 %v2265, %v2396
    %v2415 = vadd.f32 %v2270, %v2401
    %v2416 = vadd.f32 %v2275, %v2406
    %v2417 = vld [vmem:[#allocation8] sm:$0x1]
    %v2419 = vlaneseq
    %v2420 = vshrl.u32 %v2419, 7
    %v2421 = vsub.s32 0, %v2420
    %v2422 = vrot.slane %v2417, %v2421
    %v2424 = vadd.f32 %v2409, %v2422
    %v2425 = vadd.f32 %v2410, %v2422
    %v2426 = vadd.f32 %v2411, %v2422
    %v2427 = vadd.f32 %v2412, %v2422
    %v2428 = vadd.f32 %v2413, %v2422
    %v2429 = vadd.f32 %v2414, %v2422
    %v2430 = vadd.f32 %v2415, %v2422
    %v2431 = vadd.f32 %v2416, %v2422
    %v2432 = vmax.f32 %v2424, 0.0
    %v2433 = vmax.f32 %v2425, 0.0
    %v2434 = vmax.f32 %v2426, 0.0
    %v2435 = vmax.f32 %v2427, 0.0
    %v2436 = vmax.f32 %v2428, 0.0
    %v2437 = vmax.f32 %v2429, 0.0
    %v2438 = vmax.f32 %v2430, 0.0
    %v2439 = vmax.f32 %v2431, 0.0
    %v2448 = vcombine.high %v2432, %v2432
    %v2450 = vunpack.c.l.s4 1983009808
    %v2451 = vunpack.c.0.s8 %v2450
    %v2452 = vlaneseq
    %v2453 = vshrl.u32 %v2452, 7
    %v2454 = vsub.s32 %v2451, %v2453
    %v2455 = vrot.slane %v2432, %v2454
    %v2457 = vunpack.c.l.s4 1983009808
    %v2458 = vunpack.c.0.s8 %v2457
    %v2459 = vlaneseq
    %v2460 = vshrl.u32 %v2459, 7
    %v2461 = vsub.s32 %v2458, %v2460
    %v2462 = vrot.slane %v2448, %v2461
    %v2463 = vcombine.high %v2455, %v2455
    %v2464 = vcombine.high %v2462, %v2462
    %v2465 = vcombine.high %v2433, %v2433
    %v2467 = vunpack.c.l.s4 1983009808
    %v2468 = vunpack.c.0.s8 %v2467
    %v2469 = vlaneseq
    %v2470 = vshrl.u32 %v2469, 7
    %v2471 = vsub.s32 %v2468, %v2470
    %v2472 = vrot.slane %v2433, %v2471
    %v2474 = vunpack.c.l.s4 1983009808
    %v2475 = vunpack.c.0.s8 %v2474
    %v2476 = vlaneseq
    %v2477 = vshrl.u32 %v2476, 7
    %v2478 = vsub.s32 %v2475, %v2477
    %v2479 = vrot.slane %v2465, %v2478
    %v2480 = vcombine.high %v2472, %v2472
    %v2481 = vcombine.high %v2479, %v2479
    %v2482 = vcombine.high %v2434, %v2434
    %v2484 = vunpack.c.l.s4 1983009808
    %v2485 = vunpack.c.0.s8 %v2484
    %v2486 = vlaneseq
    %v2487 = vshrl.u32 %v2486, 7
    %v2488 = vsub.s32 %v2485, %v2487
    %v2489 = vrot.slane %v2434, %v2488
    %v2491 = vunpack.c.l.s4 1983009808
    %v2492 = vunpack.c.0.s8 %v2491
    %v2493 = vlaneseq
    %v2494 = vshrl.u32 %v2493, 7
    %v2495 = vsub.s32 %v2492, %v2494
    %v2496 = vrot.slane %v2482, %v2495
    %v2497 = vcombine.high %v2489, %v2489
    %v2498 = vcombine.high %v2496, %v2496
    %v2499 = vcombine.high %v2435, %v2435
    %v2501 = vunpack.c.l.s4 1983009808
    %v2502 = vunpack.c.0.s8 %v2501
    %v2503 = vlaneseq
    %v2504 = vshrl.u32 %v2503, 7
    %v2505 = vsub.s32 %v2502, %v2504
    %v2506 = vrot.slane %v2435, %v2505
    %v2508 = vunpack.c.l.s4 1983009808
    %v2509 = vunpack.c.0.s8 %v2508
    %v2510 = vlaneseq
    %v2511 = vshrl.u32 %v2510, 7
    %v2512 = vsub.s32 %v2509, %v2511
    %v2513 = vrot.slane %v2499, %v2512
    %v2514 = vcombine.high %v2506, %v2506
    %v2515 = vcombine.high %v2513, %v2513
    %v2516 = vcombine.high %v2436, %v2436
    %v2518 = vunpack.c.l.s4 1983009808
    %v2519 = vunpack.c.0.s8 %v2518
    %v2520 = vlaneseq
    %v2521 = vshrl.u32 %v2520, 7
    %v2522 = vsub.s32 %v2519, %v2521
    %v2523 = vrot.slane %v2436, %v2522
    %v2525 = vunpack.c.l.s4 1983009808
    %v2526 = vunpack.c.0.s8 %v2525
    %v2527 = vlaneseq
    %v2528 = vshrl.u32 %v2527, 7
    %v2529 = vsub.s32 %v2526, %v2528
    %v2530 = vrot.slane %v2516, %v2529
    %v2531 = vcombine.high %v2523, %v2523
    %v2532 = vcombine.high %v2530, %v2530
    %v2533 = vcombine.high %v2437, %v2437
    %v2535 = vunpack.c.l.s4 1983009808
    %v2536 = vunpack.c.0.s8 %v2535
    %v2537 = vlaneseq
    %v2538 = vshrl.u32 %v2537, 7
    %v2539 = vsub.s32 %v2536, %v2538
    %v2540 = vrot.slane %v2437, %v2539
    %v2542 = vunpack.c.l.s4 1983009808
    %v2543 = vunpack.c.0.s8 %v2542
    %v2544 = vlaneseq
    %v2545 = vshrl.u32 %v2544, 7
    %v2546 = vsub.s32 %v2543, %v2545
    %v2547 = vrot.slane %v2533, %v2546
    %v2548 = vcombine.high %v2540, %v2540
    %v2549 = vcombine.high %v2547, %v2547
    %v2550 = vcombine.high %v2438, %v2438
    %v2552 = vunpack.c.l.s4 1983009808
    %v2553 = vunpack.c.0.s8 %v2552
    %v2554 = vlaneseq
    %v2555 = vshrl.u32 %v2554, 7
    %v2556 = vsub.s32 %v2553, %v2555
    %v2557 = vrot.slane %v2438, %v2556
    %v2559 = vunpack.c.l.s4 1983009808
    %v2560 = vunpack.c.0.s8 %v2559
    %v2561 = vlaneseq
    %v2562 = vshrl.u32 %v2561, 7
    %v2563 = vsub.s32 %v2560, %v2562
    %v2564 = vrot.slane %v2550, %v2563
    %v2565 = vcombine.high %v2557, %v2557
    %v2566 = vcombine.high %v2564, %v2564
    %v2567 = vcombine.high %v2439, %v2439
    %v2569 = vunpack.c.l.s4 1983009808
    %v2570 = vunpack.c.0.s8 %v2569
    %v2571 = vlaneseq
    %v2572 = vshrl.u32 %v2571, 7
    %v2573 = vsub.s32 %v2570, %v2572
    %v2574 = vrot.slane %v2439, %v2573
    %v2576 = vunpack.c.l.s4 1983009808
    %v2577 = vunpack.c.0.s8 %v2576
    %v2578 = vlaneseq
    %v2579 = vshrl.u32 %v2578, 7
    %v2580 = vsub.s32 %v2577, %v2579
    %v2581 = vrot.slane %v2567, %v2580
    %v2582 = vcombine.high %v2574, %v2574
    %v2583 = vcombine.high %v2581, %v2581
    %v2616 = vsel %vm1377, %v2455, -inf
    %v2617 = vrot.slane %v2616, 4
    %v2618 = vmax.f32 %v2616, %v2617
    %v2619 = vrot.slane %v2618, 2
    %v2620 = vmax.f32 %v2618, %v2619
    %v2621 = vrot.slane %v2620, 1
    %v2622 = vmax.f32 %v2620, %v2621
    %v2623 = vsel %vm1377, %v2463, -inf
    %v2624 = vrot.slane %v2623, 4
    %v2625 = vmax.f32 %v2623, %v2624
    %v2626 = vrot.slane %v2625, 2
    %v2627 = vmax.f32 %v2625, %v2626
    %v2628 = vrot.slane %v2627, 1
    %v2629 = vmax.f32 %v2627, %v2628
    %v2630 = vsel %vm1377, %v2462, -inf
    %v2631 = vrot.slane %v2630, 4
    %v2632 = vmax.f32 %v2630, %v2631
    %v2633 = vrot.slane %v2632, 2
    %v2634 = vmax.f32 %v2632, %v2633
    %v2635 = vrot.slane %v2634, 1
    %v2636 = vmax.f32 %v2634, %v2635
    %v2637 = vsel %vm1377, %v2464, -inf
    %v2638 = vrot.slane %v2637, 4
    %v2639 = vmax.f32 %v2637, %v2638
    %v2640 = vrot.slane %v2639, 2
    %v2641 = vmax.f32 %v2639, %v2640
    %v2642 = vrot.slane %v2641, 1
    %v2643 = vmax.f32 %v2641, %v2642
    %v2644 = vsel %vm1377, %v2472, -inf
    %v2645 = vrot.slane %v2644, 4
    %v2646 = vmax.f32 %v2644, %v2645
    %v2647 = vrot.slane %v2646, 2
    %v2648 = vmax.f32 %v2646, %v2647
    %v2649 = vrot.slane %v2648, 1
    %v2650 = vmax.f32 %v2648, %v2649
    %v2651 = vsel %vm1377, %v2480, -inf
    %v2652 = vrot.slane %v2651, 4
    %v2653 = vmax.f32 %v2651, %v2652
    %v2654 = vrot.slane %v2653, 2
    %v2655 = vmax.f32 %v2653, %v2654
    %v2656 = vrot.slane %v2655, 1
    %v2657 = vmax.f32 %v2655, %v2656
    %v2658 = vsel %vm1377, %v2479, -inf
    %v2659 = vrot.slane %v2658, 4
    %v2660 = vmax.f32 %v2658, %v2659
    %v2661 = vrot.slane %v2660, 2
    %v2662 = vmax.f32 %v2660, %v2661
    %v2663 = vrot.slane %v2662, 1
    %v2664 = vmax.f32 %v2662, %v2663
    %v2665 = vsel %vm1377, %v2481, -inf
    %v2666 = vrot.slane %v2665, 4
    %v2667 = vmax.f32 %v2665, %v2666
    %v2668 = vrot.slane %v2667, 2
    %v2669 = vmax.f32 %v2667, %v2668
    %v2670 = vrot.slane %v2669, 1
    %v2671 = vmax.f32 %v2669, %v2670
    %v2672 = vsel %vm1377, %v2489, -inf
    %v2673 = vrot.slane %v2672, 4
    %v2674 = vmax.f32 %v2672, %v2673
    %v2675 = vrot.slane %v2674, 2
    %v2676 = vmax.f32 %v2674, %v2675
    %v2677 = vrot.slane %v2676, 1
    %v2678 = vmax.f32 %v2676, %v2677
    %v2679 = vsel %vm1377, %v2497, -inf
    %v2680 = vrot.slane %v2679, 4
    %v2681 = vmax.f32 %v2679, %v2680
    %v2682 = vrot.slane %v2681, 2
    %v2683 = vmax.f32 %v2681, %v2682
    %v2684 = vrot.slane %v2683, 1
    %v2685 = vmax.f32 %v2683, %v2684
    %v2686 = vsel %vm1377, %v2496, -inf
    %v2687 = vrot.slane %v2686, 4
    %v2688 = vmax.f32 %v2686, %v2687
    %v2689 = vrot.slane %v2688, 2
    %v2690 = vmax.f32 %v2688, %v2689
    %v2691 = vrot.slane %v2690, 1
    %v2692 = vmax.f32 %v2690, %v2691
    %v2693 = vsel %vm1377, %v2498, -inf
    %v2694 = vrot.slane %v2693, 4
    %v2695 = vmax.f32 %v2693, %v2694
    %v2696 = vrot.slane %v2695, 2
    %v2697 = vmax.f32 %v2695, %v2696
    %v2698 = vrot.slane %v2697, 1
    %v2699 = vmax.f32 %v2697, %v2698
    %v2700 = vsel %vm1377, %v2506, -inf
    %v2701 = vrot.slane %v2700, 4
    %v2702 = vmax.f32 %v2700, %v2701
    %v2703 = vrot.slane %v2702, 2
    %v2704 = vmax.f32 %v2702, %v2703
    %v2705 = vrot.slane %v2704, 1
    %v2706 = vmax.f32 %v2704, %v2705
    %v2707 = vsel %vm1377, %v2514, -inf
    %v2708 = vrot.slane %v2707, 4
    %v2709 = vmax.f32 %v2707, %v2708
    %v2710 = vrot.slane %v2709, 2
    %v2711 = vmax.f32 %v2709, %v2710
    %v2712 = vrot.slane %v2711, 1
    %v2713 = vmax.f32 %v2711, %v2712
    %v2714 = vsel %vm1377, %v2513, -inf
    %v2715 = vrot.slane %v2714, 4
    %v2716 = vmax.f32 %v2714, %v2715
    %v2717 = vrot.slane %v2716, 2
    %v2718 = vmax.f32 %v2716, %v2717
    %v2719 = vrot.slane %v2718, 1
    %v2720 = vmax.f32 %v2718, %v2719
    %v2721 = vsel %vm1377, %v2515, -inf
    %v2722 = vrot.slane %v2721, 4
    %v2723 = vmax.f32 %v2721, %v2722
    %v2724 = vrot.slane %v2723, 2
    %v2725 = vmax.f32 %v2723, %v2724
    %v2726 = vrot.slane %v2725, 1
    %v2727 = vmax.f32 %v2725, %v2726
    %v2728 = vsel %vm1377, %v2523, -inf
    %v2729 = vrot.slane %v2728, 4
    %v2730 = vmax.f32 %v2728, %v2729
    %v2731 = vrot.slane %v2730, 2
    %v2732 = vmax.f32 %v2730, %v2731
    %v2733 = vrot.slane %v2732, 1
    %v2734 = vmax.f32 %v2732, %v2733
    %v2735 = vsel %vm1377, %v2531, -inf
    %v2736 = vrot.slane %v2735, 4
    %v2737 = vmax.f32 %v2735, %v2736
    %v2738 = vrot.slane %v2737, 2
    %v2739 = vmax.f32 %v2737, %v2738
    %v2740 = vrot.slane %v2739, 1
    %v2741 = vmax.f32 %v2739, %v2740
    %v2742 = vsel %vm1377, %v2530, -inf
    %v2743 = vrot.slane %v2742, 4
    %v2744 = vmax.f32 %v2742, %v2743
    %v2745 = vrot.slane %v2744, 2
    %v2746 = vmax.f32 %v2744, %v2745
    %v2747 = vrot.slane %v2746, 1
    %v2748 = vmax.f32 %v2746, %v2747
    %v2749 = vsel %vm1377, %v2532, -inf
    %v2750 = vrot.slane %v2749, 4
    %v2751 = vmax.f32 %v2749, %v2750
    %v2752 = vrot.slane %v2751, 2
    %v2753 = vmax.f32 %v2751, %v2752
    %v2754 = vrot.slane %v2753, 1
    %v2755 = vmax.f32 %v2753, %v2754
    %v2756 = vsel %vm1377, %v2540, -inf
    %v2757 = vrot.slane %v2756, 4
    %v2758 = vmax.f32 %v2756, %v2757
    %v2759 = vrot.slane %v2758, 2
    %v2760 = vmax.f32 %v2758, %v2759
    %v2761 = vrot.slane %v2760, 1
    %v2762 = vmax.f32 %v2760, %v2761
    %v2763 = vsel %vm1377, %v2548, -inf
    %v2764 = vrot.slane %v2763, 4
    %v2765 = vmax.f32 %v2763, %v2764
    %v2766 = vrot.slane %v2765, 2
    %v2767 = vmax.f32 %v2765, %v2766
    %v2768 = vrot.slane %v2767, 1
    %v2769 = vmax.f32 %v2767, %v2768
    %v2770 = vsel %vm1377, %v2547, -inf
    %v2771 = vrot.slane %v2770, 4
    %v2772 = vmax.f32 %v2770, %v2771
    %v2773 = vrot.slane %v2772, 2
    %v2774 = vmax.f32 %v2772, %v2773
    %v2775 = vrot.slane %v2774, 1
    %v2776 = vmax.f32 %v2774, %v2775
    %v2777 = vsel %vm1377, %v2549, -inf
    %v2778 = vrot.slane %v2777, 4
    %v2779 = vmax.f32 %v2777, %v2778
    %v2780 = vrot.slane %v2779, 2
    %v2781 = vmax.f32 %v2779, %v2780
    %v2782 = vrot.slane %v2781, 1
    %v2783 = vmax.f32 %v2781, %v2782
    %v2784 = vsel %vm1377, %v2557, -inf
    %v2785 = vrot.slane %v2784, 4
    %v2786 = vmax.f32 %v2784, %v2785
    %v2787 = vrot.slane %v2786, 2
    %v2788 = vmax.f32 %v2786, %v2787
    %v2789 = vrot.slane %v2788, 1
    %v2790 = vmax.f32 %v2788, %v2789
    %v2791 = vsel %vm1377, %v2565, -inf
    %v2792 = vrot.slane %v2791, 4
    %v2793 = vmax.f32 %v2791, %v2792
    %v2794 = vrot.slane %v2793, 2
    %v2795 = vmax.f32 %v2793, %v2794
    %v2796 = vrot.slane %v2795, 1
    %v2797 = vmax.f32 %v2795, %v2796
    %v2798 = vsel %vm1377, %v2564, -inf
    %v2799 = vrot.slane %v2798, 4
    %v2800 = vmax.f32 %v2798, %v2799
    %v2801 = vrot.slane %v2800, 2
    %v2802 = vmax.f32 %v2800, %v2801
    %v2803 = vrot.slane %v2802, 1
    %v2804 = vmax.f32 %v2802, %v2803
    %v2805 = vsel %vm1377, %v2566, -inf
    %v2806 = vrot.slane %v2805, 4
    %v2807 = vmax.f32 %v2805, %v2806
    %v2808 = vrot.slane %v2807, 2
    %v2809 = vmax.f32 %v2807, %v2808
    %v2810 = vrot.slane %v2809, 1
    %v2811 = vmax.f32 %v2809, %v2810
    %v2812 = vsel %vm1377, %v2574, -inf
    %v2813 = vrot.slane %v2812, 4
    %v2814 = vmax.f32 %v2812, %v2813
    %v2815 = vrot.slane %v2814, 2
    %v2816 = vmax.f32 %v2814, %v2815
    %v2817 = vrot.slane %v2816, 1
    %v2818 = vmax.f32 %v2816, %v2817
    %v2819 = vsel %vm1377, %v2582, -inf
    %v2820 = vrot.slane %v2819, 4
    %v2821 = vmax.f32 %v2819, %v2820
    %v2822 = vrot.slane %v2821, 2
    %v2823 = vmax.f32 %v2821, %v2822
    %v2824 = vrot.slane %v2823, 1
    %v2825 = vmax.f32 %v2823, %v2824
    %v2826 = vsel %vm1377, %v2581, -inf
    %v2827 = vrot.slane %v2826, 4
    %v2828 = vmax.f32 %v2826, %v2827
    %v2829 = vrot.slane %v2828, 2
    %v2830 = vmax.f32 %v2828, %v2829
    %v2831 = vrot.slane %v2830, 1
    %v2832 = vmax.f32 %v2830, %v2831
    %v2833 = vsel %vm1377, %v2583, -inf
    %v2834 = vrot.slane %v2833, 4
    %v2835 = vmax.f32 %v2833, %v2834
    %v2836 = vrot.slane %v2835, 2
    %v2837 = vmax.f32 %v2835, %v2836
    %v2838 = vrot.slane %v2837, 1
    %v2839 = vmax.f32 %v2837, %v2838
    %v2872 = vsel %vm1890, %v2629, %v2622
    %v2873 = vsel %vm1892, %v2636, %v2872
    %v2874 = vsel %vm1894, %v2643, %v2873
    %v2875 = vsel %vm1896, %v2650, %v2874
    %v2876 = vsel %vm1898, %v2657, %v2875
    %v2877 = vsel %vm1900, %v2664, %v2876
    %v2878 = vsel %vm1902, %v2671, %v2877
    %v2879 = vsel %vm1890, %v2685, %v2678
    %v2880 = vsel %vm1892, %v2692, %v2879
    %v2881 = vsel %vm1894, %v2699, %v2880
    %v2882 = vsel %vm1896, %v2706, %v2881
    %v2883 = vsel %vm1898, %v2713, %v2882
    %v2884 = vsel %vm1900, %v2720, %v2883
    %v2885 = vsel %vm1902, %v2727, %v2884
    %v2886 = vsel %vm1890, %v2741, %v2734
    %v2887 = vsel %vm1892, %v2748, %v2886
    %v2888 = vsel %vm1894, %v2755, %v2887
    %v2889 = vsel %vm1896, %v2762, %v2888
    %v2890 = vsel %vm1898, %v2769, %v2889
    %v2891 = vsel %vm1900, %v2776, %v2890
    %v2892 = vsel %vm1902, %v2783, %v2891
    %v2893 = vsel %vm1890, %v2797, %v2790
    %v2894 = vsel %vm1892, %v2804, %v2893
    %v2895 = vsel %vm1894, %v2811, %v2894
    %v2896 = vsel %vm1896, %v2818, %v2895
    %v2897 = vsel %vm1898, %v2825, %v2896
    %v2898 = vsel %vm1900, %v2832, %v2897
    %v2899 = vsel %vm1902, %v2839, %v2898
    %2904 = vst.msk [vmem:[#allocation2 + $0x8] sm:$0xff] %vm142, %v2878
    %2905 = vst.msk [vmem:[#allocation2 + $0x10] sm:$0xff] %vm142, %v2885
    %2906 = vst.msk [vmem:[#allocation2 + $0x18] sm:$0xff] %vm142, %v2892
    %2907 = vst.msk [vmem:[#allocation2 + $0x20] sm:$0xff] %vm142, %v2899
    %v2908 = vld [vmem:[#allocation2 + $0x7] sm:$0xff]
    %v2909 = vld [vmem:[#allocation2 + $0xf] sm:$0xff]
    %v2910 = vld [vmem:[#allocation2 + $0x17] sm:$0xff]
    %v2911 = vld [vmem:[#allocation2 + $0x1f] sm:$0xff]
    %v2912 = vld [vmem:[#allocation2 + $0x9] sm:$0xff]
    %v2913 = vld [vmem:[#allocation2 + $0x11] sm:$0xff]
    %v2914 = vld [vmem:[#allocation2 + $0x19] sm:$0xff]
    %v2915 = vld [vmem:[#allocation2 + $0x21] sm:$0xff]
    %v2916 = vand.u32 %v306, 15
    %v2917 = vand.u32 %v307, 15
    %v2918 = vand.u32 %v308, 15
    %v2919 = vand.u32 %v309, 15
    %vm2920 = vcmp.eq.s32.totalorder %v2916, 0
    %vm2921 = vcmp.eq.s32.totalorder %v2917, 0
    %vm2922 = vcmp.eq.s32.totalorder %v2918, 0
    %vm2923 = vcmp.eq.s32.totalorder %v2919, 0
    %v2924 = vsel %vm2920, 0.0, %v2908
    %v2925 = vsel %vm2921, 0.0, %v2909
    %v2926 = vsel %vm2922, 0.0, %v2910
    %v2927 = vsel %vm2923, 0.0, %v2911
    %vm2928 = vcmp.eq.s32.totalorder %v2916, 15
    %vm2929 = vcmp.eq.s32.totalorder %v2917, 15
    %vm2930 = vcmp.eq.s32.totalorder %v2918, 15
    %vm2931 = vcmp.eq.s32.totalorder %v2919, 15
    %v2932 = vsel %vm2928, 0.0, %v2912
    %v2933 = vsel %vm2929, 0.0, %v2913
    %v2934 = vsel %vm2930, 0.0, %v2914
    %v2935 = vsel %vm2931, 0.0, %v2915
    %v2936 = vld [vmem:[#allocation9] sm:$0xff]
    %s2937 = scalar_lea.vmem [#allocation9], 8
    %v2938 = vld [vmem:[%s2937] sm:$0xff]
    %v2939 = vsel %vm142, %v2878, 0
    %v2941 = vsel %vm142, %v2885, 0
    %v2943 = vsel %vm142, %v2892, 0
    %v2945 = vsel %vm142, %v2899, 0
    %2947 = vmatprep.subr.mxu0 0.0
    %2948 = vmatpush1.msra.mxu0 %v2938
    %2949 = vmatprep.subr.mxu0 0.0
    %2950 = vmatpush1.msra.mxu0 0.0
    %2951 = vmatprep.subr.mxu0 0.0
    %2952 = vmatpush1.msra.mxu0 0.0
    %2953 = vmatprep.subr.mxu0 0.0
    %2954 = vmatpush1.msra.mxu0 0.0
    %2955 = vmatprep.subr.mxu0 0.0
    %2956 = vmatpush1.msra.mxu0 0.0
    %2957 = vmatprep.subr.mxu0 0.0
    %2958 = vmatpush1.msra.mxu0 0.0
    %2959 = vmatprep.subr.mxu0 0.0
    %2960 = vmatpush1.msra.mxu0 0.0
    %2961 = vmatprep.subr.mxu0 0.0
    %2962 = vmatpush1.msra.mxu0 0.0
    %2963 = vmatprep.subr.mxu0 0.0
    %2964 = vmatpush1.msra.mxu0 0.0
    %2965 = vmatprep.subr.mxu0 0.0
    %2966 = vmatpush1.msra.mxu0 0.0
    %2967 = vmatprep.subr.mxu0 0.0
    %2968 = vmatpush1.msra.mxu0 0.0
    %2969 = vmatprep.subr.mxu0 0.0
    %2970 = vmatpush1.msra.mxu0 0.0
    %2971 = vmatprep.subr.mxu0 0.0
    %2972 = vmatpush1.msra.mxu0 0.0
    %2973 = vmatprep.subr.mxu0 0.0
    %2974 = vmatpush1.msra.mxu0 0.0
    %2975 = vmatprep.subr.mxu0 0.0
    %2976 = vmatpush1.msra.mxu0 0.0
    %2977 = vmatprep.subr.mxu0 0.0
    %2978 = vmatpush1.msra.mxu0 0.0
    %2979 = vmatprep.subr.mxu0 0.0
    %2980 = vmatpush1.msra.mxu0 0.0
    %2981 = vmatprep.subr.mxu0 0.0
    %2982 = vmatpush1.msra.mxu0 0.0
    %2983 = vmatprep.subr.mxu0 0.0
    %2984 = vmatpush1.msra.mxu0 0.0
    %2985 = vmatprep.subr.mxu0 0.0
    %2986 = vmatpush1.msra.mxu0 0.0
    %2987 = vmatprep.subr.mxu0 0.0
    %2988 = vmatpush1.msra.mxu0 0.0
    %2989 = vmatprep.subr.mxu0 0.0
    %2990 = vmatpush1.msra.mxu0 0.0
    %2991 = vmatprep.subr.mxu0 0.0
    %2992 = vmatpush1.msra.mxu0 0.0
    %2993 = vmatprep.subr.mxu0 0.0
    %2994 = vmatpush1.msra.mxu0 0.0
    %2995 = vmatprep.subr.mxu0 0.0
    %2996 = vmatpush1.msra.mxu0 0.0
    %2997 = vmatprep.subr.mxu0 0.0
    %2998 = vmatpush1.msra.mxu0 0.0
    %2999 = vmatprep.subr.mxu0 0.0
    %3000 = vmatpush1.msra.mxu0 0.0
    %3001 = vmatprep.subr.mxu0 0.0
    %3002 = vmatpush1.msra.mxu0 0.0
    %3003 = vmatprep.subr.mxu0 0.0
    %3004 = vmatpush1.msra.mxu0 0.0
    %3005 = vmatprep.subr.mxu0 0.0
    %3006 = vmatpush1.msra.mxu0 0.0
    %3007 = vmatprep.subr.mxu0 0.0
    %3008 = vmatpush1.msra.mxu0 0.0
    %3009 = vmatprep.subr.mxu0 0.0
    %3010 = vmatpush1.msra.mxu0 0.0
    %3011 = vmatprep.mubr.f32.mxu0 0.0
    %3012 = vmatmul.mubr.f32.gmra.mrb[0].mxu0 %v2939
    %v3013 = vpop.f32.mrb[0].mxu0
    %v3014 = vadd.f32 0.0, %v3013
    %v3015 = vpop.f32.mrb[0].mxu0
    %3016 = vmatprep.mubr.f32.mxu0 0.0
    %3017 = vmatmul.mubr.f32.gmra.mrb[0].mxu0 %v2941
    %v3018 = vpop.f32.mrb[0].mxu0
    %v3019 = vadd.f32 0.0, %v3018
    %v3020 = vpop.f32.mrb[0].mxu0
    %3021 = vmatprep.mubr.f32.mxu0 0.0
    %3022 = vmatmul.mubr.f32.gmra.mrb[0].mxu0 %v2943
    %v3023 = vpop.f32.mrb[0].mxu0
    %v3024 = vadd.f32 0.0, %v3023
    %v3025 = vpop.f32.mrb[0].mxu0
    %3026 = vmatprep.mubr.f32.mxu0 0.0
    %3027 = vmatmul.mubr.f32.gmra.mrb[0].mxu0 %v2945
    %v3028 = vpop.f32.mrb[0].mxu0
    %v3029 = vadd.f32 0.0, %v3028
    %v3030 = vpop.f32.mrb[0].mxu0
    %3031 = vdwg.mxu0
    %v3033 = vsel %vm142, %v2924, 0
    %v3036 = vsel %vm142, %v2925, 0
    %v3039 = vsel %vm142, %v2926, 0
    %v3042 = vsel %vm142, %v2927, 0
    %3044 = vmatprep.subr.mxu0 0.0
    %3045 = vmatpush1.msra.mxu0 %v2936
    %3046 = vmatprep.subr.mxu0 0.0
    %3047 = vmatpush1.msra.mxu0 0.0
    %3048 = vmatprep.subr.mxu0 0.0
    %3049 = vmatpush1.msra.mxu0 0.0
    %3050 = vmatprep.subr.mxu0 0.0
    %3051 = vmatpush1.msra.mxu0 0.0
    %3052 = vmatprep.subr.mxu0 0.0
    %3053 = vmatpush1.msra.mxu0 0.0
    %3054 = vmatprep.subr.mxu0 0.0
    %3055 = vmatpush1.msra.mxu0 0.0
    %3056 = vmatprep.subr.mxu0 0.0
    %3057 = vmatpush1.msra.mxu0 0.0
    %3058 = vmatprep.subr.mxu0 0.0
    %3059 = vmatpush1.msra.mxu0 0.0
    %3060 = vmatprep.subr.mxu0 0.0
    %3061 = vmatpush1.msra.mxu0 0.0
    %3062 = vmatprep.subr.mxu0 0.0
    %3063 = vmatpush1.msra.mxu0 0.0
    %3064 = vmatprep.subr.mxu0 0.0
    %3065 = vmatpush1.msra.mxu0 0.0
    %3066 = vmatprep.subr.mxu0 0.0
    %3067 = vmatpush1.msra.mxu0 0.0
    %3068 = vmatprep.subr.mxu0 0.0
    %3069 = vmatpush1.msra.mxu0 0.0
    %3070 = vmatprep.subr.mxu0 0.0
    %3071 = vmatpush1.msra.mxu0 0.0
    %3072 = vmatprep.subr.mxu0 0.0
    %3073 = vmatpush1.msra.mxu0 0.0
    %3074 = vmatprep.subr.mxu0 0.0
    %3075 = vmatpush1.msra.mxu0 0.0
    %3076 = vmatprep.subr.mxu0 0.0
    %3077 = vmatpush1.msra.mxu0 0.0
    %3078 = vmatprep.subr.mxu0 0.0
    %3079 = vmatpush1.msra.mxu0 0.0
    %3080 = vmatprep.subr.mxu0 0.0
    %3081 = vmatpush1.msra.mxu0 0.0
    %3082 = vmatprep.subr.mxu0 0.0
    %3083 = vmatpush1.msra.mxu0 0.0
    %3084 = vmatprep.subr.mxu0 0.0
    %3085 = vmatpush1.msra.mxu0 0.0
    %3086 = vmatprep.subr.mxu0 0.0
    %3087 = vmatpush1.msra.mxu0 0.0
    %3088 = vmatprep.subr.mxu0 0.0
    %3089 = vmatpush1.msra.mxu0 0.0
    %3090 = vmatprep.subr.mxu0 0.0
    %3091 = vmatpush1.msra.mxu0 0.0
    %3092 = vmatprep.subr.mxu0 0.0
    %3093 = vmatpush1.msra.mxu0 0.0
    %3094 = vmatprep.subr.mxu0 0.0
    %3095 = vmatpush1.msra.mxu0 0.0
    %3096 = vmatprep.subr.mxu0 0.0
    %3097 = vmatpush1.msra.mxu0 0.0
    %3098 = vmatprep.subr.mxu0 0.0
    %3099 = vmatpush1.msra.mxu0 0.0
    %3100 = vmatprep.subr.mxu0 0.0
    %3101 = vmatpush1.msra.mxu0 0.0
    %3102 = vmatprep.subr.mxu0 0.0
    %3103 = vmatpush1.msra.mxu0 0.0
    %3104 = vmatprep.subr.mxu0 0.0
    %3105 = vmatpush1.msra.mxu0 0.0
    %3106 = vmatprep.subr.mxu0 0.0
    %3107 = vmatpush1.msra.mxu0 0.0
    %3108 = vmatprep.mubr.f32.mxu0 0.0
    %3109 = vmatmul.mubr.f32.gmra.mrb[0].mxu0 %v3033
    %v3110 = vpop.f32.mrb[0].mxu0
    %v3111 = vadd.f32 %v3014, %v3110
    %v3112 = vpop.f32.mrb[0].mxu0
    %3113 = vmatprep.mubr.f32.mxu0 0.0
    %3114 = vmatmul.mubr.f32.gmra.mrb[0].mxu0 %v3036
    %v3115 = vpop.f32.mrb[0].mxu0
    %v3116 = vadd.f32 %v3019, %v3115
    %v3117 = vpop.f32.mrb[0].mxu0
    %3118 = vmatprep.mubr.f32.mxu0 0.0
    %3119 = vmatmul.mubr.f32.gmra.mrb[0].mxu0 %v3039
    %v3120 = vpop.f32.mrb[0].mxu0
    %v3121 = vadd.f32 %v3024, %v3120
    %v3122 = vpop.f32.mrb[0].mxu0
    %3123 = vmatprep.mubr.f32.mxu0 0.0
    %3124 = vmatmul.mubr.f32.gmra.mrb[0].mxu0 %v3042
    %v3125 = vpop.f32.mrb[0].mxu0
    %v3126 = vadd.f32 %v3029, %v3125
    %v3127 = vpop.f32.mrb[0].mxu0
    %3128 = vdwg.mxu0
    %s3129 = scalar_lea.vmem [#allocation9], 16
    %v3130 = vld [vmem:[%s3129] sm:$0xff]
    %v3132 = vsel %vm142, %v2932, 0
    %v3135 = vsel %vm142, %v2933, 0
    %v3138 = vsel %vm142, %v2934, 0
    %v3141 = vsel %vm142, %v2935, 0
    %3143 = vmatprep.subr.mxu0 0.0
    %3144 = vmatpush1.msra.mxu0 %v3130
    %3145 = vmatprep.subr.mxu0 0.0
    %3146 = vmatpush1.msra.mxu0 0.0
    %3147 = vmatprep.subr.mxu0 0.0
    %3148 = vmatpush1.msra.mxu0 0.0
    %3149 = vmatprep.subr.mxu0 0.0
    %3150 = vmatpush1.msra.mxu0 0.0
    %3151 = vmatprep.subr.mxu0 0.0
    %3152 = vmatpush1.msra.mxu0 0.0
    %3153 = vmatprep.subr.mxu0 0.0
    %3154 = vmatpush1.msra.mxu0 0.0
    %3155 = vmatprep.subr.mxu0 0.0
    %3156 = vmatpush1.msra.mxu0 0.0
    %3157 = vmatprep.subr.mxu0 0.0
    %3158 = vmatpush1.msra.mxu0 0.0
    %3159 = vmatprep.subr.mxu0 0.0
    %3160 = vmatpush1.msra.mxu0 0.0
    %3161 = vmatprep.subr.mxu0 0.0
    %3162 = vmatpush1.msra.mxu0 0.0
    %3163 = vmatprep.subr.mxu0 0.0
    %3164 = vmatpush1.msra.mxu0 0.0
    %3165 = vmatprep.subr.mxu0 0.0
    %3166 = vmatpush1.msra.mxu0 0.0
    %3167 = vmatprep.subr.mxu0 0.0
    %3168 = vmatpush1.msra.mxu0 0.0
    %3169 = vmatprep.subr.mxu0 0.0
    %3170 = vmatpush1.msra.mxu0 0.0
    %3171 = vmatprep.subr.mxu0 0.0
    %3172 = vmatpush1.msra.mxu0 0.0
    %3173 = vmatprep.subr.mxu0 0.0
    %3174 = vmatpush1.msra.mxu0 0.0
    %3175 = vmatprep.subr.mxu0 0.0
    %3176 = vmatpush1.msra.mxu0 0.0
    %3177 = vmatprep.subr.mxu0 0.0
    %3178 = vmatpush1.msra.mxu0 0.0
    %3179 = vmatprep.subr.mxu0 0.0
    %3180 = vmatpush1.msra.mxu0 0.0
    %3181 = vmatprep.subr.mxu0 0.0
    %3182 = vmatpush1.msra.mxu0 0.0
    %3183 = vmatprep.subr.mxu0 0.0
    %3184 = vmatpush1.msra.mxu0 0.0
    %3185 = vmatprep.subr.mxu0 0.0
    %3186 = vmatpush1.msra.mxu0 0.0
    %3187 = vmatprep.subr.mxu0 0.0
    %3188 = vmatpush1.msra.mxu0 0.0
    %3189 = vmatprep.subr.mxu0 0.0
    %3190 = vmatpush1.msra.mxu0 0.0
    %3191 = vmatprep.subr.mxu0 0.0
    %3192 = vmatpush1.msra.mxu0 0.0
    %3193 = vmatprep.subr.mxu0 0.0
    %3194 = vmatpush1.msra.mxu0 0.0
    %3195 = vmatprep.subr.mxu0 0.0
    %3196 = vmatpush1.msra.mxu0 0.0
    %3197 = vmatprep.subr.mxu0 0.0
    %3198 = vmatpush1.msra.mxu0 0.0
    %3199 = vmatprep.subr.mxu0 0.0
    %3200 = vmatpush1.msra.mxu0 0.0
    %3201 = vmatprep.subr.mxu0 0.0
    %3202 = vmatpush1.msra.mxu0 0.0
    %3203 = vmatprep.subr.mxu0 0.0
    %3204 = vmatpush1.msra.mxu0 0.0
    %3205 = vmatprep.subr.mxu0 0.0
    %3206 = vmatpush1.msra.mxu0 0.0
    %3207 = vmatprep.mubr.f32.mxu0 0.0
    %3208 = vmatmul.mubr.f32.gmra.mrb[0].mxu0 %v3132
    %v3209 = vpop.f32.mrb[0].mxu0
    %v3210 = vadd.f32 0.0, %v3209
    %v3211 = vpop.f32.mrb[0].mxu0
    %3212 = vmatprep.mubr.f32.mxu0 0.0
    %3213 = vmatmul.mubr.f32.gmra.mrb[0].mxu0 %v3135
    %v3214 = vpop.f32.mrb[0].mxu0
    %v3215 = vadd.f32 0.0, %v3214
    %v3216 = vpop.f32.mrb[0].mxu0
    %3217 = vmatprep.mubr.f32.mxu0 0.0
    %3218 = vmatmul.mubr.f32.gmra.mrb[0].mxu0 %v3138
    %v3219 = vpop.f32.mrb[0].mxu0
    %v3220 = vadd.f32 0.0, %v3219
    %v3221 = vpop.f32.mrb[0].mxu0
    %3222 = vmatprep.mubr.f32.mxu0 0.0
    %3223 = vmatmul.mubr.f32.gmra.mrb[0].mxu0 %v3141
    %v3224 = vpop.f32.mrb[0].mxu0
    %v3225 = vadd.f32 0.0, %v3224
    %v3226 = vpop.f32.mrb[0].mxu0
    %3227 = vdwg.mxu0
    %v3228 = vadd.f32 %v3111, %v3210
    %v3229 = vadd.f32 %v3116, %v3215
    %v3230 = vadd.f32 %v3121, %v3220
    %v3231 = vadd.f32 %v3126, %v3225
    %v3232 = vld [vmem:[#allocation11] sm:$0x1]
    %v3234 = vlaneseq
    %v3235 = vshrl.u32 %v3234, 7
    %v3236 = vsub.s32 0, %v3235
    %v3237 = vrot.slane %v3232, %v3236
    %v3239 = vadd.f32 %v3228, %v3237
    %v3240 = vadd.f32 %v3229, %v3237
    %v3241 = vadd.f32 %v3230, %v3237
    %v3242 = vadd.f32 %v3231, %v3237
    %v3243 = vmax.f32 %v3239, 0.0
    %v3244 = vmax.f32 %v3240, 0.0
    %v3245 = vmax.f32 %v3241, 0.0
    %v3246 = vmax.f32 %v3242, 0.0
    %v3251 = vcombine.high %v3243, %v3243
    %v3253 = vunpack.c.l.s4 1983009808
    %v3254 = vunpack.c.0.s8 %v3253
    %v3255 = vlaneseq
    %v3256 = vshrl.u32 %v3255, 7
    %v3257 = vsub.s32 %v3254, %v3256
    %v3258 = vrot.slane %v3243, %v3257
    %v3260 = vunpack.c.l.s4 1983009808
    %v3261 = vunpack.c.0.s8 %v3260
    %v3262 = vlaneseq
    %v3263 = vshrl.u32 %v3262, 7
    %v3264 = vsub.s32 %v3261, %v3263
    %v3265 = vrot.slane %v3251, %v3264
    %v3266 = vcombine.high %v3258, %v3258
    %v3267 = vcombine.high %v3265, %v3265
    %v3268 = vcombine.high %v3244, %v3244
    %v3270 = vunpack.c.l.s4 1983009808
    %v3271 = vunpack.c.0.s8 %v3270
    %v3272 = vlaneseq
    %v3273 = vshrl.u32 %v3272, 7
    %v3274 = vsub.s32 %v3271, %v3273
    %v3275 = vrot.slane %v3244, %v3274
    %v3277 = vunpack.c.l.s4 1983009808
    %v3278 = vunpack.c.0.s8 %v3277
    %v3279 = vlaneseq
    %v3280 = vshrl.u32 %v3279, 7
    %v3281 = vsub.s32 %v3278, %v3280
    %v3282 = vrot.slane %v3268, %v3281
    %v3283 = vcombine.high %v3275, %v3275
    %v3284 = vcombine.high %v3282, %v3282
    %v3285 = vcombine.high %v3245, %v3245
    %v3287 = vunpack.c.l.s4 1983009808
    %v3288 = vunpack.c.0.s8 %v3287
    %v3289 = vlaneseq
    %v3290 = vshrl.u32 %v3289, 7
    %v3291 = vsub.s32 %v3288, %v3290
    %v3292 = vrot.slane %v3245, %v3291
    %v3294 = vunpack.c.l.s4 1983009808
    %v3295 = vunpack.c.0.s8 %v3294
    %v3296 = vlaneseq
    %v3297 = vshrl.u32 %v3296, 7
    %v3298 = vsub.s32 %v3295, %v3297
    %v3299 = vrot.slane %v3285, %v3298
    %v3300 = vcombine.high %v3292, %v3292
    %v3301 = vcombine.high %v3299, %v3299
    %v3302 = vcombine.high %v3246, %v3246
    %v3304 = vunpack.c.l.s4 1983009808
    %v3305 = vunpack.c.0.s8 %v3304
    %v3306 = vlaneseq
    %v3307 = vshrl.u32 %v3306, 7
    %v3308 = vsub.s32 %v3305, %v3307
    %v3309 = vrot.slane %v3246, %v3308
    %v3311 = vunpack.c.l.s4 1983009808
    %v3312 = vunpack.c.0.s8 %v3311
    %v3313 = vlaneseq
    %v3314 = vshrl.u32 %v3313, 7
    %v3315 = vsub.s32 %v3312, %v3314
    %v3316 = vrot.slane %v3302, %v3315
    %v3317 = vcombine.high %v3309, %v3309
    %v3318 = vcombine.high %v3316, %v3316
    %vm3335 = vcmask 123904
    %v3336 = vsel %vm3335, %v3258, -inf
    %v3337 = vrot.slane %v3336, 4
    %v3338 = vmax.f32 %v3336, %v3337
    %v3339 = vrot.slane %v3338, 2
    %v3340 = vmax.f32 %v3338, %v3339
    %v3341 = vrot.slane %v3340, 1
    %v3342 = vmax.f32 %v3340, %v3341
    %v3343 = vsel %vm3335, %v3266, -inf
    %v3344 = vrot.slane %v3343, 4
    %v3345 = vmax.f32 %v3343, %v3344
    %v3346 = vrot.slane %v3345, 2
    %v3347 = vmax.f32 %v3345, %v3346
    %v3348 = vrot.slane %v3347, 1
    %v3349 = vmax.f32 %v3347, %v3348
    %v3350 = vsel %vm3335, %v3265, -inf
    %v3351 = vrot.slane %v3350, 4
    %v3352 = vmax.f32 %v3350, %v3351
    %v3353 = vrot.slane %v3352, 2
    %v3354 = vmax.f32 %v3352, %v3353
    %v3355 = vrot.slane %v3354, 1
    %v3356 = vmax.f32 %v3354, %v3355
    %v3357 = vsel %vm3335, %v3267, -inf
    %v3358 = vrot.slane %v3357, 4
    %v3359 = vmax.f32 %v3357, %v3358
    %v3360 = vrot.slane %v3359, 2
    %v3361 = vmax.f32 %v3359, %v3360
    %v3362 = vrot.slane %v3361, 1
    %v3363 = vmax.f32 %v3361, %v3362
    %v3364 = vsel %vm3335, %v3275, -inf
    %v3365 = vrot.slane %v3364, 4
    %v3366 = vmax.f32 %v3364, %v3365
    %v3367 = vrot.slane %v3366, 2
    %v3368 = vmax.f32 %v3366, %v3367
    %v3369 = vrot.slane %v3368, 1
    %v3370 = vmax.f32 %v3368, %v3369
    %v3371 = vsel %vm3335, %v3283, -inf
    %v3372 = vrot.slane %v3371, 4
    %v3373 = vmax.f32 %v3371, %v3372
    %v3374 = vrot.slane %v3373, 2
    %v3375 = vmax.f32 %v3373, %v3374
    %v3376 = vrot.slane %v3375, 1
    %v3377 = vmax.f32 %v3375, %v3376
    %v3378 = vsel %vm3335, %v3282, -inf
    %v3379 = vrot.slane %v3378, 4
    %v3380 = vmax.f32 %v3378, %v3379
    %v3381 = vrot.slane %v3380, 2
    %v3382 = vmax.f32 %v3380, %v3381
    %v3383 = vrot.slane %v3382, 1
    %v3384 = vmax.f32 %v3382, %v3383
    %v3385 = vsel %vm3335, %v3284, -inf
    %v3386 = vrot.slane %v3385, 4
    %v3387 = vmax.f32 %v3385, %v3386
    %v3388 = vrot.slane %v3387, 2
    %v3389 = vmax.f32 %v3387, %v3388
    %v3390 = vrot.slane %v3389, 1
    %v3391 = vmax.f32 %v3389, %v3390
    %v3392 = vsel %vm3335, %v3292, -inf
    %v3393 = vrot.slane %v3392, 4
    %v3394 = vmax.f32 %v3392, %v3393
    %v3395 = vrot.slane %v3394, 2
    %v3396 = vmax.f32 %v3394, %v3395
    %v3397 = vrot.slane %v3396, 1
    %v3398 = vmax.f32 %v3396, %v3397
    %v3399 = vsel %vm3335, %v3300, -inf
    %v3400 = vrot.slane %v3399, 4
    %v3401 = vmax.f32 %v3399, %v3400
    %v3402 = vrot.slane %v3401, 2
    %v3403 = vmax.f32 %v3401, %v3402
    %v3404 = vrot.slane %v3403, 1
    %v3405 = vmax.f32 %v3403, %v3404
    %v3406 = vsel %vm3335, %v3299, -inf
    %v3407 = vrot.slane %v3406, 4
    %v3408 = vmax.f32 %v3406, %v3407
    %v3409 = vrot.slane %v3408, 2
    %v3410 = vmax.f32 %v3408, %v3409
    %v3411 = vrot.slane %v3410, 1
    %v3412 = vmax.f32 %v3410, %v3411
    %v3413 = vsel %vm3335, %v3301, -inf
    %v3414 = vrot.slane %v3413, 4
    %v3415 = vmax.f32 %v3413, %v3414
    %v3416 = vrot.slane %v3415, 2
    %v3417 = vmax.f32 %v3415, %v3416
    %v3418 = vrot.slane %v3417, 1
    %v3419 = vmax.f32 %v3417, %v3418
    %v3420 = vsel %vm3335, %v3309, -inf
    %v3421 = vrot.slane %v3420, 4
    %v3422 = vmax.f32 %v3420, %v3421
    %v3423 = vrot.slane %v3422, 2
    %v3424 = vmax.f32 %v3422, %v3423
    %v3425 = vrot.slane %v3424, 1
    %v3426 = vmax.f32 %v3424, %v3425
    %v3427 = vsel %vm3335, %v3317, -inf
    %v3428 = vrot.slane %v3427, 4
    %v3429 = vmax.f32 %v3427, %v3428
    %v3430 = vrot.slane %v3429, 2
    %v3431 = vmax.f32 %v3429, %v3430
    %v3432 = vrot.slane %v3431, 1
    %v3433 = vmax.f32 %v3431, %v3432
    %v3434 = vsel %vm3335, %v3316, -inf
    %v3435 = vrot.slane %v3434, 4
    %v3436 = vmax.f32 %v3434, %v3435
    %v3437 = vrot.slane %v3436, 2
    %v3438 = vmax.f32 %v3436, %v3437
    %v3439 = vrot.slane %v3438, 1
    %v3440 = vmax.f32 %v3438, %v3439
    %v3441 = vsel %vm3335, %v3318, -inf
    %v3442 = vrot.slane %v3441, 4
    %v3443 = vmax.f32 %v3441, %v3442
    %v3444 = vrot.slane %v3443, 2
    %v3445 = vmax.f32 %v3443, %v3444
    %v3446 = vrot.slane %v3445, 1
    %v3447 = vmax.f32 %v3445, %v3446
    %v3448 = vld [vmem:[%s7] sm:$0xff]
    %v3449 = vld [vmem:[%s7 + $0x8] sm:$0xff]
    %v3450 = vld [vmem:[%s7 + $0x10] sm:$0xff]
    %v3451 = vld [vmem:[%s7 + $0x18] sm:$0xff]
    %v3468 = vsel %vm1890, %v3349, %v3342
    %v3469 = vsel %vm1892, %v3356, %v3468
    %v3470 = vsel %vm1894, %v3363, %v3469
    %v3471 = vsel %vm1896, %v3370, %v3470
    %v3472 = vsel %vm1898, %v3377, %v3471
    %v3473 = vsel %vm1900, %v3384, %v3472
    %v3474 = vsel %vm1902, %v3391, %v3473
    %v3475 = vsel %vm1890, %v3405, %v3398
    %v3476 = vsel %vm1892, %v3412, %v3475
    %v3477 = vsel %vm1894, %v3419, %v3476
    %v3478 = vsel %vm1896, %v3426, %v3477
    %v3479 = vsel %vm1898, %v3433, %v3478
    %v3480 = vsel %vm1900, %v3440, %v3479
    %v3481 = vsel %vm1902, %v3447, %v3480
    %vm3482 = vcmask 130048
    %v3483 = vsel %vm3482, %v3474, 0
    %v3485 = vsel %vm3482, %v3481, 0
    %3487 = vmatprep.subr.mxu0 %v3449
    %3488 = vmatpush1.msra.mxu0 %v3448
    %3489 = vmatprep.subr.mxu0 %v3451
    %3490 = vmatpush1.msra.mxu0 %v3450
    %3491 = vmatprep.subr.mxu0 0.0
    %3492 = vmatpush1.msra.mxu0 0.0
    %3493 = vmatprep.subr.mxu0 0.0
    %3494 = vmatpush1.msra.mxu0 0.0
    %3495 = vmatprep.subr.mxu0 0.0
    %3496 = vmatpush1.msra.mxu0 0.0
    %3497 = vmatprep.subr.mxu0 0.0
    %3498 = vmatpush1.msra.mxu0 0.0
    %3499 = vmatprep.subr.mxu0 0.0
    %3500 = vmatpush1.msra.mxu0 0.0
    %3501 = vmatprep.subr.mxu0 0.0
    %3502 = vmatpush1.msra.mxu0 0.0
    %3503 = vmatprep.subr.mxu0 0.0
    %3504 = vmatpush1.msra.mxu0 0.0
    %3505 = vmatprep.subr.mxu0 0.0
    %3506 = vmatpush1.msra.mxu0 0.0
    %3507 = vmatprep.subr.mxu0 0.0
    %3508 = vmatpush1.msra.mxu0 0.0
    %3509 = vmatprep.subr.mxu0 0.0
    %3510 = vmatpush1.msra.mxu0 0.0
    %3511 = vmatprep.subr.mxu0 0.0
    %3512 = vmatpush1.msra.mxu0 0.0
    %3513 = vmatprep.subr.mxu0 0.0
    %3514 = vmatpush1.msra.mxu0 0.0
    %3515 = vmatprep.subr.mxu0 0.0
    %3516 = vmatpush1.msra.mxu0 0.0
    %3517 = vmatprep.subr.mxu0 0.0
    %3518 = vmatpush1.msra.mxu0 0.0
    %3519 = vmatprep.subr.mxu0 0.0
    %3520 = vmatpush1.msra.mxu0 0.0
    %3521 = vmatprep.subr.mxu0 0.0
    %3522 = vmatpush1.msra.mxu0 0.0
    %3523 = vmatprep.subr.mxu0 0.0
    %3524 = vmatpush1.msra.mxu0 0.0
    %3525 = vmatprep.subr.mxu0 0.0
    %3526 = vmatpush1.msra.mxu0 0.0
    %3527 = vmatprep.subr.mxu0 0.0
    %3528 = vmatpush1.msra.mxu0 0.0
    %3529 = vmatprep.subr.mxu0 0.0
    %3530 = vmatpush1.msra.mxu0 0.0
    %3531 = vmatprep.subr.mxu0 0.0
    %3532 = vmatpush1.msra.mxu0 0.0
    %3533 = vmatprep.subr.mxu0 0.0
    %3534 = vmatpush1.msra.mxu0 0.0
    %3535 = vmatprep.subr.mxu0 0.0
    %3536 = vmatpush1.msra.mxu0 0.0
    %3537 = vmatprep.subr.mxu0 0.0
    %3538 = vmatpush1.msra.mxu0 0.0
    %3539 = vmatprep.subr.mxu0 0.0
    %3540 = vmatpush1.msra.mxu0 0.0
    %3541 = vmatprep.subr.mxu0 0.0
    %3542 = vmatpush1.msra.mxu0 0.0
    %3543 = vmatprep.subr.mxu0 0.0
    %3544 = vmatpush1.msra.mxu0 0.0
    %3545 = vmatprep.subr.mxu0 0.0
    %3546 = vmatpush1.msra.mxu0 0.0
    %3547 = vmatprep.subr.mxu0 0.0
    %3548 = vmatpush1.msra.mxu0 0.0
    %3549 = vmatprep.subr.mxu0 0.0
    %3550 = vmatpush1.msra.mxu0 0.0
    %3551 = vmatprep.mubr.f32.mxu0 0.0
    %3552 = vmatmul.mubr.f32.gmra.mrb[0].mxu0 %v3483
    %v3553 = vpop.f32.mrb[0].mxu0
    %v3554 = vadd.f32 0.0, %v3553
    %v3555 = vpop.f32.mrb[0].mxu0
    %v3556 = vadd.f32 0.0, %v3555
    %3557 = vmatprep.mubr.f32.mxu0 0.0
    %3558 = vmatmul.mubr.f32.gmra.mrb[0].mxu0 %v3485
    %v3559 = vpop.f32.mrb[0].mxu0
    %v3560 = vadd.f32 0.0, %v3559
    %v3561 = vpop.f32.mrb[0].mxu0
    %v3562 = vadd.f32 0.0, %v3561
    %3563 = vdwg.mxu0
    %v3564 = vlaneseq
    %v3565 = vand.u32 %v3564, 127
    %v3566 = vadd.s32 %v3565, 128
    %v3567 = vshra.s32 %v3565, 5
    %v3568 = vshra.s32 %v3566, 5
    %v3569 = vand.u32 %v306, 7
    %v3570 = vand.u32 %v307, 7
    %vm3571 = vcmp.eq.s32.totalorder %v3567, %v3569
    %vm3572 = vcmp.eq.s32.totalorder %v3568, %v3569
    %vm3573 = vcmp.eq.s32.totalorder %v3567, %v3570
    %vm3574 = vcmp.eq.s32.totalorder %v3568, %v3570
    %v3575 = vsel %vm3571, %v3554, 0.0
    %v3576 = vsel %vm3572, %v3556, 0.0
    %v3577 = vsel %vm3573, %v3560, 0.0
    %v3578 = vsel %vm3574, %v3562, 0.0
    %3581 = vrot.lane.b32.xlu0 %v3575, 96
    %v3582 = vpop.permute.xlu0 %3581
    %3583 = vrot.lane.b32.xlu0 %v3577, 96
    %v3584 = vpop.permute.xlu0 %3583
    %v3587 = vadd.f32 %v3575, %v3582
    %v3588 = vadd.f32 %v3577, %v3584
    %3589 = vrot.lane.b32.xlu0 %v3575, 64
    %v3590 = vpop.permute.xlu0 %3589
    %3591 = vrot.lane.b32.xlu0 %v3577, 64
    %v3592 = vpop.permute.xlu0 %3591
    %v3595 = vadd.f32 %v3587, %v3590
    %v3596 = vadd.f32 %v3588, %v3592
    %3597 = vrot.lane.b32.xlu0 %v3575, 32
    %v3598 = vpop.permute.xlu0 %3597
    %3599 = vrot.lane.b32.xlu0 %v3577, 32
    %v3600 = vpop.permute.xlu0 %3599
    %v3603 = vadd.f32 %v3595, %v3598
    %v3604 = vadd.f32 %v3596, %v3600
    %v3605 = vadd.f32 %v3603, %v3576
    %v3606 = vadd.f32 %v3604, %v3578
    %3609 = vrot.lane.b32.xlu0 %v3576, 96
    %v3610 = vpop.permute.xlu0 %3609
    %3611 = vrot.lane.b32.xlu0 %v3578, 96
    %v3612 = vpop.permute.xlu0 %3611
    %v3615 = vadd.f32 %v3605, %v3610
    %v3616 = vadd.f32 %v3606, %v3612
    %3617 = vrot.lane.b32.xlu0 %v3576, 64
    %v3618 = vpop.permute.xlu0 %3617
    %3619 = vrot.lane.b32.xlu0 %v3578, 64
    %v3620 = vpop.permute.xlu0 %3619
    %v3623 = vadd.f32 %v3615, %v3618
    %v3624 = vadd.f32 %v3616, %v3620
    %3625 = vrot.lane.b32.xlu0 %v3576, 32
    %v3626 = vpop.permute.xlu0 %3625
    %3627 = vrot.lane.b32.xlu0 %v3578, 32
    %v3628 = vpop.permute.xlu0 %3627
    %v3631 = vadd.f32 %v3623, %v3626
    %v3632 = vadd.f32 %v3624, %v3628
    %v3633 = vshra.s32 %v3565, 3
    %vm3634 = vcmp.eq.s32.totalorder %v3633, %v306
    %v3635 = vsel %vm3634, 1, 0
    %v3636 = vcvt.s32.f32 %v3635
    %v3637 = vld [vmem:[#allocation12] sm:$0x1]
    %v3639 = vlaneseq
    %v3640 = vshrl.u32 %v3639, 7
    %v3641 = vsub.s32 0, %v3640
    %v3642 = vrot.slane %v3637, %v3641
    %v3645 = vsel %vm3482, %v3636, 0
    %3647 = vmatprep.subr.mxu0 0.0
    %3648 = vmatpush1.msra.mxu0 %v3631
    %3649 = vmatprep.subr.mxu0 0.0
    %3650 = vmatpush1.msra.mxu0 %v3632
    %3651 = vmatprep.subr.mxu0 0.0
    %3652 = vmatpush1.msra.mxu0 0.0
    %3653 = vmatprep.subr.mxu0 0.0
    %3654 = vmatpush1.msra.mxu0 0.0
    %3655 = vmatprep.subr.mxu0 0.0
    %3656 = vmatpush1.msra.mxu0 0.0
    %3657 = vmatprep.subr.mxu0 0.0
    %3658 = vmatpush1.msra.mxu0 0.0
    %3659 = vmatprep.subr.mxu0 0.0
    %3660 = vmatpush1.msra.mxu0 0.0
    %3661 = vmatprep.subr.mxu0 0.0
    %3662 = vmatpush1.msra.mxu0 0.0
    %3663 = vmatprep.subr.mxu0 0.0
    %3664 = vmatpush1.msra.mxu0 0.0
    %3665 = vmatprep.subr.mxu0 0.0
    %3666 = vmatpush1.msra.mxu0 0.0
    %3667 = vmatprep.subr.mxu0 0.0
    %3668 = vmatpush1.msra.mxu0 0.0
    %3669 = vmatprep.subr.mxu0 0.0
    %3670 = vmatpush1.msra.mxu0 0.0
    %3671 = vmatprep.subr.mxu0 0.0
    %3672 = vmatpush1.msra.mxu0 0.0
    %3673 = vmatprep.subr.mxu0 0.0
    %3674 = vmatpush1.msra.mxu0 0.0
    %3675 = vmatprep.subr.mxu0 0.0
    %3676 = vmatpush1.msra.mxu0 0.0
    %3677 = vmatprep.subr.mxu0 0.0
    %3678 = vmatpush1.msra.mxu0 0.0
    %3679 = vmatprep.subr.mxu0 0.0
    %3680 = vmatpush1.msra.mxu0 0.0
    %3681 = vmatprep.subr.mxu0 0.0
    %3682 = vmatpush1.msra.mxu0 0.0
    %3683 = vmatprep.subr.mxu0 0.0
    %3684 = vmatpush1.msra.mxu0 0.0
    %3685 = vmatprep.subr.mxu0 0.0
    %3686 = vmatpush1.msra.mxu0 0.0
    %3687 = vmatprep.subr.mxu0 0.0
    %3688 = vmatpush1.msra.mxu0 0.0
    %3689 = vmatprep.subr.mxu0 0.0
    %3690 = vmatpush1.msra.mxu0 0.0
    %3691 = vmatprep.subr.mxu0 0.0
    %3692 = vmatpush1.msra.mxu0 0.0
    %3693 = vmatprep.subr.mxu0 0.0
    %3694 = vmatpush1.msra.mxu0 0.0
    %3695 = vmatprep.subr.mxu0 0.0
    %3696 = vmatpush1.msra.mxu0 0.0
    %3697 = vmatprep.subr.mxu0 0.0
    %3698 = vmatpush1.msra.mxu0 0.0
    %3699 = vmatprep.subr.mxu0 0.0
    %3700 = vmatpush1.msra.mxu0 0.0
    %3701 = vmatprep.subr.mxu0 0.0
    %3702 = vmatpush1.msra.mxu0 0.0
    %3703 = vmatprep.subr.mxu0 0.0
    %3704 = vmatpush1.msra.mxu0 0.0
    %3705 = vmatprep.subr.mxu0 0.0
    %3706 = vmatpush1.msra.mxu0 0.0
    %3707 = vmatprep.subr.mxu0 0.0
    %3708 = vmatpush1.msra.mxu0 0.0
    %3709 = vmatprep.subr.mxu0 0.0
    %3710 = vmatpush1.msra.mxu0 0.0
    %3711 = vmatprep.mubr.f32.mxu0 0.0
    %3712 = vmatmul.mubr.f32.gmra.mrb[0].mxu0 %v3645
    %v3713 = vpop.f32.mrb[0].mxu0
    %v3714 = vadd.f32 %v3642, %v3713
    %v3715 = vpop.f32.mrb[0].mxu0
    %3716 = vdwg.mxu0
    %v3717 = vmul.f32 %v3714, %v3714
    %vm3718 = vcmask 254976
    %v3719 = vsel %vm3718, %v3717, 0.0
    %3720 = vadd.xlane.f32.xlu0 %v3719
    %v3721 = vpop.xlane.xlu0 %3720
    %v3722 = vmax.f32 %v3721, 1e-24
    %v3723 = vrsqrt.pop %v3722
    %v3724 = vmul.f32 %v3714, %v3723
    %v3725 = vld [vmem:[%s9] sm:$0xff]
    %v3726 = vld [vmem:[%s9 + $0x8] sm:$0xff]
    %v3727 = vld [vmem:[%s9 + $0x10] sm:$0xff]
    %v3728 = vld [vmem:[%s9 + $0x18] sm:$0xff]
    %v3729 = vld [vmem:[#allocation14] sm:$0x1]
    %v3731 = vlaneseq
    %v3732 = vshrl.u32 %v3731, 7
    %v3733 = vsub.s32 0, %v3732
    %v3734 = vrot.slane %v3729, %v3733
    %vm3736 = vcmask 261120
    %v3738 = vsel %vm3736, %v3724, 0
    %3740 = vmatprep.subr.mxu0 0.0
    %3741 = vmatpush1.msra.mxu0 %v3725
    %3742 = vmatprep.subr.mxu0 0.0
    %3743 = vmatpush1.msra.mxu0 %v3726
    %3744 = vmatprep.subr.mxu0 0.0
    %3745 = vmatpush1.msra.mxu0 %v3727
    %3746 = vmatprep.subr.mxu0 0.0
    %3747 = vmatpush1.msra.mxu0 %v3728
    %3748 = vmatprep.subr.mxu0 0.0
    %3749 = vmatpush1.msra.mxu0 0.0
    %3750 = vmatprep.subr.mxu0 0.0
    %3751 = vmatpush1.msra.mxu0 0.0
    %3752 = vmatprep.subr.mxu0 0.0
    %3753 = vmatpush1.msra.mxu0 0.0
    %3754 = vmatprep.subr.mxu0 0.0
    %3755 = vmatpush1.msra.mxu0 0.0
    %3756 = vmatprep.subr.mxu0 0.0
    %3757 = vmatpush1.msra.mxu0 0.0
    %3758 = vmatprep.subr.mxu0 0.0
    %3759 = vmatpush1.msra.mxu0 0.0
    %3760 = vmatprep.subr.mxu0 0.0
    %3761 = vmatpush1.msra.mxu0 0.0
    %3762 = vmatprep.subr.mxu0 0.0
    %3763 = vmatpush1.msra.mxu0 0.0
    %3764 = vmatprep.subr.mxu0 0.0
    %3765 = vmatpush1.msra.mxu0 0.0
    %3766 = vmatprep.subr.mxu0 0.0
    %3767 = vmatpush1.msra.mxu0 0.0
    %3768 = vmatprep.subr.mxu0 0.0
    %3769 = vmatpush1.msra.mxu0 0.0
    %3770 = vmatprep.subr.mxu0 0.0
    %3771 = vmatpush1.msra.mxu0 0.0
    %3772 = vmatprep.subr.mxu0 0.0
    %3773 = vmatpush1.msra.mxu0 0.0
    %3774 = vmatprep.subr.mxu0 0.0
    %3775 = vmatpush1.msra.mxu0 0.0
    %3776 = vmatprep.subr.mxu0 0.0
    %3777 = vmatpush1.msra.mxu0 0.0
    %3778 = vmatprep.subr.mxu0 0.0
    %3779 = vmatpush1.msra.mxu0 0.0
    %3780 = vmatprep.subr.mxu0 0.0
    %3781 = vmatpush1.msra.mxu0 0.0
    %3782 = vmatprep.subr.mxu0 0.0
    %3783 = vmatpush1.msra.mxu0 0.0
    %3784 = vmatprep.subr.mxu0 0.0
    %3785 = vmatpush1.msra.mxu0 0.0
    %3786 = vmatprep.subr.mxu0 0.0
    %3787 = vmatpush1.msra.mxu0 0.0
    %3788 = vmatprep.subr.mxu0 0.0
    %3789 = vmatpush1.msra.mxu0 0.0
    %3790 = vmatprep.subr.mxu0 0.0
    %3791 = vmatpush1.msra.mxu0 0.0
    %3792 = vmatprep.subr.mxu0 0.0
    %3793 = vmatpush1.msra.mxu0 0.0
    %3794 = vmatprep.subr.mxu0 0.0
    %3795 = vmatpush1.msra.mxu0 0.0
    %3796 = vmatprep.subr.mxu0 0.0
    %3797 = vmatpush1.msra.mxu0 0.0
    %3798 = vmatprep.subr.mxu0 0.0
    %3799 = vmatpush1.msra.mxu0 0.0
    %3800 = vmatprep.subr.mxu0 0.0
    %3801 = vmatpush1.msra.mxu0 0.0
    %3802 = vmatprep.subr.mxu0 0.0
    %3803 = vmatpush1.msra.mxu0 0.0
    %3804 = vmatprep.mubr.f32.mxu0 0.0
    %3805 = vmatmul.mubr.f32.gmra.mrb[0].mxu0 %v3738
    %v3806 = vpop.f32.mrb[0].mxu0
    %v3807 = vadd.f32 %v3734, %v3806
    %v3808 = vpop.f32.mrb[0].mxu0
    %3809 = vdwg.mxu0
    %v3810 = vmax.f32 %v3807, 0.0
    %v3811 = vld [vmem:[%s11] sm:$0xff]
    %v3812 = vld [vmem:[%s11 + $0x8] sm:$0xff]
    %v3813 = vld [vmem:[%s11 + $0x10] sm:$0xff]
    %v3814 = vld [vmem:[%s11 + $0x18] sm:$0xff]
    %v3815 = vld [vmem:[%s11 + $0x20] sm:$0xff]
    %v3816 = vld [vmem:[%s11 + $0x28] sm:$0xff]
    %v3817 = vld [vmem:[%s11 + $0x30] sm:$0xff]
    %v3818 = vld [vmem:[%s11 + $0x38] sm:$0xff]
    %v3819 = vld [vmem:[#allocation15] sm:$0x1]
    %v3821 = vlaneseq
    %v3822 = vshrl.u32 %v3821, 7
    %v3823 = vsub.s32 0, %v3822
    %v3824 = vrot.slane %v3819, %v3823
    %vm3826 = vcmask 523264
    %v3828 = vsel %vm3826, %v3810, 0
    %3830 = vmatprep.subr.mxu0 0.0
    %3831 = vmatpush1.msra.mxu0 %v3811
    %3832 = vmatprep.subr.mxu0 0.0
    %3833 = vmatpush1.msra.mxu0 %v3812
    %3834 = vmatprep.subr.mxu0 0.0
    %3835 = vmatpush1.msra.mxu0 %v3813
    %3836 = vmatprep.subr.mxu0 0.0
    %3837 = vmatpush1.msra.mxu0 %v3814
    %3838 = vmatprep.subr.mxu0 0.0
    %3839 = vmatpush1.msra.mxu0 %v3815
    %3840 = vmatprep.subr.mxu0 0.0
    %3841 = vmatpush1.msra.mxu0 %v3816
    %3842 = vmatprep.subr.mxu0 0.0
    %3843 = vmatpush1.msra.mxu0 %v3817
    %3844 = vmatprep.subr.mxu0 0.0
    %3845 = vmatpush1.msra.mxu0 %v3818
    %3846 = vmatprep.subr.mxu0 0.0
    %3847 = vmatpush1.msra.mxu0 0.0
    %3848 = vmatprep.subr.mxu0 0.0
    %3849 = vmatpush1.msra.mxu0 0.0
    %3850 = vmatprep.subr.mxu0 0.0
    %3851 = vmatpush1.msra.mxu0 0.0
    %3852 = vmatprep.subr.mxu0 0.0
    %3853 = vmatpush1.msra.mxu0 0.0
    %3854 = vmatprep.subr.mxu0 0.0
    %3855 = vmatpush1.msra.mxu0 0.0
    %3856 = vmatprep.subr.mxu0 0.0
    %3857 = vmatpush1.msra.mxu0 0.0
    %3858 = vmatprep.subr.mxu0 0.0
    %3859 = vmatpush1.msra.mxu0 0.0
    %3860 = vmatprep.subr.mxu0 0.0
    %3861 = vmatpush1.msra.mxu0 0.0
    %3862 = vmatprep.subr.mxu0 0.0
    %3863 = vmatpush1.msra.mxu0 0.0
    %3864 = vmatprep.subr.mxu0 0.0
    %3865 = vmatpush1.msra.mxu0 0.0
    %3866 = vmatprep.subr.mxu0 0.0
    %3867 = vmatpush1.msra.mxu0 0.0
    %3868 = vmatprep.subr.mxu0 0.0
    %3869 = vmatpush1.msra.mxu0 0.0
    %3870 = vmatprep.subr.mxu0 0.0
    %3871 = vmatpush1.msra.mxu0 0.0
    %3872 = vmatprep.subr.mxu0 0.0
    %3873 = vmatpush1.msra.mxu0 0.0
    %3874 = vmatprep.subr.mxu0 0.0
    %3875 = vmatpush1.msra.mxu0 0.0
    %3876 = vmatprep.subr.mxu0 0.0
    %3877 = vmatpush1.msra.mxu0 0.0
    %3878 = vmatprep.subr.mxu0 0.0
    %3879 = vmatpush1.msra.mxu0 0.0
    %3880 = vmatprep.subr.mxu0 0.0
    %3881 = vmatpush1.msra.mxu0 0.0
    %3882 = vmatprep.subr.mxu0 0.0
    %3883 = vmatpush1.msra.mxu0 0.0
    %3884 = vmatprep.subr.mxu0 0.0
    %3885 = vmatpush1.msra.mxu0 0.0
    %3886 = vmatprep.subr.mxu0 0.0
    %3887 = vmatpush1.msra.mxu0 0.0
    %3888 = vmatprep.subr.mxu0 0.0
    %3889 = vmatpush1.msra.mxu0 0.0
    %3890 = vmatprep.subr.mxu0 0.0
    %3891 = vmatpush1.msra.mxu0 0.0
    %3892 = vmatprep.subr.mxu0 0.0
    %3893 = vmatpush1.msra.mxu0 0.0
    %3894 = vmatprep.mubr.f32.mxu0 0.0
    %3895 = vmatmul.mubr.f32.gmra.mrb[0].mxu0 %v3828
    %v3896 = vpop.f32.mrb[0].mxu0
    %v3897 = vadd.f32 %v3824, %v3896
    %v3898 = vpop.f32.mrb[0].mxu0
    %3899 = vdwg.mxu0
    %3900 = vst [vmem:[#allocation17] sm:$0x3] %v3897
    // Predicated region
    $region86: #{class_cnn1_forward.1} parent=1 // pred_check
      _
    $region87: #{class_cnn1_forward.1} parent=1 // pred_check_branch
      %3902 = sbr.rel (0) target = $region89
    $region88: #{class_cnn1_forward.1} parent=1 // pred_region
      %s3904 = ssub.s32 32, 32
      %3905 = vsyncadd [#allocation5], %s3904
      %s3907 = sshll.u32 [#allocation17], 4
      %s3908 = int_to_ptr.vmem [resolvable:$true] %s3907
      %3910 = dma.vmem_to_hbm [thread:$0]  %s3908, 32, %s13, [#allocation5]
    $region89: #{class_cnn1_forward.1} parent=1 // pred_fallthru
      _
    // Predicated region
    $region90: #{class_cnn1_forward.1} parent=1 // pred_check
      _
    $region91: #{class_cnn1_forward.1} parent=1 // pred_check_branch
      %3912 = sbr.rel (0) target = $region93
    $region92: #{class_cnn1_forward.1} parent=1 // pred_region
      %3913 = dma.done [#allocation5], 32
    $region93: #{class_cnn1_forward.1} parent=1 // pred_fallthru
      _
    %3914 = vsyncpa [#allocation4], 1
    %3915 = vsyncpa [#allocation7], 1
    %3916 = vsyncpa [#allocation10], 1
    %3917 = vsyncpa [#allocation13], 1
    %3918 = vsyncpa [#allocation16], 1
    %3919 = vsyncpa [#allocation5], 1

</llo_original>
